<compile_context>
chip_gen: v5e
topology: v5e:2x2
jax: 0.10.0
libtpu: 0.0.40
codegen_flags: <defaults>
</compile_context>

<pallas_src>
import functools

import jax
import jax.numpy as jnp
from jax.experimental import pallas as pl
from jax.experimental.pallas import tpu as pltpu


# ---------------------------------------------------------------------------
# Tiling helpers (per-generation caps, cached)
# ---------------------------------------------------------------------------
def _round_up(v, m):
    return ((v + m - 1) // m) * m


@functools.lru_cache(maxsize=1)
def _tile_caps():
    """(tm_cap, tn_cap, tk_cap, vmem_limit_bytes), gated on the TPU generation."""
    try:
        vmem = pltpu.get_tpu_info().vmem_capacity_bytes
    except Exception:  # be defensive: fall back to the smallest-VMEM assumption
        vmem = 64 * 1024 * 1024
    if vmem >= 128 * 1024 * 1024:        # v5e / v6e: 128 MiB physical VMEM
        return 512, 512, 1024, 64 * 1024 * 1024
    # v7x-like (64 MiB physical, 32 MiB default scoped): keep the double-buffered
    # per-step footprint small and do not raise the scoped limit.
    return 256, 512, 512, 32 * 1024 * 1024


def _choose_tile(dim, unit, cap):
    r = _round_up(max(dim, 1), unit)
    return r if r <= cap else cap


def _tiles_mkn(M, K, N):
    tm_cap, tn_cap, tk_cap, _ = _tile_caps()
    tm = _choose_tile(M, 16, tm_cap)     # 16: bf16 packs 2 rows per sublane
    tk = _choose_tile(K, 128, tk_cap)
    tn = _choose_tile(N, 128, tn_cap)
    return tm, tk, tn


def _padded_m(M):
    tm_cap, _, _, _ = _tile_caps()
    return _round_up(M, _choose_tile(M, 16, tm_cap))


def _padded_kn(K, N):
    _, tk, tn = _tiles_mkn(16, K, N)
    return _round_up(K, tk), _round_up(N, tn)


def _pad_cast_act(x2d, k_pad_to):
    """Pad a (M, K) activation/patch matrix to (Mp, Kp) and cast to bf16 in one shot
    (fuses into the patch-construction producer - a single HBM materialization)."""
    M, K = x2d.shape
    Mp = _padded_m(M)
    return jnp.pad(x2d, ((0, Mp - M), (0, k_pad_to - K))).astype(jnp.bfloat16)


# ---------------------------------------------------------------------------
# Tiled batched matmul + bias + activation (the single hot-path Pallas kernel)
# ---------------------------------------------------------------------------
def _bmm_kernel(x_ref, w_ref, b_ref, o_ref, acc_ref, *, act):
    k = pl.program_id(3)

    @pl.when(k == 0)
    def _():
        acc_ref[...] = jnp.zeros_like(acc_ref)

    acc_ref[...] += jnp.dot(x_ref[...], w_ref[...],
                            preferred_element_type=jnp.float32)

    @pl.when(k == pl.num_programs(3) - 1)
    def _():
        acc = acc_ref[...] + b_ref[...]          # (tm,tn) + (1,tn), f32
        if act == "relu":
            acc = jnp.maximum(acc, 0.0)
        elif act == "sigmoid":
            acc = jax.nn.sigmoid(acc)
        o_ref[...] = acc.astype(o_ref.dtype)


def _bmm_bias_act_padded(xp, wp, bp, *, act="none", out_dtype=jnp.float32):
    """Pre-padded batched matmul.

    xp: (G, Mp, Kp) bf16   wp: (G, Kp, Np) bf16   bp: (1, Np) f32  ->  (G, Mp, Np).
    All dims are already tile-aligned (weights pre-padded at build time, activations
    padded during patch construction), so every block is (8,128)-aligned and every
    output store is lane-dense.
    """
    G, Mp, Kp = xp.shape
    Np = wp.shape[2]
    tm, tk, tn = _tiles_mkn(Mp, Kp, Np)
    # v7x has 2 TensorCores: ensure at least 2 iterations on a parallel axis so both
    # cores get work (no-op on single-core v5e/v6e; one extra ~0.35us grid step).
    if G * (Mp // tm) * (Np // tn) < 2 and Mp >= 32 and (Mp // 2) % 16 == 0:
        tm = Mp // 2
    grid = (G, Mp // tm, Np // tn, Kp // tk)

    out_bytes = jnp.dtype(out_dtype).itemsize
    cost = pl.CostEstimate(
        flops=2 * G * Mp * Np * Kp,
        transcendentals=G * Mp * Np if act == "sigmoid" else 0,
        bytes_accessed=xp.size * 2 + wp.size * 2 + bp.size * 4 + G * Mp * Np * out_bytes,
    )
    _, _, _, vmem_limit = _tile_caps()

    return pl.pallas_call(
        functools.partial(_bmm_kernel, act=act),
        out_shape=jax.ShapeDtypeStruct((G, Mp, Np), out_dtype),
        grid_spec=pltpu.PrefetchScalarGridSpec(
            num_scalar_prefetch=0,
            grid=grid,
            in_specs=[
                pl.BlockSpec((None, tm, tk), lambda g, i, j, k: (g, i, k)),
                pl.BlockSpec((None, tk, tn), lambda g, i, j, k: (g, k, j)),
                pl.BlockSpec((1, tn), lambda g, i, j, k: (0, j)),
            ],
            out_specs=pl.BlockSpec((None, tm, tn), lambda g, i, j, k: (g, i, j)),
            scratch_shapes=[pltpu.VMEM((tm, tn), jnp.float32)],
        ),
        compiler_params=pltpu.CompilerParams(
            dimension_semantics=("parallel", "parallel", "parallel", "arbitrary"),
            vmem_limit_bytes=vmem_limit),
        cost_estimate=cost,
    )(xp, wp, bp)


# ---------------------------------------------------------------------------
# Conv layers, NHWC end-to-end (im2col patches are lane-dense on C)
# ---------------------------------------------------------------------------
def conv2d_nhwc(x, w_p, b_p, *, cout, kh, kw, stride, pad, act,
                out_dtype=jnp.bfloat16):
    """PyTorch Conv2d, NHWC.  x: (B,H,W,Cin) bf16; w_p: pre-packed (Kp,Np) bf16."""
    B, H, W, C = x.shape
    Kp = w_p.shape[0]
    xp = jnp.pad(x, ((0, 0), (pad, pad), (pad, pad), (0, 0)))
    oh = (H + 2 * pad - kh) // stride + 1
    ow = (W + 2 * pad - kw) // stride + 1
    # Channels stay last (lane axis); taps concatenated on the lane axis.
    cols = [xp[:, i:i + stride * oh:stride, j:j + stride * ow:stride, :]
            for i in range(kh) for j in range(kw)]
    patches = jnp.concatenate(cols, axis=-1).reshape(B * oh * ow, kh * kw * C)
    patches = _pad_cast_act(patches, Kp)
    y = _bmm_bias_act_padded(patches[None], w_p[None], b_p, act=act,
                             out_dtype=out_dtype)
    return y[0, :B * oh * ow, :cout].reshape(B, oh, ow, cout)


def conv_transpose2d_nhwc(x, w_p, b_p, *, cout, act, out_dtype=jnp.bfloat16):
    """PyTorch ConvTranspose2d(kernel=4, stride=2, padding=1), NHWC, as a sub-pixel
    (phase-decomposed) conv: 4 phase matmuls batched as G=4 on the UN-dilated input
    (4x fewer MXU FLOPs / 4x less patch traffic than zero-dilation).

    x: (B,H,W,Cin);  w_p: (4, Kp, Np) pre-built phase matrices;  out (B,2H,2W,cout).
    """
    B, H, W, Cin = x.shape
    Kp = w_p.shape[1]
    xpad = jnp.pad(x, ((0, 0), (1, 1), (1, 1), (0, 0)))
    # 2x2 tap window over the padded input; tap index t = ty*2 + tx.
    taps = jnp.stack([xpad[:, ty:ty + H + 1, tx:tx + W + 1, :]
                      for ty in range(2) for tx in range(2)],
                     axis=3)                                   # (B, H+1, W+1, 4, Cin)
    M = B * H * W
    Mp = _padded_m(M)
    phase_patches = []
    for ry in range(2):
        for rx in range(2):
            p = taps[:, ry:ry + H, rx:rx + W, :, :].reshape(M, 4 * Cin)
            phase_patches.append(p)
    xph = jnp.stack(phase_patches, axis=0)                     # (4, M, 4*Cin)
    xph = jnp.pad(xph, ((0, 0), (0, Mp - M), (0, Kp - 4 * Cin))).astype(jnp.bfloat16)
    y = _bmm_bias_act_padded(xph, w_p, b_p, act=act, out_dtype=out_dtype)
    y = y[:, :M, :cout].reshape(2, 2, B, H, W, cout)
    # Depth-to-space with channels kept last (lane axis untouched, sublane shuffle):
    #   out[b, 2q+ry, 2p+rx, c] = phase(ry,rx)[b, q, p, c]
    y = y.transpose(2, 3, 0, 4, 1, 5).reshape(B, 2 * H, 2 * W, cout)
    return y


# ---------------------------------------------------------------------------
# Parameters: deterministic kaiming init, pre-packed (matmul-ready, padded, bf16)
# ---------------------------------------------------------------------------
def _kaiming(key, shape, fan_out):
    return jnp.sqrt(2.0 / fan_out) * jax.random.normal(key, shape, jnp.float32)


def _pack_matmul_weight(w_kn, b_n):
    """(K,N) f32 weight + (N,) bias -> tile-padded bf16 weight, (1,Np) f32 bias."""
    K, N = w_kn.shape
    Kp, Np = _padded_kn(K, N)
    wp = jnp.pad(w_kn, ((0, Kp - K), (0, Np - N))).astype(jnp.bfloat16)
    bp = jnp.pad(b_n.astype(jnp.float32), (0, Np - N)).reshape(1, Np)
    return wp, bp


def _prep_conv_w(w, b):
    """PyTorch Conv2d weight (Cout,Cin,kh,kw) -> NHWC-im2col matmul operands."""
    cout = w.shape[0]
    wmat = w.transpose(2, 3, 1, 0).reshape(-1, cout)           # rows = (ky,kx,cin)
    return _pack_matmul_weight(wmat, b)


def _prep_dense_w(w, b):
    """PyTorch Linear weight (out,in) -> (in,out) matmul operands."""
    return _pack_matmul_weight(w.T, b)


def _prep_convT_phases(w_t, b):
    """PyTorch ConvTranspose2d weight (Cin,Cout,4,4) -> 4 phase matrices (4,Kp,Np),
    pre-flipped / pre-transposed / pre-padded / bf16, plus the padded bias row."""
    Cin, Cout = w_t.shape[0], w_t.shape[1]
    wf = jnp.flip(w_t, axis=(2, 3))                            # equivalent fwd-conv kernel
    mats, bias = [], None
    for ry in range(2):
        for rx in range(2):
            wsub = wf[:, :, ry::2, rx::2]                      # (Cin, Cout, 2, 2)
            wmat = wsub.transpose(2, 3, 0, 1).reshape(4 * Cin, Cout)   # rows=(sy,sx,cin)
            wp, bias = _pack_matmul_weight(wmat, b)
            mats.append(wp)
    return jnp.stack(mats, axis=0), bias


def make_params(key, *, hidden_dim, expand_enc, expand_dec,
                input_size, output_size, input_dims, output_dims):
    ls_e = input_size >> 3
    ls_d = output_size >> 3
    keys = jax.random.split(key, 16)
    p = {}
    # ---------------- Encoder ----------------
    p["e1"] = _prep_conv_w(_kaiming(keys[0], (expand_enc, input_dims, 3, 3), expand_enc * 9),
                           0.01 * jax.random.normal(keys[1], (expand_enc,), jnp.float32))
    p["e2"] = _prep_conv_w(_kaiming(keys[2], (expand_enc, expand_enc, 3, 3), expand_enc * 9),
                           0.01 * jax.random.normal(keys[3], (expand_enc,), jnp.float32))
    p["e3"] = _prep_conv_w(_kaiming(keys[4], (expand_enc, expand_enc, 3, 3), expand_enc * 9),
                           0.01 * jax.random.normal(keys[5], (expand_enc,), jnp.float32))
    # Dense is initialized for the NHWC-flattened feature ordering (weights are
    # generated in-script, so the feature permutation is absorbed by the init).
    enc_flat = ls_e * ls_e * expand_enc
    p["e_dense"] = _prep_dense_w(
        _kaiming(keys[6], (2 * hidden_dim, enc_flat), 2 * hidden_dim),
        0.01 * jax.random.normal(keys[7], (2 * hidden_dim,), jnp.float32))
    p["mu_scale"] = jnp.array(10.0, jnp.float32)
    p["logv_scale"] = jnp.ones((1, hidden_dim), jnp.float32) * 10.0
    # ---------------- Decoder (version v1) ----------------
    dec_flat = expand_dec * ls_d * ls_d
    p["d_dense"] = _prep_dense_w(
        _kaiming(keys[8], (dec_flat, hidden_dim), dec_flat),
        0.01 * jax.random.normal(keys[9], (dec_flat,), jnp.float32))
    p["d1"] = _prep_convT_phases(
        _kaiming(keys[10], (expand_dec, expand_dec, 4, 4), expand_dec * 16),
        0.01 * jax.random.normal(keys[11], (expand_dec,), jnp.float32))
    p["d2"] = _prep_convT_phases(
        _kaiming(keys[12], (expand_dec, expand_dec, 4, 4), expand_dec * 16),
        0.01 * jax.random.normal(keys[13], (expand_dec,), jnp.float32))
    p["d3"] = _prep_convT_phases(
        _kaiming(keys[14], (expand_dec, output_dims, 4, 4), output_dims * 16),
        0.01 * jax.random.normal(keys[15], (output_dims,), jnp.float32))
    return p


# ---------------------------------------------------------------------------
# ImageVae forward
# ---------------------------------------------------------------------------
def image_vae_forward(params, x, eps_key, *, hidden_dim, expand_enc, expand_dec,
                      output_dims, output_size):
    B = x.shape[0]
    # NCHW (PyTorch convention) -> NHWC + bf16, once, at the model boundary.
    h = x.transpose(0, 2, 3, 1).astype(jnp.bfloat16)

    # ----- Encoder -----
    h = conv2d_nhwc(h, *params["e1"], cout=expand_enc, kh=3, kw=3, stride=2, pad=1, act="relu")
    h = conv2d_nhwc(h, *params["e2"], cout=expand_enc, kh=3, kw=3, stride=2, pad=1, act="relu")
    h = conv2d_nhwc(h, *params["e3"], cout=expand_enc, kh=3, kw=3, stride=2, pad=1, act="relu")
    h = h.reshape(B, -1)                                   # NHWC flatten (weight matches)
    wd, bd = params["e_dense"]
    d = _bmm_bias_act_padded(_pad_cast_act(h, wd.shape[0])[None], wd[None], bd,
                             act="none", out_dtype=jnp.float32)[0, :B, :2 * hidden_dim]

    # ----- Encoder head + reparameterize (tiny (B,H) elementwise math; left to XLA:
    #       a standalone Pallas call here costs more in launch overhead + masked
    #       sub-128-lane stores than the math itself) -----
    mu_scale = jnp.clip(params["mu_scale"], 1.0, 100.0)
    logv_scale = jnp.clip(params["logv_scale"], 1.0, 100.0)     # (1, H)
    x_mu = d[:, :hidden_dim]
    x_lv = d[:, hidden_dim:]
    z_mean = (2.0 * jax.nn.sigmoid(x_mu) - 1.0) * mu_scale      # SigmoidSymmetric * mu_scale
    z_logv = jnp.log(jax.nn.sigmoid(x_lv) * logv_scale + 1e-8)
    eps = jax.random.normal(eps_key, (B, hidden_dim), jnp.float32)
    z = z_mean + jnp.exp(0.5 * z_logv) * eps

    # ----- Decoder (version v1) -----
    wg, bg = params["d_dense"]
    ls = output_size >> 3
    dec_flat = expand_dec * ls * ls
    g = _bmm_bias_act_padded(_pad_cast_act(z, wg.shape[0])[None], wg[None], bg,
                             act="relu", out_dtype=jnp.bfloat16)[0, :B, :dec_flat]
    # dense .view(B, C*ls*ls, 1, 1) + PixelShuffle(ls) == a reshape; kept NHWC.
    g = g.reshape(B, ls, ls, expand_dec)
    g = conv_transpose2d_nhwc(g, *params["d1"], cout=expand_dec, act="relu")
    g = conv_transpose2d_nhwc(g, *params["d2"], cout=expand_dec, act="relu")
    y = conv_transpose2d_nhwc(g, *params["d3"], cout=output_dims, act="sigmoid",
                              out_dtype=jnp.float32)
    # NHWC -> NCHW once at the model boundary.
    return y.transpose(0, 3, 1, 2), z_mean, z_logv


# ---------------------------------------------------------------------------
# Main
# ---------------------------------------------------------------------------
if __name__ == "__main__":
    batch = 2
    input_dims = 3
    output_dims = 3
    input_size = 16          # latent spatial size = 16 >> 3 = 2
    output_size = 16
    hidden_dim = 8
    expand_enc = 8
    expand_dec = 8

    root = jax.random.PRNGKey(0)
    k_param, k_input, k_eps = jax.random.split(root, 3)

    params = make_params(
        k_param,
        hidden_dim=hidden_dim, expand_enc=expand_enc, expand_dec=expand_dec,
        input_size=input_size, output_size=output_size,
        input_dims=input_dims, output_dims=output_dims,
    )
    x = jax.random.normal(k_input, (batch, input_dims, input_size, input_size), jnp.float32)

    fwd = jax.jit(functools.partial(
        image_vae_forward,
        hidden_dim=hidden_dim, expand_enc=expand_enc, expand_dec=expand_dec,
        output_dims=output_dims, output_size=output_size))
    recon, z_mean, z_logv = fwd(params, x, k_eps)
    jax.block_until_ready((recon, z_mean, z_logv))

    assert recon.shape == (batch, output_dims, output_size, output_size)
    assert z_mean.shape == (batch, hidden_dim)
    assert z_logv.shape == (batch, hidden_dim)
    assert bool(jnp.all(jnp.isfinite(recon)))
    assert bool(jnp.all((recon >= 0.0) & (recon <= 1.0)))       # sigmoid output range
    assert bool(jnp.all(jnp.isfinite(z_mean))) and bool(jnp.all(jnp.isfinite(z_logv)))
    print("KERNEL_OK")
</pallas_src>

<mosaic_0001>
module attributes {stable_mosaic.version = 11 : i64} {
  func.func @_bmm_kernel(%arg0: i32, %arg1: i32, %arg2: i32, %arg3: i32, %arg4: memref<1x64x128xbf16, #tpu.memory_space<vmem>>, %arg5: memref<1x128x128xbf16, #tpu.memory_space<vmem>>, %arg6: memref<1x128xf32, #tpu.memory_space<vmem>>, %arg7: memref<1x64x128xbf16, #tpu.memory_space<vmem>>, %arg8: memref<64x128xf32, #tpu.memory_space<vmem>>) attributes {dimension_semantics = [#tpu.dimension_semantics<parallel>, #tpu.dimension_semantics<parallel>, #tpu.dimension_semantics<parallel>, #tpu.dimension_semantics<arbitrary>], iteration_bounds = array<i64: 1, 2, 1, 1>, scalar_prefetch = 0 : i64, scratch_operands = 1 : i64, tpu.core_type = #tpu.core_type<tc>, window_params = [{transform_indices = @transform_0, window_bounds = array<i64: 1, 64, 128>}, {transform_indices = @transform_1, window_bounds = array<i64: 1, 128, 128>}, {transform_indices = @transform_2, window_bounds = array<i64: 1, 128>}, {transform_indices = @transform_3, window_bounds = array<i64: 1, 64, 128>}]} {
    %c0_i32 = arith.constant 0 : i32
    %0 = arith.cmpi eq, %arg3, %c0_i32 : i32
    %1 = arith.extui %0 : i1 to i32
    %c0_i32_0 = arith.constant 0 : i32
    %2 = arith.cmpi ne, %1, %c0_i32_0 : i32
    scf.if %2 {
      %cst_12 = arith.constant 0.000000e+00 : f32
      %14 = vector.broadcast %cst_12 : f32 to vector<64x128xf32>
      %c0_13 = arith.constant 0 : index
      %c0_14 = arith.constant 0 : index
      %15 = vector.load %arg8[%c0_13, %c0_14] : memref<64x128xf32, #tpu.memory_space<vmem>>, vector<64x128xf32>
      tpu.vector_store %arg8[%c0_13, %c0_14], %14 {strides = array<i32>} : memref<64x128xf32, #tpu.memory_space<vmem>>, vector<64x128xf32>,
    } else {
    }
    %c0 = arith.constant 0 : index
    %c0_1 = arith.constant 0 : index
    %3 = vector.load %arg8[%c0, %c0_1] : memref<64x128xf32, #tpu.memory_space<vmem>>, vector<64x128xf32>
    %c0_2 = arith.constant 0 : index
    %c0_3 = arith.constant 0 : index
    %c0_4 = arith.constant 0 : index
    %4 = vector.load %arg4[%c0_2, %c0_3, %c0_4] : memref<1x64x128xbf16, #tpu.memory_space<vmem>>, vector<1x64x128xbf16>
    %5 = vector.shape_cast %4 : vector<1x64x128xbf16> to vector<64x128xbf16>
    %c0_5 = arith.constant 0 : index
    %c0_6 = arith.constant 0 : index
    %c0_7 = arith.constant 0 : index
    %6 = vector.load %arg5[%c0_5, %c0_6, %c0_7] : memref<1x128x128xbf16, #tpu.memory_space<vmem>>, vector<1x128x128xbf16>
    %7 = vector.shape_cast %6 : vector<1x128x128xbf16> to vector<128x128xbf16>
    %cst = arith.constant dense<0.000000e+00> : vector<64x128xf32>
    %8 = tpu.matmul %5, %7, %cst {dimension_numbers = #tpu.dot_dimension_numbers<[1], [0], [0], [1], [0, 0, 1, 1], [], []>} : vector<64x128xbf16>, vector<128x128xbf16>, vector<64x128xf32> -> vector<64x128xf32>
    %9 = arith.addf %3, %8 : vector<64x128xf32>
    %c0_8 = arith.constant 0 : index
    %c0_9 = arith.constant 0 : index
    %10 = vector.load %arg8[%c0_8, %c0_9] : memref<64x128xf32, #tpu.memory_space<vmem>>, vector<64x128xf32>
    tpu.vector_store %arg8[%c0_8, %c0_9], %9 {strides = array<i32>} : memref<64x128xf32, #tpu.memory_space<vmem>>, vector<64x128xf32>,
    %c0_i32_10 = arith.constant 0 : i32
    %11 = arith.cmpi eq, %arg3, %c0_i32_10 : i32
    %12 = arith.extui %11 : i1 to i32
    %c0_i32_11 = arith.constant 0 : i32
    %13 = arith.cmpi ne, %12, %c0_i32_11 : i32
    scf.if %13 {
      %c0_12 = arith.constant 0 : index
      %c0_13 = arith.constant 0 : index
      %14 = vector.load %arg8[%c0_12, %c0_13] : memref<64x128xf32, #tpu.memory_space<vmem>>, vector<64x128xf32>
      %c0_14 = arith.constant 0 : index
      %c0_15 = arith.constant 0 : index
      %15 = vector.load %arg6[%c0_14, %c0_15] : memref<1x128xf32, #tpu.memory_space<vmem>>, vector<1x128xf32>
      %16 = vector.broadcast %15 : vector<1x128xf32> to vector<64x128xf32>
      %17 = arith.addf %14, %16 : vector<64x128xf32>
      %cst_16 = arith.constant 0.000000e+00 : f32
      %18 = vector.broadcast %cst_16 : f32 to vector<64x128xf32>
      %19 = arith.maximumf %17, %18 : vector<64x128xf32>
      %20 = arith.truncf %19 : vector<64x128xf32> to vector<64x128xbf16>
      %c0_17 = arith.constant 0 : index
      %c0_18 = arith.constant 0 : index
      %c0_19 = arith.constant 0 : index
      %21 = vector.load %arg7[%c0_17, %c0_18, %c0_19] : memref<1x64x128xbf16, #tpu.memory_space<vmem>>, vector<1x64x128xbf16>
      %22 = vector.shape_cast %21 : vector<1x64x128xbf16> to vector<64x128xbf16>
      %23 = vector.shape_cast %20 : vector<64x128xbf16> to vector<1x64x128xbf16>
      tpu.vector_store %arg7[%c0_17, %c0_18, %c0_19], %23 {strides = array<i32>} : memref<1x64x128xbf16, #tpu.memory_space<vmem>>, vector<1x64x128xbf16>,
    } else {
    }
    return
  }
  func.func @transform_0(%arg0: i32, %arg1: i32, %arg2: i32, %arg3: i32) -> (i32, i32, i32) {
    %c0_i32 = arith.constant 0 : i32
    return %arg0, %arg1, %arg3 : i32, i32, i32
  }
  func.func @transform_1(%arg0: i32, %arg1: i32, %arg2: i32, %arg3: i32) -> (i32, i32, i32) {
    %c0_i32 = arith.constant 0 : i32
    return %arg0, %arg3, %arg2 : i32, i32, i32
  }
  func.func @transform_2(%arg0: i32, %arg1: i32, %arg2: i32, %arg3: i32) -> (i32, i32) {
    %c0_i32 = arith.constant 0 : i32
    %c0_i32_0 = arith.constant 0 : i32
    return %c0_i32, %arg2 : i32, i32
  }
  func.func @transform_3(%arg0: i32, %arg1: i32, %arg2: i32, %arg3: i32) -> (i32, i32, i32) {
    %c0_i32 = arith.constant 0 : i32
    return %arg0, %arg1, %arg2 : i32, i32, i32
  }
}

module attributes {stable_mosaic.version = 11 : i64} {
  func.func @_bmm_kernel(%arg0: i32, %arg1: i32, %arg2: i32, %arg3: i32, %arg4: memref<1x16x128xbf16, #tpu.memory_space<vmem>>, %arg5: memref<1x128x128xbf16, #tpu.memory_space<vmem>>, %arg6: memref<1x128xf32, #tpu.memory_space<vmem>>, %arg7: memref<1x16x128xbf16, #tpu.memory_space<vmem>>, %arg8: memref<16x128xf32, #tpu.memory_space<vmem>>) attributes {dimension_semantics = [#tpu.dimension_semantics<parallel>, #tpu.dimension_semantics<parallel>, #tpu.dimension_semantics<parallel>, #tpu.dimension_semantics<arbitrary>], iteration_bounds = array<i64: 1, 2, 1, 1>, scalar_prefetch = 0 : i64, scratch_operands = 1 : i64, tpu.core_type = #tpu.core_type<tc>, window_params = [{transform_indices = @transform_0, window_bounds = array<i64: 1, 16, 128>}, {transform_indices = @transform_1, window_bounds = array<i64: 1, 128, 128>}, {transform_indices = @transform_2, window_bounds = array<i64: 1, 128>}, {transform_indices = @transform_3, window_bounds = array<i64: 1, 16, 128>}]} {
    %c0_i32 = arith.constant 0 : i32
    %0 = arith.cmpi eq, %arg3, %c0_i32 : i32
    %1 = arith.extui %0 : i1 to i32
    %c0_i32_0 = arith.constant 0 : i32
    %2 = arith.cmpi ne, %1, %c0_i32_0 : i32
    scf.if %2 {
      %cst_12 = arith.constant 0.000000e+00 : f32
      %14 = vector.broadcast %cst_12 : f32 to vector<16x128xf32>
      %c0_13 = arith.constant 0 : index
      %c0_14 = arith.constant 0 : index
      %15 = vector.load %arg8[%c0_13, %c0_14] : memref<16x128xf32, #tpu.memory_space<vmem>>, vector<16x128xf32>
      tpu.vector_store %arg8[%c0_13, %c0_14], %14 {strides = array<i32>} : memref<16x128xf32, #tpu.memory_space<vmem>>, vector<16x128xf32>,
    } else {
    }
    %c0 = arith.constant 0 : index
    %c0_1 = arith.constant 0 : index
    %3 = vector.load %arg8[%c0, %c0_1] : memref<16x128xf32, #tpu.memory_space<vmem>>, vector<16x128xf32>
    %c0_2 = arith.constant 0 : index
    %c0_3 = arith.constant 0 : index
    %c0_4 = arith.constant 0 : index
    %4 = vector.load %arg4[%c0_2, %c0_3, %c0_4] : memref<1x16x128xbf16, #tpu.memory_space<vmem>>, vector<1x16x128xbf16>
    %5 = vector.shape_cast %4 : vector<1x16x128xbf16> to vector<16x128xbf16>
    %c0_5 = arith.constant 0 : index
    %c0_6 = arith.constant 0 : index
    %c0_7 = arith.constant 0 : index
    %6 = vector.load %arg5[%c0_5, %c0_6, %c0_7] : memref<1x128x128xbf16, #tpu.memory_space<vmem>>, vector<1x128x128xbf16>
    %7 = vector.shape_cast %6 : vector<1x128x128xbf16> to vector<128x128xbf16>
    %cst = arith.constant dense<0.000000e+00> : vector<16x128xf32>
    %8 = tpu.matmul %5, %7, %cst {dimension_numbers = #tpu.dot_dimension_numbers<[1], [0], [0], [1], [0, 0, 1, 1], [], []>} : vector<16x128xbf16>, vector<128x128xbf16>, vector<16x128xf32> -> vector<16x128xf32>
    %9 = arith.addf %3, %8 : vector<16x128xf32>
    %c0_8 = arith.constant 0 : index
    %c0_9 = arith.constant 0 : index
    %10 = vector.load %arg8[%c0_8, %c0_9] : memref<16x128xf32, #tpu.memory_space<vmem>>, vector<16x128xf32>
    tpu.vector_store %arg8[%c0_8, %c0_9], %9 {strides = array<i32>} : memref<16x128xf32, #tpu.memory_space<vmem>>, vector<16x128xf32>,
    %c0_i32_10 = arith.constant 0 : i32
    %11 = arith.cmpi eq, %arg3, %c0_i32_10 : i32
    %12 = arith.extui %11 : i1 to i32
    %c0_i32_11 = arith.constant 0 : i32
    %13 = arith.cmpi ne, %12, %c0_i32_11 : i32
    scf.if %13 {
      %c0_12 = arith.constant 0 : index
      %c0_13 = arith.constant 0 : index
      %14 = vector.load %arg8[%c0_12, %c0_13] : memref<16x128xf32, #tpu.memory_space<vmem>>, vector<16x128xf32>
      %c0_14 = arith.constant 0 : index
      %c0_15 = arith.constant 0 : index
      %15 = vector.load %arg6[%c0_14, %c0_15] : memref<1x128xf32, #tpu.memory_space<vmem>>, vector<1x128xf32>
      %16 = vector.broadcast %15 : vector<1x128xf32> to vector<16x128xf32>
      %17 = arith.addf %14, %16 : vector<16x128xf32>
      %cst_16 = arith.constant 0.000000e+00 : f32
      %18 = vector.broadcast %cst_16 : f32 to vector<16x128xf32>
      %19 = arith.maximumf %17, %18 : vector<16x128xf32>
      %20 = arith.truncf %19 : vector<16x128xf32> to vector<16x128xbf16>
      %c0_17 = arith.constant 0 : index
      %c0_18 = arith.constant 0 : index
      %c0_19 = arith.constant 0 : index
      %21 = vector.load %arg7[%c0_17, %c0_18, %c0_19] : memref<1x16x128xbf16, #tpu.memory_space<vmem>>, vector<1x16x128xbf16>
      %22 = vector.shape_cast %21 : vector<1x16x128xbf16> to vector<16x128xbf16>
      %23 = vector.shape_cast %20 : vector<16x128xbf16> to vector<1x16x128xbf16>
      tpu.vector_store %arg7[%c0_17, %c0_18, %c0_19], %23 {strides = array<i32>} : memref<1x16x128xbf16, #tpu.memory_space<vmem>>, vector<1x16x128xbf16>,
    } else {
    }
    return
  }
  func.func @transform_0(%arg0: i32, %arg1: i32, %arg2: i32, %arg3: i32) -> (i32, i32, i32) {
    %c0_i32 = arith.constant 0 : i32
    return %arg0, %arg1, %arg3 : i32, i32, i32
  }
  func.func @transform_1(%arg0: i32, %arg1: i32, %arg2: i32, %arg3: i32) -> (i32, i32, i32) {
    %c0_i32 = arith.constant 0 : i32
    return %arg0, %arg3, %arg2 : i32, i32, i32
  }
  func.func @transform_2(%arg0: i32, %arg1: i32, %arg2: i32, %arg3: i32) -> (i32, i32) {
    %c0_i32 = arith.constant 0 : i32
    %c0_i32_0 = arith.constant 0 : i32
    return %c0_i32, %arg2 : i32, i32
  }
  func.func @transform_3(%arg0: i32, %arg1: i32, %arg2: i32, %arg3: i32) -> (i32, i32, i32) {
    %c0_i32 = arith.constant 0 : i32
    return %arg0, %arg1, %arg2 : i32, i32, i32
  }
}

module attributes {stable_mosaic.version = 11 : i64} {
  func.func @_bmm_kernel(%arg0: i32, %arg1: i32, %arg2: i32, %arg3: i32, %arg4: memref<1x16x128xbf16, #tpu.memory_space<vmem>>, %arg5: memref<1x128x128xbf16, #tpu.memory_space<vmem>>, %arg6: memref<1x128xf32, #tpu.memory_space<vmem>>, %arg7: memref<1x16x128xf32, #tpu.memory_space<vmem>>, %arg8: memref<16x128xf32, #tpu.memory_space<vmem>>) attributes {dimension_semantics = [#tpu.dimension_semantics<parallel>, #tpu.dimension_semantics<parallel>, #tpu.dimension_semantics<parallel>, #tpu.dimension_semantics<arbitrary>], iteration_bounds = array<i64: 1, 1, 1, 1>, scalar_prefetch = 0 : i64, scratch_operands = 1 : i64, tpu.core_type = #tpu.core_type<tc>, window_params = [{transform_indices = @transform_0, window_bounds = array<i64: 1, 16, 128>}, {transform_indices = @transform_1, window_bounds = array<i64: 1, 128, 128>}, {transform_indices = @transform_2, window_bounds = array<i64: 1, 128>}, {transform_indices = @transform_3, window_bounds = array<i64: 1, 16, 128>}]} {
    %c0_i32 = arith.constant 0 : i32
    %0 = arith.cmpi eq, %arg3, %c0_i32 : i32
    %1 = arith.extui %0 : i1 to i32
    %c0_i32_0 = arith.constant 0 : i32
    %2 = arith.cmpi ne, %1, %c0_i32_0 : i32
    scf.if %2 {
      %cst_12 = arith.constant 0.000000e+00 : f32
      %14 = vector.broadcast %cst_12 : f32 to vector<16x128xf32>
      %c0_13 = arith.constant 0 : index
      %c0_14 = arith.constant 0 : index
      %15 = vector.load %arg8[%c0_13, %c0_14] : memref<16x128xf32, #tpu.memory_space<vmem>>, vector<16x128xf32>
      tpu.vector_store %arg8[%c0_13, %c0_14], %14 {strides = array<i32>} : memref<16x128xf32, #tpu.memory_space<vmem>>, vector<16x128xf32>,
    } else {
    }
    %c0 = arith.constant 0 : index
    %c0_1 = arith.constant 0 : index
    %3 = vector.load %arg8[%c0, %c0_1] : memref<16x128xf32, #tpu.memory_space<vmem>>, vector<16x128xf32>
    %c0_2 = arith.constant 0 : index
    %c0_3 = arith.constant 0 : index
    %c0_4 = arith.constant 0 : index
    %4 = vector.load %arg4[%c0_2, %c0_3, %c0_4] : memref<1x16x128xbf16, #tpu.memory_space<vmem>>, vector<1x16x128xbf16>
    %5 = vector.shape_cast %4 : vector<1x16x128xbf16> to vector<16x128xbf16>
    %c0_5 = arith.constant 0 : index
    %c0_6 = arith.constant 0 : index
    %c0_7 = arith.constant 0 : index
    %6 = vector.load %arg5[%c0_5, %c0_6, %c0_7] : memref<1x128x128xbf16, #tpu.memory_space<vmem>>, vector<1x128x128xbf16>
    %7 = vector.shape_cast %6 : vector<1x128x128xbf16> to vector<128x128xbf16>
    %cst = arith.constant dense<0.000000e+00> : vector<16x128xf32>
    %8 = tpu.matmul %5, %7, %cst {dimension_numbers = #tpu.dot_dimension_numbers<[1], [0], [0], [1], [0, 0, 1, 1], [], []>} : vector<16x128xbf16>, vector<128x128xbf16>, vector<16x128xf32> -> vector<16x128xf32>
    %9 = arith.addf %3, %8 : vector<16x128xf32>
    %c0_8 = arith.constant 0 : index
    %c0_9 = arith.constant 0 : index
    %10 = vector.load %arg8[%c0_8, %c0_9] : memref<16x128xf32, #tpu.memory_space<vmem>>, vector<16x128xf32>
    tpu.vector_store %arg8[%c0_8, %c0_9], %9 {strides = array<i32>} : memref<16x128xf32, #tpu.memory_space<vmem>>, vector<16x128xf32>,
    %c0_i32_10 = arith.constant 0 : i32
    %11 = arith.cmpi eq, %arg3, %c0_i32_10 : i32
    %12 = arith.extui %11 : i1 to i32
    %c0_i32_11 = arith.constant 0 : i32
    %13 = arith.cmpi ne, %12, %c0_i32_11 : i32
    scf.if %13 {
      %c0_12 = arith.constant 0 : index
      %c0_13 = arith.constant 0 : index
      %14 = vector.load %arg8[%c0_12, %c0_13] : memref<16x128xf32, #tpu.memory_space<vmem>>, vector<16x128xf32>
      %c0_14 = arith.constant 0 : index
      %c0_15 = arith.constant 0 : index
      %15 = vector.load %arg6[%c0_14, %c0_15] : memref<1x128xf32, #tpu.memory_space<vmem>>, vector<1x128xf32>
      %16 = vector.broadcast %15 : vector<1x128xf32> to vector<16x128xf32>
      %17 = arith.addf %14, %16 : vector<16x128xf32>
      %c0_16 = arith.constant 0 : index
      %c0_17 = arith.constant 0 : index
      %c0_18 = arith.constant 0 : index
      %18 = vector.load %arg7[%c0_16, %c0_17, %c0_18] : memref<1x16x128xf32, #tpu.memory_space<vmem>>, vector<1x16x128xf32>
      %19 = vector.shape_cast %18 : vector<1x16x128xf32> to vector<16x128xf32>
      %20 = vector.shape_cast %17 : vector<16x128xf32> to vector<1x16x128xf32>
      tpu.vector_store %arg7[%c0_16, %c0_17, %c0_18], %20 {strides = array<i32>} : memref<1x16x128xf32, #tpu.memory_space<vmem>>, vector<1x16x128xf32>,
    } else {
    }
    return
  }
  func.func @transform_0(%arg0: i32, %arg1: i32, %arg2: i32, %arg3: i32) -> (i32, i32, i32) {
    %c0_i32 = arith.constant 0 : i32
    return %arg0, %arg1, %arg3 : i32, i32, i32
  }
  func.func @transform_1(%arg0: i32, %arg1: i32, %arg2: i32, %arg3: i32) -> (i32, i32, i32) {
    %c0_i32 = arith.constant 0 : i32
    return %arg0, %arg3, %arg2 : i32, i32, i32
  }
  func.func @transform_2(%arg0: i32, %arg1: i32, %arg2: i32, %arg3: i32) -> (i32, i32) {
    %c0_i32 = arith.constant 0 : i32
    %c0_i32_0 = arith.constant 0 : i32
    return %c0_i32, %arg2 : i32, i32
  }
  func.func @transform_3(%arg0: i32, %arg1: i32, %arg2: i32, %arg3: i32) -> (i32, i32, i32) {
    %c0_i32 = arith.constant 0 : i32
    return %arg0, %arg1, %arg2 : i32, i32, i32
  }
}

module attributes {stable_mosaic.version = 11 : i64} {
  func.func @_bmm_kernel(%arg0: i32, %arg1: i32, %arg2: i32, %arg3: i32, %arg4: memref<1x16x128xbf16, #tpu.memory_space<vmem>>, %arg5: memref<1x128x128xbf16, #tpu.memory_space<vmem>>, %arg6: memref<1x128xf32, #tpu.memory_space<vmem>>, %arg7: memref<1x16x128xbf16, #tpu.memory_space<vmem>>, %arg8: memref<16x128xf32, #tpu.memory_space<vmem>>) attributes {dimension_semantics = [#tpu.dimension_semantics<parallel>, #tpu.dimension_semantics<parallel>, #tpu.dimension_semantics<parallel>, #tpu.dimension_semantics<arbitrary>], iteration_bounds = array<i64: 1, 1, 1, 1>, scalar_prefetch = 0 : i64, scratch_operands = 1 : i64, tpu.core_type = #tpu.core_type<tc>, window_params = [{transform_indices = @transform_0, window_bounds = array<i64: 1, 16, 128>}, {transform_indices = @transform_1, window_bounds = array<i64: 1, 128, 128>}, {transform_indices = @transform_2, window_bounds = array<i64: 1, 128>}, {transform_indices = @transform_3, window_bounds = array<i64: 1, 16, 128>}]} {
    %c0_i32 = arith.constant 0 : i32
    %0 = arith.cmpi eq, %arg3, %c0_i32 : i32
    %1 = arith.extui %0 : i1 to i32
    %c0_i32_0 = arith.constant 0 : i32
    %2 = arith.cmpi ne, %1, %c0_i32_0 : i32
    scf.if %2 {
      %cst_12 = arith.constant 0.000000e+00 : f32
      %14 = vector.broadcast %cst_12 : f32 to vector<16x128xf32>
      %c0_13 = arith.constant 0 : index
      %c0_14 = arith.constant 0 : index
      %15 = vector.load %arg8[%c0_13, %c0_14] : memref<16x128xf32, #tpu.memory_space<vmem>>, vector<16x128xf32>
      tpu.vector_store %arg8[%c0_13, %c0_14], %14 {strides = array<i32>} : memref<16x128xf32, #tpu.memory_space<vmem>>, vector<16x128xf32>,
    } else {
    }
    %c0 = arith.constant 0 : index
    %c0_1 = arith.constant 0 : index
    %3 = vector.load %arg8[%c0, %c0_1] : memref<16x128xf32, #tpu.memory_space<vmem>>, vector<16x128xf32>
    %c0_2 = arith.constant 0 : index
    %c0_3 = arith.constant 0 : index
    %c0_4 = arith.constant 0 : index
    %4 = vector.load %arg4[%c0_2, %c0_3, %c0_4] : memref<1x16x128xbf16, #tpu.memory_space<vmem>>, vector<1x16x128xbf16>
    %5 = vector.shape_cast %4 : vector<1x16x128xbf16> to vector<16x128xbf16>
    %c0_5 = arith.constant 0 : index
    %c0_6 = arith.constant 0 : index
    %c0_7 = arith.constant 0 : index
    %6 = vector.load %arg5[%c0_5, %c0_6, %c0_7] : memref<1x128x128xbf16, #tpu.memory_space<vmem>>, vector<1x128x128xbf16>
    %7 = vector.shape_cast %6 : vector<1x128x128xbf16> to vector<128x128xbf16>
    %cst = arith.constant dense<0.000000e+00> : vector<16x128xf32>
    %8 = tpu.matmul %5, %7, %cst {dimension_numbers = #tpu.dot_dimension_numbers<[1], [0], [0], [1], [0, 0, 1, 1], [], []>} : vector<16x128xbf16>, vector<128x128xbf16>, vector<16x128xf32> -> vector<16x128xf32>
    %9 = arith.addf %3, %8 : vector<16x128xf32>
    %c0_8 = arith.constant 0 : index
    %c0_9 = arith.constant 0 : index
    %10 = vector.load %arg8[%c0_8, %c0_9] : memref<16x128xf32, #tpu.memory_space<vmem>>, vector<16x128xf32>
    tpu.vector_store %arg8[%c0_8, %c0_9], %9 {strides = array<i32>} : memref<16x128xf32, #tpu.memory_space<vmem>>, vector<16x128xf32>,
    %c0_i32_10 = arith.constant 0 : i32
    %11 = arith.cmpi eq, %arg3, %c0_i32_10 : i32
    %12 = arith.extui %11 : i1 to i32
    %c0_i32_11 = arith.constant 0 : i32
    %13 = arith.cmpi ne, %12, %c0_i32_11 : i32
    scf.if %13 {
      %c0_12 = arith.constant 0 : index
      %c0_13 = arith.constant 0 : index
      %14 = vector.load %arg8[%c0_12, %c0_13] : memref<16x128xf32, #tpu.memory_space<vmem>>, vector<16x128xf32>
      %c0_14 = arith.constant 0 : index
      %c0_15 = arith.constant 0 : index
      %15 = vector.load %arg6[%c0_14, %c0_15] : memref<1x128xf32, #tpu.memory_space<vmem>>, vector<1x128xf32>
      %16 = vector.broadcast %15 : vector<1x128xf32> to vector<16x128xf32>
      %17 = arith.addf %14, %16 : vector<16x128xf32>
      %cst_16 = arith.constant 0.000000e+00 : f32
      %18 = vector.broadcast %cst_16 : f32 to vector<16x128xf32>
      %19 = arith.maximumf %17, %18 : vector<16x128xf32>
      %20 = arith.truncf %19 : vector<16x128xf32> to vector<16x128xbf16>
      %c0_17 = arith.constant 0 : index
      %c0_18 = arith.constant 0 : index
      %c0_19 = arith.constant 0 : index
      %21 = vector.load %arg7[%c0_17, %c0_18, %c0_19] : memref<1x16x128xbf16, #tpu.memory_space<vmem>>, vector<1x16x128xbf16>
      %22 = vector.shape_cast %21 : vector<1x16x128xbf16> to vector<16x128xbf16>
      %23 = vector.shape_cast %20 : vector<16x128xbf16> to vector<1x16x128xbf16>
      tpu.vector_store %arg7[%c0_17, %c0_18, %c0_19], %23 {strides = array<i32>} : memref<1x16x128xbf16, #tpu.memory_space<vmem>>, vector<1x16x128xbf16>,
    } else {
    }
    return
  }
  func.func @transform_0(%arg0: i32, %arg1: i32, %arg2: i32, %arg3: i32) -> (i32, i32, i32) {
    %c0_i32 = arith.constant 0 : i32
    return %arg0, %arg1, %arg3 : i32, i32, i32
  }
  func.func @transform_1(%arg0: i32, %arg1: i32, %arg2: i32, %arg3: i32) -> (i32, i32, i32) {
    %c0_i32 = arith.constant 0 : i32
    return %arg0, %arg3, %arg2 : i32, i32, i32
  }
  func.func @transform_2(%arg0: i32, %arg1: i32, %arg2: i32, %arg3: i32) -> (i32, i32) {
    %c0_i32 = arith.constant 0 : i32
    %c0_i32_0 = arith.constant 0 : i32
    return %c0_i32, %arg2 : i32, i32
  }
  func.func @transform_3(%arg0: i32, %arg1: i32, %arg2: i32, %arg3: i32) -> (i32, i32, i32) {
    %c0_i32 = arith.constant 0 : i32
    return %arg0, %arg1, %arg2 : i32, i32, i32
  }
}

module attributes {stable_mosaic.version = 11 : i64} {
  func.func @_bmm_kernel(%arg0: i32, %arg1: i32, %arg2: i32, %arg3: i32, %arg4: memref<1x16x128xbf16, #tpu.memory_space<vmem>>, %arg5: memref<1x128x128xbf16, #tpu.memory_space<vmem>>, %arg6: memref<1x128xf32, #tpu.memory_space<vmem>>, %arg7: memref<1x16x128xbf16, #tpu.memory_space<vmem>>, %arg8: memref<16x128xf32, #tpu.memory_space<vmem>>) attributes {dimension_semantics = [#tpu.dimension_semantics<parallel>, #tpu.dimension_semantics<parallel>, #tpu.dimension_semantics<parallel>, #tpu.dimension_semantics<arbitrary>], iteration_bounds = array<i64: 4, 1, 1, 1>, scalar_prefetch = 0 : i64, scratch_operands = 1 : i64, tpu.core_type = #tpu.core_type<tc>, window_params = [{transform_indices = @transform_0, window_bounds = array<i64: 1, 16, 128>}, {transform_indices = @transform_1, window_bounds = array<i64: 1, 128, 128>}, {transform_indices = @transform_2, window_bounds = array<i64: 1, 128>}, {transform_indices = @transform_3, window_bounds = array<i64: 1, 16, 128>}]} {
    %c0_i32 = arith.constant 0 : i32
    %0 = arith.cmpi eq, %arg3, %c0_i32 : i32
    %1 = arith.extui %0 : i1 to i32
    %c0_i32_0 = arith.constant 0 : i32
    %2 = arith.cmpi ne, %1, %c0_i32_0 : i32
    scf.if %2 {
      %cst_12 = arith.constant 0.000000e+00 : f32
      %14 = vector.broadcast %cst_12 : f32 to vector<16x128xf32>
      %c0_13 = arith.constant 0 : index
      %c0_14 = arith.constant 0 : index
      %15 = vector.load %arg8[%c0_13, %c0_14] : memref<16x128xf32, #tpu.memory_space<vmem>>, vector<16x128xf32>
      tpu.vector_store %arg8[%c0_13, %c0_14], %14 {strides = array<i32>} : memref<16x128xf32, #tpu.memory_space<vmem>>, vector<16x128xf32>,
    } else {
    }
    %c0 = arith.constant 0 : index
    %c0_1 = arith.constant 0 : index
    %3 = vector.load %arg8[%c0, %c0_1] : memref<16x128xf32, #tpu.memory_space<vmem>>, vector<16x128xf32>
    %c0_2 = arith.constant 0 : index
    %c0_3 = arith.constant 0 : index
    %c0_4 = arith.constant 0 : index
    %4 = vector.load %arg4[%c0_2, %c0_3, %c0_4] : memref<1x16x128xbf16, #tpu.memory_space<vmem>>, vector<1x16x128xbf16>
    %5 = vector.shape_cast %4 : vector<1x16x128xbf16> to vector<16x128xbf16>
    %c0_5 = arith.constant 0 : index
    %c0_6 = arith.constant 0 : index
    %c0_7 = arith.constant 0 : index
    %6 = vector.load %arg5[%c0_5, %c0_6, %c0_7] : memref<1x128x128xbf16, #tpu.memory_space<vmem>>, vector<1x128x128xbf16>
    %7 = vector.shape_cast %6 : vector<1x128x128xbf16> to vector<128x128xbf16>
    %cst = arith.constant dense<0.000000e+00> : vector<16x128xf32>
    %8 = tpu.matmul %5, %7, %cst {dimension_numbers = #tpu.dot_dimension_numbers<[1], [0], [0], [1], [0, 0, 1, 1], [], []>} : vector<16x128xbf16>, vector<128x128xbf16>, vector<16x128xf32> -> vector<16x128xf32>
    %9 = arith.addf %3, %8 : vector<16x128xf32>
    %c0_8 = arith.constant 0 : index
    %c0_9 = arith.constant 0 : index
    %10 = vector.load %arg8[%c0_8, %c0_9] : memref<16x128xf32, #tpu.memory_space<vmem>>, vector<16x128xf32>
    tpu.vector_store %arg8[%c0_8, %c0_9], %9 {strides = array<i32>} : memref<16x128xf32, #tpu.memory_space<vmem>>, vector<16x128xf32>,
    %c0_i32_10 = arith.constant 0 : i32
    %11 = arith.cmpi eq, %arg3, %c0_i32_10 : i32
    %12 = arith.extui %11 : i1 to i32
    %c0_i32_11 = arith.constant 0 : i32
    %13 = arith.cmpi ne, %12, %c0_i32_11 : i32
    scf.if %13 {
      %c0_12 = arith.constant 0 : index
      %c0_13 = arith.constant 0 : index
      %14 = vector.load %arg8[%c0_12, %c0_13] : memref<16x128xf32, #tpu.memory_space<vmem>>, vector<16x128xf32>
      %c0_14 = arith.constant 0 : index
      %c0_15 = arith.constant 0 : index
      %15 = vector.load %arg6[%c0_14, %c0_15] : memref<1x128xf32, #tpu.memory_space<vmem>>, vector<1x128xf32>
      %16 = vector.broadcast %15 : vector<1x128xf32> to vector<16x128xf32>
      %17 = arith.addf %14, %16 : vector<16x128xf32>
      %cst_16 = arith.constant 0.000000e+00 : f32
      %18 = vector.broadcast %cst_16 : f32 to vector<16x128xf32>
      %19 = arith.maximumf %17, %18 : vector<16x128xf32>
      %20 = arith.truncf %19 : vector<16x128xf32> to vector<16x128xbf16>
      %c0_17 = arith.constant 0 : index
      %c0_18 = arith.constant 0 : index
      %c0_19 = arith.constant 0 : index
      %21 = vector.load %arg7[%c0_17, %c0_18, %c0_19] : memref<1x16x128xbf16, #tpu.memory_space<vmem>>, vector<1x16x128xbf16>
      %22 = vector.shape_cast %21 : vector<1x16x128xbf16> to vector<16x128xbf16>
      %23 = vector.shape_cast %20 : vector<16x128xbf16> to vector<1x16x128xbf16>
      tpu.vector_store %arg7[%c0_17, %c0_18, %c0_19], %23 {strides = array<i32>} : memref<1x16x128xbf16, #tpu.memory_space<vmem>>, vector<1x16x128xbf16>,
    } else {
    }
    return
  }
  func.func @transform_0(%arg0: i32, %arg1: i32, %arg2: i32, %arg3: i32) -> (i32, i32, i32) {
    %c0_i32 = arith.constant 0 : i32
    return %arg0, %arg1, %arg3 : i32, i32, i32
  }
  func.func @transform_1(%arg0: i32, %arg1: i32, %arg2: i32, %arg3: i32) -> (i32, i32, i32) {
    %c0_i32 = arith.constant 0 : i32
    return %arg0, %arg3, %arg2 : i32, i32, i32
  }
  func.func @transform_2(%arg0: i32, %arg1: i32, %arg2: i32, %arg3: i32) -> (i32, i32) {
    %c0_i32 = arith.constant 0 : i32
    %c0_i32_0 = arith.constant 0 : i32
    return %c0_i32, %arg2 : i32, i32
  }
  func.func @transform_3(%arg0: i32, %arg1: i32, %arg2: i32, %arg3: i32) -> (i32, i32, i32) {
    %c0_i32 = arith.constant 0 : i32
    return %arg0, %arg1, %arg2 : i32, i32, i32
  }
}

module attributes {stable_mosaic.version = 11 : i64} {
  func.func @_bmm_kernel(%arg0: i32, %arg1: i32, %arg2: i32, %arg3: i32, %arg4: memref<1x32x128xbf16, #tpu.memory_space<vmem>>, %arg5: memref<1x128x128xbf16, #tpu.memory_space<vmem>>, %arg6: memref<1x128xf32, #tpu.memory_space<vmem>>, %arg7: memref<1x32x128xbf16, #tpu.memory_space<vmem>>, %arg8: memref<32x128xf32, #tpu.memory_space<vmem>>) attributes {dimension_semantics = [#tpu.dimension_semantics<parallel>, #tpu.dimension_semantics<parallel>, #tpu.dimension_semantics<parallel>, #tpu.dimension_semantics<arbitrary>], iteration_bounds = array<i64: 4, 1, 1, 1>, scalar_prefetch = 0 : i64, scratch_operands = 1 : i64, tpu.core_type = #tpu.core_type<tc>, window_params = [{transform_indices = @transform_0, window_bounds = array<i64: 1, 32, 128>}, {transform_indices = @transform_1, window_bounds = array<i64: 1, 128, 128>}, {transform_indices = @transform_2, window_bounds = array<i64: 1, 128>}, {transform_indices = @transform_3, window_bounds = array<i64: 1, 32, 128>}]} {
    %c0_i32 = arith.constant 0 : i32
    %0 = arith.cmpi eq, %arg3, %c0_i32 : i32
    %1 = arith.extui %0 : i1 to i32
    %c0_i32_0 = arith.constant 0 : i32
    %2 = arith.cmpi ne, %1, %c0_i32_0 : i32
    scf.if %2 {
      %cst_12 = arith.constant 0.000000e+00 : f32
      %14 = vector.broadcast %cst_12 : f32 to vector<32x128xf32>
      %c0_13 = arith.constant 0 : index
      %c0_14 = arith.constant 0 : index
      %15 = vector.load %arg8[%c0_13, %c0_14] : memref<32x128xf32, #tpu.memory_space<vmem>>, vector<32x128xf32>
      tpu.vector_store %arg8[%c0_13, %c0_14], %14 {strides = array<i32>} : memref<32x128xf32, #tpu.memory_space<vmem>>, vector<32x128xf32>,
    } else {
    }
    %c0 = arith.constant 0 : index
    %c0_1 = arith.constant 0 : index
    %3 = vector.load %arg8[%c0, %c0_1] : memref<32x128xf32, #tpu.memory_space<vmem>>, vector<32x128xf32>
    %c0_2 = arith.constant 0 : index
    %c0_3 = arith.constant 0 : index
    %c0_4 = arith.constant 0 : index
    %4 = vector.load %arg4[%c0_2, %c0_3, %c0_4] : memref<1x32x128xbf16, #tpu.memory_space<vmem>>, vector<1x32x128xbf16>
    %5 = vector.shape_cast %4 : vector<1x32x128xbf16> to vector<32x128xbf16>
    %c0_5 = arith.constant 0 : index
    %c0_6 = arith.constant 0 : index
    %c0_7 = arith.constant 0 : index
    %6 = vector.load %arg5[%c0_5, %c0_6, %c0_7] : memref<1x128x128xbf16, #tpu.memory_space<vmem>>, vector<1x128x128xbf16>
    %7 = vector.shape_cast %6 : vector<1x128x128xbf16> to vector<128x128xbf16>
    %cst = arith.constant dense<0.000000e+00> : vector<32x128xf32>
    %8 = tpu.matmul %5, %7, %cst {dimension_numbers = #tpu.dot_dimension_numbers<[1], [0], [0], [1], [0, 0, 1, 1], [], []>} : vector<32x128xbf16>, vector<128x128xbf16>, vector<32x128xf32> -> vector<32x128xf32>
    %9 = arith.addf %3, %8 : vector<32x128xf32>
    %c0_8 = arith.constant 0 : index
    %c0_9 = arith.constant 0 : index
    %10 = vector.load %arg8[%c0_8, %c0_9] : memref<32x128xf32, #tpu.memory_space<vmem>>, vector<32x128xf32>
    tpu.vector_store %arg8[%c0_8, %c0_9], %9 {strides = array<i32>} : memref<32x128xf32, #tpu.memory_space<vmem>>, vector<32x128xf32>,
    %c0_i32_10 = arith.constant 0 : i32
    %11 = arith.cmpi eq, %arg3, %c0_i32_10 : i32
    %12 = arith.extui %11 : i1 to i32
    %c0_i32_11 = arith.constant 0 : i32
    %13 = arith.cmpi ne, %12, %c0_i32_11 : i32
    scf.if %13 {
      %c0_12 = arith.constant 0 : index
      %c0_13 = arith.constant 0 : index
      %14 = vector.load %arg8[%c0_12, %c0_13] : memref<32x128xf32, #tpu.memory_space<vmem>>, vector<32x128xf32>
      %c0_14 = arith.constant 0 : index
      %c0_15 = arith.constant 0 : index
      %15 = vector.load %arg6[%c0_14, %c0_15] : memref<1x128xf32, #tpu.memory_space<vmem>>, vector<1x128xf32>
      %16 = vector.broadcast %15 : vector<1x128xf32> to vector<32x128xf32>
      %17 = arith.addf %14, %16 : vector<32x128xf32>
      %cst_16 = arith.constant 0.000000e+00 : f32
      %18 = vector.broadcast %cst_16 : f32 to vector<32x128xf32>
      %19 = arith.maximumf %17, %18 : vector<32x128xf32>
      %20 = arith.truncf %19 : vector<32x128xf32> to vector<32x128xbf16>
      %c0_17 = arith.constant 0 : index
      %c0_18 = arith.constant 0 : index
      %c0_19 = arith.constant 0 : index
      %21 = vector.load %arg7[%c0_17, %c0_18, %c0_19] : memref<1x32x128xbf16, #tpu.memory_space<vmem>>, vector<1x32x128xbf16>
      %22 = vector.shape_cast %21 : vector<1x32x128xbf16> to vector<32x128xbf16>
      %23 = vector.shape_cast %20 : vector<32x128xbf16> to vector<1x32x128xbf16>
      tpu.vector_store %arg7[%c0_17, %c0_18, %c0_19], %23 {strides = array<i32>} : memref<1x32x128xbf16, #tpu.memory_space<vmem>>, vector<1x32x128xbf16>,
    } else {
    }
    return
  }
  func.func @transform_0(%arg0: i32, %arg1: i32, %arg2: i32, %arg3: i32) -> (i32, i32, i32) {
    %c0_i32 = arith.constant 0 : i32
    return %arg0, %arg1, %arg3 : i32, i32, i32
  }
  func.func @transform_1(%arg0: i32, %arg1: i32, %arg2: i32, %arg3: i32) -> (i32, i32, i32) {
    %c0_i32 = arith.constant 0 : i32
    return %arg0, %arg3, %arg2 : i32, i32, i32
  }
  func.func @transform_2(%arg0: i32, %arg1: i32, %arg2: i32, %arg3: i32) -> (i32, i32) {
    %c0_i32 = arith.constant 0 : i32
    %c0_i32_0 = arith.constant 0 : i32
    return %c0_i32, %arg2 : i32, i32
  }
  func.func @transform_3(%arg0: i32, %arg1: i32, %arg2: i32, %arg3: i32) -> (i32, i32, i32) {
    %c0_i32 = arith.constant 0 : i32
    return %arg0, %arg1, %arg2 : i32, i32, i32
  }
}

module attributes {stable_mosaic.version = 11 : i64} {
  func.func @_bmm_kernel(%arg0: i32, %arg1: i32, %arg2: i32, %arg3: i32, %arg4: memref<1x128x128xbf16, #tpu.memory_space<vmem>>, %arg5: memref<1x128x128xbf16, #tpu.memory_space<vmem>>, %arg6: memref<1x128xf32, #tpu.memory_space<vmem>>, %arg7: memref<1x128x128xf32, #tpu.memory_space<vmem>>, %arg8: memref<128x128xf32, #tpu.memory_space<vmem>>) attributes {dimension_semantics = [#tpu.dimension_semantics<parallel>, #tpu.dimension_semantics<parallel>, #tpu.dimension_semantics<parallel>, #tpu.dimension_semantics<arbitrary>], iteration_bounds = array<i64: 4, 1, 1, 1>, scalar_prefetch = 0 : i64, scratch_operands = 1 : i64, tpu.core_type = #tpu.core_type<tc>, window_params = [{transform_indices = @transform_0, window_bounds = array<i64: 1, 128, 128>}, {transform_indices = @transform_1, window_bounds = array<i64: 1, 128, 128>}, {transform_indices = @transform_2, window_bounds = array<i64: 1, 128>}, {transform_indices = @transform_3, window_bounds = array<i64: 1, 128, 128>}]} {
    %c0_i32 = arith.constant 0 : i32
    %0 = arith.cmpi eq, %arg3, %c0_i32 : i32
    %1 = arith.extui %0 : i1 to i32
    %c0_i32_0 = arith.constant 0 : i32
    %2 = arith.cmpi ne, %1, %c0_i32_0 : i32
    scf.if %2 {
      %cst_12 = arith.constant 0.000000e+00 : f32
      %14 = vector.broadcast %cst_12 : f32 to vector<128x128xf32>
      %c0_13 = arith.constant 0 : index
      %c0_14 = arith.constant 0 : index
      %15 = vector.load %arg8[%c0_13, %c0_14] : memref<128x128xf32, #tpu.memory_space<vmem>>, vector<128x128xf32>
      tpu.vector_store %arg8[%c0_13, %c0_14], %14 {strides = array<i32>} : memref<128x128xf32, #tpu.memory_space<vmem>>, vector<128x128xf32>,
    } else {
    }
    %c0 = arith.constant 0 : index
    %c0_1 = arith.constant 0 : index
    %3 = vector.load %arg8[%c0, %c0_1] : memref<128x128xf32, #tpu.memory_space<vmem>>, vector<128x128xf32>
    %c0_2 = arith.constant 0 : index
    %c0_3 = arith.constant 0 : index
    %c0_4 = arith.constant 0 : index
    %4 = vector.load %arg4[%c0_2, %c0_3, %c0_4] : memref<1x128x128xbf16, #tpu.memory_space<vmem>>, vector<1x128x128xbf16>
    %5 = vector.shape_cast %4 : vector<1x128x128xbf16> to vector<128x128xbf16>
    %c0_5 = arith.constant 0 : index
    %c0_6 = arith.constant 0 : index
    %c0_7 = arith.constant 0 : index
    %6 = vector.load %arg5[%c0_5, %c0_6, %c0_7] : memref<1x128x128xbf16, #tpu.memory_space<vmem>>, vector<1x128x128xbf16>
    %7 = vector.shape_cast %6 : vector<1x128x128xbf16> to vector<128x128xbf16>
    %cst = arith.constant dense<0.000000e+00> : vector<128x128xf32>
    %8 = tpu.matmul %5, %7, %cst {dimension_numbers = #tpu.dot_dimension_numbers<[1], [0], [0], [1], [0, 0, 1, 1], [], []>} : vector<128x128xbf16>, vector<128x128xbf16>, vector<128x128xf32> -> vector<128x128xf32>
    %9 = arith.addf %3, %8 : vector<128x128xf32>
    %c0_8 = arith.constant 0 : index
    %c0_9 = arith.constant 0 : index
    %10 = vector.load %arg8[%c0_8, %c0_9] : memref<128x128xf32, #tpu.memory_space<vmem>>, vector<128x128xf32>
    tpu.vector_store %arg8[%c0_8, %c0_9], %9 {strides = array<i32>} : memref<128x128xf32, #tpu.memory_space<vmem>>, vector<128x128xf32>,
    %c0_i32_10 = arith.constant 0 : i32
    %11 = arith.cmpi eq, %arg3, %c0_i32_10 : i32
    %12 = arith.extui %11 : i1 to i32
    %c0_i32_11 = arith.constant 0 : i32
    %13 = arith.cmpi ne, %12, %c0_i32_11 : i32
    scf.if %13 {
      %c0_12 = arith.constant 0 : index
      %c0_13 = arith.constant 0 : index
      %14 = vector.load %arg8[%c0_12, %c0_13] : memref<128x128xf32, #tpu.memory_space<vmem>>, vector<128x128xf32>
      %c0_14 = arith.constant 0 : index
      %c0_15 = arith.constant 0 : index
      %15 = vector.load %arg6[%c0_14, %c0_15] : memref<1x128xf32, #tpu.memory_space<vmem>>, vector<1x128xf32>
      %16 = vector.broadcast %15 : vector<1x128xf32> to vector<128x128xf32>
      %17 = arith.addf %14, %16 : vector<128x128xf32>
      %18 = arith.negf %17 : vector<128x128xf32>
      %19 = math.exp %18 : vector<128x128xf32>
      %cst_16 = arith.constant 1.000000e+00 : f32
      %20 = vector.broadcast %cst_16 : f32 to vector<128x128xf32>
      %21 = arith.addf %20, %19 : vector<128x128xf32>
      %22 = arith.divf %20, %21 : vector<128x128xf32>
      %c0_17 = arith.constant 0 : index
      %c0_18 = arith.constant 0 : index
      %c0_19 = arith.constant 0 : index
      %23 = vector.load %arg7[%c0_17, %c0_18, %c0_19] : memref<1x128x128xf32, #tpu.memory_space<vmem>>, vector<1x128x128xf32>
      %24 = vector.shape_cast %23 : vector<1x128x128xf32> to vector<128x128xf32>
      %25 = vector.shape_cast %22 : vector<128x128xf32> to vector<1x128x128xf32>
      tpu.vector_store %arg7[%c0_17, %c0_18, %c0_19], %25 {strides = array<i32>} : memref<1x128x128xf32, #tpu.memory_space<vmem>>, vector<1x128x128xf32>,
    } else {
    }
    return
  }
  func.func @transform_0(%arg0: i32, %arg1: i32, %arg2: i32, %arg3: i32) -> (i32, i32, i32) {
    %c0_i32 = arith.constant 0 : i32
    return %arg0, %arg1, %arg3 : i32, i32, i32
  }
  func.func @transform_1(%arg0: i32, %arg1: i32, %arg2: i32, %arg3: i32) -> (i32, i32, i32) {
    %c0_i32 = arith.constant 0 : i32
    return %arg0, %arg3, %arg2 : i32, i32, i32
  }
  func.func @transform_2(%arg0: i32, %arg1: i32, %arg2: i32, %arg3: i32) -> (i32, i32) {
    %c0_i32 = arith.constant 0 : i32
    %c0_i32_0 = arith.constant 0 : i32
    return %c0_i32, %arg2 : i32, i32
  }
  func.func @transform_3(%arg0: i32, %arg1: i32, %arg2: i32, %arg3: i32) -> (i32, i32, i32) {
    %c0_i32 = arith.constant 0 : i32
    return %arg0, %arg1, %arg2 : i32, i32, i32
  }
}

</mosaic_0001>

<llo_original>
// kernel: image_vae_forward.8
$region0: #{image_vae_forward.8}
  #allocation0 [shape = 'u32[]', space=smem, size = 0x4, offset = 0x4, fixed_abs, tag = 'smem constant byte address 0x4 - core index']
  #allocation1 [shape = 'u32[72,128]{1,0:T(1,128)}', space=vmem, size = 0x9000, scoped, tag = 'internal scratch']
  #allocation2 [shape = 'f32[64,128]{1,0:T(8,128)}', space=vmem, size = 0x8000, scoped, tag = 'scratch operand']
  %s0 = inlined_call_operand.vmem [shape: bf16[1,128,128], index: 0, kind: input, shape index: {}]
  %s1 = inlined_call_operand.vmem [shape: bf16[1,128,128], index: 1, kind: input, shape index: {}]
  %s2 = inlined_call_operand.vmem [shape: f32[1,128], index: 2, kind: input, shape index: {}]
  %s3 = inlined_call_operand.vmem [shape: bf16[1,128,128], index: 3, kind: output, shape index: {}]
  %s4 = sld [smem:[#allocation0]]
  $region53: #{image_vae_forward.8} parent=0
    _
  %s6 = ssub.s32 1, %s4
  %s7 = scalar_select 0, %s6, %s4
  loop: start=0, step=1, limit=4
  $region2: #{image_vae_forward.8} parent=0 // loop_pre_header
    _
  $region3: #{image_vae_forward.8} parent=0 // loop_header
    %s9 = sphi 0, %s13
    %p10 = scmp.ge.s32.totalorder %s9, 4
    %s16 = sphi 0, %s42
    %s17 = sphi 0, %s38
    %s18 = sphi 0, %s34
    %s19 = sphi 0, %s30
    %s20 = sphi 0, %s16
    %s21 = sphi 0, %s17
    %s22 = sphi 0, %s18
    %s23 = sphi 0, %s19
    %s24 = sphi 0, %s20
    %s25 = sphi 0, %s21
    %s26 = sphi 0, %s22
    %s27 = sphi 0, %s23
    %s49 = sphi 0, %s51
    %s52 = sphi 0, %s49
    %s53 = sphi 0, %s52
    %s69 = sphi 0, %s53
    %s79 = sphi 0, %s81
    %s82 = sphi 0, %s79
    %s83 = sphi 0, %s82
    %s99 = sphi 0, %s83
    %s105 = sphi 0, %s107
    %s108 = sphi 0, %s105
    %s109 = sphi 0, %s108
    %s125 = sphi 0, %s109
    %s135 = sphi 0, %s137
    %s138 = sphi 0, %s135
    %s139 = sphi 0, %s138
    %s155 = sphi 0, %s139
  $region4: #{image_vae_forward.8} parent=0 // loop_header_branch
    %12 = sbr.rel (%p10) target = $region8
  $region5: #{image_vae_forward.8} parent=0 // loop_body
    %s14 = ssub.s32 %s9, 1
    %s15 = ssub.s32 %s9, 2
    %s28 = sadd.s32 1, %s19
    %p29 = scmp.ge.s32.totalorder %s28, 1
    %s30 = scalar_select %p29, 0, %s28
    %s31 = sadd.s32 1, %s18
    %s32 = scalar_select %p29, %s31, %s18
    %p33 = scmp.ge.s32.totalorder %s32, 1
    %s34 = scalar_select %p33, 0, %s32
    %s35 = sadd.s32 1, %s17
    %s36 = scalar_select %p33, %s35, %s17
    %p37 = scmp.ge.s32.totalorder %s36, 2
    %s38 = scalar_select %p37, 0, %s36
    %s39 = sadd.s32 1, %s16
    %s40 = scalar_select %p37, %s39, %s16
    %p41 = scmp.ge.s32.totalorder %s40, 1
    %s42 = scalar_select %p41, 0, %s40
    %s43 = ssub.s32 %s16, %s42
    %s44 = ssub.s32 %s17, %s38
    %s45 = sor.u32 %s43, %s44
    %s46 = ssub.s32 %s19, %s30
    %s47 = sor.u32 %s45, %s46
    %p48 = scmp.eq.s32.totalorder %s47, 0
    %s50 = sadd.s32 %s49, 1
    %s51 = scalar_select %p48, %s49, %s50
    %p54 = pneg %p48
    %p55 = scmp.eq.s32.totalorder %s9, 1
    %p56 = por %p54, %p55
    %p57 = scmp.ne.s32.totalorder %s49, %s52
    %p58 = scmp.eq.s32.totalorder %s9, 0
    %p59 = por %p57, %p58
    %p60 = scmp.ne.s32.totalorder %s49, %s52
    %p61 = scmp.eq.s32.totalorder %s14, 1
    %p62 = por %p60, %p61
    %p63 = scmp.ne.s32.totalorder %s52, %s53
    %p64 = scmp.eq.s32.totalorder %s14, 0
    %p65 = por %p63, %p64
    %p66 = scmp.ne.s32.totalorder %s52, %s53
    %p67 = scmp.eq.s32.totalorder %s15, 1
    %p68 = por %p66, %p67
    %p70 = scmp.ne.s32.totalorder %s53, %s69
    %p71 = scmp.eq.s32.totalorder %s15, 0
    %p72 = por %p70, %p71
    %s73 = ssub.s32 %s16, %s42
    %s74 = ssub.s32 %s19, %s30
    %s75 = sor.u32 %s73, %s74
    %s76 = ssub.s32 %s18, %s34
    %s77 = sor.u32 %s75, %s76
    %p78 = scmp.eq.s32.totalorder %s77, 0
    %s80 = sadd.s32 %s79, 1
    %s81 = scalar_select %p78, %s79, %s80
    %p84 = pneg %p78
    %p85 = scmp.eq.s32.totalorder %s9, 1
    %p86 = por %p84, %p85
    %p87 = scmp.ne.s32.totalorder %s79, %s82
    %p88 = scmp.eq.s32.totalorder %s9, 0
    %p89 = por %p87, %p88
    %p90 = scmp.ne.s32.totalorder %s79, %s82
    %p91 = scmp.eq.s32.totalorder %s14, 1
    %p92 = por %p90, %p91
    %p93 = scmp.ne.s32.totalorder %s82, %s83
    %p94 = scmp.eq.s32.totalorder %s14, 0
    %p95 = por %p93, %p94
    %p96 = scmp.ne.s32.totalorder %s82, %s83
    %p97 = scmp.eq.s32.totalorder %s15, 1
    %p98 = por %p96, %p97
    %p100 = scmp.ne.s32.totalorder %s83, %s99
    %p101 = scmp.eq.s32.totalorder %s15, 0
    %p102 = por %p100, %p101
    %s103 = ssub.s32 %s18, %s34
    %p104 = scmp.eq.s32.totalorder %s103, 0
    %s106 = sadd.s32 %s105, 1
    %s107 = scalar_select %p104, %s105, %s106
    %p110 = pneg %p104
    %p111 = scmp.eq.s32.totalorder %s9, 1
    %p112 = por %p110, %p111
    %p113 = scmp.ne.s32.totalorder %s105, %s108
    %p114 = scmp.eq.s32.totalorder %s9, 0
    %p115 = por %p113, %p114
    %p116 = scmp.ne.s32.totalorder %s105, %s108
    %p117 = scmp.eq.s32.totalorder %s14, 1
    %p118 = por %p116, %p117
    %p119 = scmp.ne.s32.totalorder %s108, %s109
    %p120 = scmp.eq.s32.totalorder %s14, 0
    %p121 = por %p119, %p120
    %p122 = scmp.ne.s32.totalorder %s108, %s109
    %p123 = scmp.eq.s32.totalorder %s15, 1
    %p124 = por %p122, %p123
    %p126 = scmp.ne.s32.totalorder %s109, %s125
    %p127 = scmp.eq.s32.totalorder %s15, 0
    %p128 = por %p126, %p127
    %s129 = ssub.s32 %s16, %s42
    %s130 = ssub.s32 %s17, %s38
    %s131 = sor.u32 %s129, %s130
    %s132 = ssub.s32 %s18, %s34
    %s133 = sor.u32 %s131, %s132
    %p134 = scmp.eq.s32.totalorder %s133, 0
    %s136 = sadd.s32 %s135, 1
    %s137 = scalar_select %p134, %s135, %s136
    %p140 = pneg %p134
    %p141 = scmp.eq.s32.totalorder %s9, 1
    %p142 = por %p140, %p141
    %p143 = scmp.ne.s32.totalorder %s135, %s138
    %p144 = scmp.eq.s32.totalorder %s9, 0
    %p145 = por %p143, %p144
    %p146 = scmp.ne.s32.totalorder %s135, %s138
    %p147 = scmp.eq.s32.totalorder %s14, 1
    %p148 = por %p146, %p147
    %p149 = scmp.ne.s32.totalorder %s138, %s139
    %p150 = scmp.eq.s32.totalorder %s14, 0
    %p151 = por %p149, %p150
    %p152 = scmp.ne.s32.totalorder %s138, %s139
    %p153 = scmp.eq.s32.totalorder %s15, 1
    %p154 = por %p152, %p153
    %p156 = scmp.ne.s32.totalorder %s139, %s155
    %p157 = scmp.eq.s32.totalorder %s15, 0
    %p158 = por %p156, %p157
    %p159 = scmp.le.s32.totalorder 1, %s9
    %p160 = scmp.lt.s32.totalorder %s9, 3
    %p161 = pnand %p159, %p160
    %p162 = pneg %p161
    // Predicated region
    $region9: #{image_vae_forward.8} parent=5 // pred_check
      _
    $region10: #{image_vae_forward.8} parent=5 // pred_check_branch
      %164 = sbr.rel (%p161) target = $region12
    $region11: #{image_vae_forward.8} parent=5 // pred_region
      %s165 = ssub.s32 %s9, 1
      // Predicated region
      $region13: #{image_vae_forward.8} parent=11 // pred_check
        %p166 = pneg %p95
      $region14: #{image_vae_forward.8} parent=11 // pred_check_branch
        %168 = sbr.rel (%p166) target = $region16
      $region15: #{image_vae_forward.8} parent=11 // pred_region
        %s169 = smul.u32 16, %s23
        %p170 = scmp.lt.s32.totalorder %s20, 0
        %s171 = scalar_select %p170, %s20, 0
        %p172 = scmp.lt.s32.totalorder %s169, 15
        %s173 = scalar_select %p172, %s169, 15
        %p174 = scmp.lt.s32.totalorder %s22, 0
        %s175 = scalar_select %p174, %s22, 0
        %s176 = sadd.s32 %s175, %s173
        %s177 = smul.addr %s171, 16
        %s178 = sadd.s32 %s176, %s177
        %s179 = smul.addr %s178, 4
        %s180 = scalar_lea.vmem %s1, %s179
        %s181 = smul.u32 16, %s23
      $region16: #{image_vae_forward.8} parent=11 // pred_fallthru
        _
      // Predicated region
      $region17: #{image_vae_forward.8} parent=11 // pred_check
        %p182 = pneg %p121
      $region18: #{image_vae_forward.8} parent=11 // pred_check_branch
        %184 = sbr.rel (%p182) target = $region20
      $region19: #{image_vae_forward.8} parent=11 // pred_region
        %p185 = scmp.lt.s32.totalorder %s22, 0
        %s186 = scalar_select %p185, %s22, 0
        %s187 = scalar_lea.vmem %s2, %s186
      $region20: #{image_vae_forward.8} parent=11 // pred_fallthru
        _
    $region12: #{image_vae_forward.8} parent=5 // pred_fallthru
      _
    %p188 = scmp.lt.s32.totalorder %s9, 2
    // Predicated region
    $region21: #{image_vae_forward.8} parent=5 // pred_check
      %p189 = pneg %p188
    $region22: #{image_vae_forward.8} parent=5 // pred_check_branch
      %191 = sbr.rel (%p189) target = $region24
    $region23: #{image_vae_forward.8} parent=5 // pred_region
      // Predicated region
      $region25: #{image_vae_forward.8} parent=23 // pred_check
        %p192 = pneg %p59
      $region26: #{image_vae_forward.8} parent=23 // pred_check_branch
        %194 = sbr.rel (%p192) target = $region28
      $region27: #{image_vae_forward.8} parent=23 // pred_region
        %s195 = smul.u32 8, %s17
        %p196 = scmp.lt.s32.totalorder %s16, 0
        %s197 = scalar_select %p196, %s16, 0
        %p198 = scmp.lt.s32.totalorder %s195, 15
        %s199 = scalar_select %p198, %s195, 15
        %p200 = scmp.lt.s32.totalorder %s19, 0
        %s201 = scalar_select %p200, %s19, 0
        %s202 = sadd.s32 %s201, %s199
        %s203 = smul.addr %s197, 16
        %s204 = sadd.s32 %s202, %s203
        %s205 = smul.addr %s204, 4
        %s206 = scalar_lea.vmem %s0, %s205
        %s207 = smul.u32 8, %s17
      $region28: #{image_vae_forward.8} parent=23 // pred_fallthru
        _
    $region24: #{image_vae_forward.8} parent=5 // pred_fallthru
      _
    %p208 = scmp.le.s32.totalorder 1, %s9
    %p209 = scmp.lt.s32.totalorder %s9, 3
    %p210 = pnand %p208, %p209
    %p211 = pneg %p210
    // Predicated region
    $region29: #{image_vae_forward.8} parent=5 // pred_check
      _
    $region30: #{image_vae_forward.8} parent=5 // pred_check_branch
      %213 = sbr.rel (%p210) target = $region32
    $region31: #{image_vae_forward.8} parent=5 // pred_region
      %s214 = ssub.s32 %s9, 1
      %s215 = smul.u32 8, %s21
      %p216 = scmp.lt.s32.totalorder %s20, 0
      %s217 = scalar_select %p216, %s20, 0
      %p218 = scmp.lt.s32.totalorder %s215, 15
      %s219 = scalar_select %p218, %s215, 15
      %p220 = scmp.lt.s32.totalorder %s23, 0
      %s221 = scalar_select %p220, %s23, 0
      %s222 = sadd.s32 %s221, %s219
      %s223 = smul.addr %s217, 16
      %s224 = sadd.s32 %s222, %s223
      %s225 = smul.addr %s224, 4
      %s226 = scalar_lea.vmem %s0, %s225
      %p227 = pneg %p65
      %p228 = pneg %p62
      %s229 = smul.u32 16, %s23
      %p230 = scmp.lt.s32.totalorder %s20, 0
      %s231 = scalar_select %p230, %s20, 0
      %p232 = scmp.lt.s32.totalorder %s229, 15
      %s233 = scalar_select %p232, %s229, 15
      %p234 = scmp.lt.s32.totalorder %s22, 0
      %s235 = scalar_select %p234, %s22, 0
      %s236 = sadd.s32 %s235, %s233
      %s237 = smul.addr %s231, 16
      %s238 = sadd.s32 %s236, %s237
      %s239 = smul.addr %s238, 4
      %s240 = scalar_lea.vmem %s1, %s239
      %p241 = pneg %p95
      %p242 = pneg %p92
      %p243 = scmp.lt.s32.totalorder %s22, 0
      %s244 = scalar_select %p243, %s22, 0
      %s245 = scalar_lea.vmem %s2, %s244
      %p246 = pneg %p121
      %p247 = pneg %p118
      %p248 = pneg %p151
      %p249 = pneg %p148
      %s250 = smul.u32 8, %s21
      %p251 = scmp.lt.s32.totalorder %s20, 0
      %s252 = scalar_select %p251, %s20, 0
      %p253 = scmp.lt.s32.totalorder %s250, 15
      %s254 = scalar_select %p253, %s250, 15
      %p255 = scmp.lt.s32.totalorder %s22, 0
      %s256 = scalar_select %p255, %s22, 0
      %s257 = sadd.s32 %s256, %s254
      %s258 = smul.addr %s252, 16
      %s259 = sadd.s32 %s257, %s258
      %s260 = smul.addr %s259, 4
      %s261 = scalar_lea.vmem %s3, %s260
      %s262 = smul.u32 8, %s21
      %p263 = scmp.lt.s32.totalorder %s20, 0
      %s264 = scalar_select %p263, %s20, 0
      %p265 = scmp.lt.s32.totalorder %s262, 15
      %s266 = scalar_select %p265, %s262, 15
      %p267 = scmp.lt.s32.totalorder %s23, 0
      %s268 = scalar_select %p267, %s23, 0
      %s269 = sadd.s32 %s268, %s266
      %s270 = smul.addr %s264, 16
      %s271 = sadd.s32 %s269, %s270
      %s272 = smul.addr %s271, 4
      %s273 = scalar_lea.vmem %s0, %s272
      %s274 = smul.u32 8, %s21
      %s275 = smul.u32 16, %s23
      %p276 = scmp.lt.s32.totalorder %s20, 0
      %s277 = scalar_select %p276, %s20, 0
      %p278 = scmp.lt.s32.totalorder %s275, 15
      %s279 = scalar_select %p278, %s275, 15
      %p280 = scmp.lt.s32.totalorder %s22, 0
      %s281 = scalar_select %p280, %s22, 0
      %s282 = sadd.s32 %s281, %s279
      %s283 = smul.addr %s277, 16
      %s284 = sadd.s32 %s282, %s283
      %s285 = smul.addr %s284, 4
      %s286 = scalar_lea.vmem %s1, %s285
      %s287 = smul.u32 16, %s23
      %p288 = scmp.lt.s32.totalorder %s22, 0
      %s289 = scalar_select %p288, %s22, 0
      %s290 = scalar_lea.vmem %s2, %s289
      %s291 = smul.u32 8, %s21
      %p292 = scmp.lt.s32.totalorder %s20, 0
      %s293 = scalar_select %p292, %s20, 0
      %p294 = scmp.lt.s32.totalorder %s291, 15
      %s295 = scalar_select %p294, %s291, 15
      %p296 = scmp.lt.s32.totalorder %s22, 0
      %s297 = scalar_select %p296, %s22, 0
      %s298 = sadd.s32 %s297, %s295
      %s299 = smul.addr %s293, 16
      %s300 = sadd.s32 %s298, %s299
      %s301 = smul.addr %s300, 4
      %s302 = scalar_lea.vmem %s3, %s301
      %s303 = smul.u32 8, %s21
      %p304 = scmp.eq.s32.totalorder %s23, 0
      // Predicated region
      $region33: #{image_vae_forward.8} parent=31 // pred_check
        %p305 = pneg %p304
      $region34: #{image_vae_forward.8} parent=31 // pred_check_branch
        %307 = sbr.rel (%p305) target = $region36
      $region35: #{image_vae_forward.8} parent=31 // pred_region
        %308 = vst [vmem:[#allocation2] sm:$0xff] 0.0
        %309 = vst [vmem:[#allocation2 + $0x8] sm:$0xff] 0.0
        %310 = vst [vmem:[#allocation2 + $0x10] sm:$0xff] 0.0
        %311 = vst [vmem:[#allocation2 + $0x18] sm:$0xff] 0.0
        %312 = vst [vmem:[#allocation2 + $0x20] sm:$0xff] 0.0
        %313 = vst [vmem:[#allocation2 + $0x28] sm:$0xff] 0.0
        %314 = vst [vmem:[#allocation2 + $0x30] sm:$0xff] 0.0
        %315 = vst [vmem:[#allocation2 + $0x38] sm:$0xff] 0.0
      $region36: #{image_vae_forward.8} parent=31 // pred_fallthru
        _
      %v316 = vld [vmem:[#allocation2] sm:$0xff]
      %v317 = vld [vmem:[#allocation2 + $0x8] sm:$0xff]
      %v318 = vld [vmem:[#allocation2 + $0x10] sm:$0xff]
      %v319 = vld [vmem:[#allocation2 + $0x18] sm:$0xff]
      %v320 = vld [vmem:[#allocation2 + $0x20] sm:$0xff]
      %v321 = vld [vmem:[#allocation2 + $0x28] sm:$0xff]
      %v322 = vld [vmem:[#allocation2 + $0x30] sm:$0xff]
      %v323 = vld [vmem:[#allocation2 + $0x38] sm:$0xff]
      %v324 = vld [vmem:[%s273] sm:$0xf]
      %v325 = vld [vmem:[%s273 + $0x4] sm:$0xf]
      %v326 = vld [vmem:[%s273 + $0x8] sm:$0xf]
      %v327 = vld [vmem:[%s273 + $0xc] sm:$0xf]
      %v328 = vld [vmem:[%s273 + $0x10] sm:$0xf]
      %v329 = vld [vmem:[%s273 + $0x14] sm:$0xf]
      %v330 = vld [vmem:[%s273 + $0x18] sm:$0xf]
      %v331 = vld [vmem:[%s273 + $0x1c] sm:$0xf]
      %v332 = vld [vmem:[%s286] sm:$0xf]
      %v333 = vld [vmem:[%s286 + $0x4] sm:$0xf]
      %v334 = vld [vmem:[%s286 + $0x8] sm:$0xf]
      %v335 = vld [vmem:[%s286 + $0xc] sm:$0xf]
      %v336 = vld [vmem:[%s286 + $0x10] sm:$0xf]
      %v337 = vld [vmem:[%s286 + $0x14] sm:$0xf]
      %v338 = vld [vmem:[%s286 + $0x18] sm:$0xf]
      %v339 = vld [vmem:[%s286 + $0x1c] sm:$0xf]
      %v340 = vld [vmem:[%s286 + $0x20] sm:$0xf]
      %v341 = vld [vmem:[%s286 + $0x24] sm:$0xf]
      %v342 = vld [vmem:[%s286 + $0x28] sm:$0xf]
      %v343 = vld [vmem:[%s286 + $0x2c] sm:$0xf]
      %v344 = vld [vmem:[%s286 + $0x30] sm:$0xf]
      %v345 = vld [vmem:[%s286 + $0x34] sm:$0xf]
      %v346 = vld [vmem:[%s286 + $0x38] sm:$0xf]
      %v347 = vld [vmem:[%s286 + $0x3c] sm:$0xf]
      %v356 = vunpack.c.l.b16 %v324
      %v357 = vunpack.c.l.b16 %v325
      %v358 = vunpack.c.l.b16 %v326
      %v359 = vunpack.c.l.b16 %v327
      %v360 = vunpack.c.l.b16 %v328
      %v361 = vunpack.c.l.b16 %v329
      %v362 = vunpack.c.l.b16 %v330
      %v363 = vunpack.c.l.b16 %v331
      %v364 = vpack.c.b16 %v357, %v356
      %v365 = vpack.c.b16 %v359, %v358
      %v366 = vpack.c.b16 %v361, %v360
      %v367 = vpack.c.b16 %v363, %v362
      %v388 = vunpack.c.l.b16 %v332
      %v389 = vunpack.c.l.b16 %v333
      %v390 = vunpack.c.l.b16 %v334
      %v391 = vunpack.c.l.b16 %v335
      %v392 = vunpack.c.l.b16 %v336
      %v393 = vunpack.c.l.b16 %v337
      %v394 = vunpack.c.l.b16 %v338
      %v395 = vunpack.c.l.b16 %v339
      %v396 = vunpack.c.l.b16 %v340
      %v397 = vunpack.c.l.b16 %v341
      %v398 = vunpack.c.l.b16 %v342
      %v399 = vunpack.c.l.b16 %v343
      %v400 = vunpack.c.l.b16 %v344
      %v401 = vunpack.c.l.b16 %v345
      %v402 = vunpack.c.l.b16 %v346
      %v403 = vunpack.c.l.b16 %v347
      %v404 = vpack.c.b16 %v389, %v388
      %v405 = vpack.c.b16 %v391, %v390
      %v406 = vpack.c.b16 %v393, %v392
      %v407 = vpack.c.b16 %v395, %v394
      %v408 = vpack.c.b16 %v397, %v396
      %v409 = vpack.c.b16 %v399, %v398
      %v410 = vpack.c.b16 %v401, %v400
      %v411 = vpack.c.b16 %v403, %v402
      %420 = vmatpush.bf16.msra.mxu0 %v411
      %421 = vmatpush.bf16.msra.mxu0 %v410
      %422 = vmatpush.bf16.msra.mxu0 %v409
      %423 = vmatpush.bf16.msra.mxu0 %v408
      %424 = vmatpush.bf16.msra.mxu0 %v407
      %425 = vmatpush.bf16.msra.mxu0 %v406
      %426 = vmatpush.bf16.msra.mxu0 %v405
      %427 = vmatpush.bf16.msra.mxu0 %v404
      %428 = vmatmul.bf16.gmra.mxu0 %v364
      %v429 = vpop.f32.mrf.mxu0
      %v430 = vadd.f32 0.0, %v429
      %v431 = vpop.f32.mrf.mxu0
      %v432 = vadd.f32 0.0, %v431
      %433 = vmatmul.bf16.gmra.mxu0 %v365
      %v434 = vpop.f32.mrf.mxu0
      %v435 = vadd.f32 0.0, %v434
      %v436 = vpop.f32.mrf.mxu0
      %v437 = vadd.f32 0.0, %v436
      %438 = vmatmul.bf16.gmra.mxu0 %v366
      %v439 = vpop.f32.mrf.mxu0
      %v440 = vadd.f32 0.0, %v439
      %v441 = vpop.f32.mrf.mxu0
      %v442 = vadd.f32 0.0, %v441
      %443 = vmatmul.bf16.gmra.mxu0 %v367
      %v444 = vpop.f32.mrf.mxu0
      %v445 = vadd.f32 0.0, %v444
      %v446 = vpop.f32.mrf.mxu0
      %v447 = vadd.f32 0.0, %v446
      %448 = vdwg.mxu0
      %v449 = vadd.f32 %v316, %v430
      %v450 = vadd.f32 %v317, %v432
      %v451 = vadd.f32 %v318, %v435
      %v452 = vadd.f32 %v319, %v437
      %v453 = vadd.f32 %v320, %v440
      %v454 = vadd.f32 %v321, %v442
      %v455 = vadd.f32 %v322, %v445
      %v456 = vadd.f32 %v323, %v447
      %457 = vst [vmem:[#allocation2] sm:$0xff] %v449
      %458 = vst [vmem:[#allocation2 + $0x8] sm:$0xff] %v450
      %459 = vst [vmem:[#allocation2 + $0x10] sm:$0xff] %v451
      %460 = vst [vmem:[#allocation2 + $0x18] sm:$0xff] %v452
      %461 = vst [vmem:[#allocation2 + $0x20] sm:$0xff] %v453
      %462 = vst [vmem:[#allocation2 + $0x28] sm:$0xff] %v454
      %463 = vst [vmem:[#allocation2 + $0x30] sm:$0xff] %v455
      %464 = vst [vmem:[#allocation2 + $0x38] sm:$0xff] %v456
      // Predicated region
      $region37: #{image_vae_forward.8} parent=31 // pred_check
        %p465 = pneg %p304
      $region38: #{image_vae_forward.8} parent=31 // pred_check_branch
        %467 = sbr.rel (%p465) target = $region40
      $region39: #{image_vae_forward.8} parent=31 // pred_region
        %v468 = vld [vmem:[#allocation2] sm:$0xff]
        %v469 = vld [vmem:[#allocation2 + $0x8] sm:$0xff]
        %v470 = vld [vmem:[#allocation2 + $0x10] sm:$0xff]
        %v471 = vld [vmem:[#allocation2 + $0x18] sm:$0xff]
        %v472 = vld [vmem:[#allocation2 + $0x20] sm:$0xff]
        %v473 = vld [vmem:[#allocation2 + $0x28] sm:$0xff]
        %v474 = vld [vmem:[#allocation2 + $0x30] sm:$0xff]
        %v475 = vld [vmem:[#allocation2 + $0x38] sm:$0xff]
        %v476 = vld [vmem:[%s290] sm:$0x1]
        %v478 = vperm.slane %v476, 0
        %v480 = vadd.f32 %v468, %v478
        %v481 = vadd.f32 %v469, %v478
        %v482 = vadd.f32 %v470, %v478
        %v483 = vadd.f32 %v471, %v478
        %v484 = vadd.f32 %v472, %v478
        %v485 = vadd.f32 %v473, %v478
        %v486 = vadd.f32 %v474, %v478
        %v487 = vadd.f32 %v475, %v478
        %v488 = vmax.f32 %v480, 0.0
        %v489 = vmax.f32 %v481, 0.0
        %v490 = vmax.f32 %v482, 0.0
        %v491 = vmax.f32 %v483, 0.0
        %v492 = vmax.f32 %v484, 0.0
        %v493 = vmax.f32 %v485, 0.0
        %v494 = vmax.f32 %v486, 0.0
        %v495 = vmax.f32 %v487, 0.0
        %v496 = vpack.c.bf16 %v488, %v488
        %v497 = vpack.c.bf16 %v489, %v489
        %v498 = vpack.c.bf16 %v490, %v490
        %v499 = vpack.c.bf16 %v491, %v491
        %v500 = vpack.c.bf16 %v492, %v492
        %v501 = vpack.c.bf16 %v493, %v493
        %v502 = vpack.c.bf16 %v494, %v494
        %v503 = vpack.c.bf16 %v495, %v495
        %504 = vst [vmem:[%s302] sm:$0xf] %v496
        %505 = vst [vmem:[%s302 + $0x4] sm:$0xf] %v497
        %506 = vst [vmem:[%s302 + $0x8] sm:$0xf] %v498
        %507 = vst [vmem:[%s302 + $0xc] sm:$0xf] %v499
        %508 = vst [vmem:[%s302 + $0x10] sm:$0xf] %v500
        %509 = vst [vmem:[%s302 + $0x14] sm:$0xf] %v501
        %510 = vst [vmem:[%s302 + $0x18] sm:$0xf] %v502
        %511 = vst [vmem:[%s302 + $0x1c] sm:$0xf] %v503
      $region40: #{image_vae_forward.8} parent=31 // pred_fallthru
        _
      %s512 = smul.u32 8, %s21
      %p513 = scmp.lt.s32.totalorder %s20, 0
      %s514 = scalar_select %p513, %s20, 0
      %p515 = scmp.lt.s32.totalorder %s512, 15
      %s516 = scalar_select %p515, %s512, 15
      %p517 = scmp.lt.s32.totalorder %s22, 0
      %s518 = scalar_select %p517, %s22, 0
      %s519 = sadd.s32 %s518, %s516
      %s520 = smul.addr %s514, 16
      %s521 = sadd.s32 %s519, %s520
      %s522 = smul.addr %s521, 4
      %s523 = scalar_lea.vmem %s3, %s522
      // Predicated region
      $region41: #{image_vae_forward.8} parent=31 // pred_check
        %p524 = pneg %p148
      $region42: #{image_vae_forward.8} parent=31 // pred_check_branch
        %526 = sbr.rel (%p524) target = $region44
      $region43: #{image_vae_forward.8} parent=31 // pred_region
        %s527 = smul.u32 8, %s21
      $region44: #{image_vae_forward.8} parent=31 // pred_fallthru
        _
    $region32: #{image_vae_forward.8} parent=5 // pred_fallthru
      _
    %p528 = scmp.le.s32.totalorder 2, %s9
    // Predicated region
    $region45: #{image_vae_forward.8} parent=5 // pred_check
      %p529 = pneg %p528
    $region46: #{image_vae_forward.8} parent=5 // pred_check_branch
      %531 = sbr.rel (%p529) target = $region48
    $region47: #{image_vae_forward.8} parent=5 // pred_region
      %s532 = ssub.s32 %s9, 2
      // Predicated region
      $region49: #{image_vae_forward.8} parent=47 // pred_check
        %p533 = pneg %p154
      $region50: #{image_vae_forward.8} parent=47 // pred_check_branch
        %535 = sbr.rel (%p533) target = $region52
      $region51: #{image_vae_forward.8} parent=47 // pred_region
        %s536 = smul.u32 8, %s25
        %p537 = scmp.lt.s32.totalorder %s24, 0
        %s538 = scalar_select %p537, %s24, 0
        %p539 = scmp.lt.s32.totalorder %s536, 15
        %s540 = scalar_select %p539, %s536, 15
        %p541 = scmp.lt.s32.totalorder %s26, 0
        %s542 = scalar_select %p541, %s26, 0
        %s543 = sadd.s32 %s542, %s540
        %s544 = smul.addr %s538, 16
        %s545 = sadd.s32 %s543, %s544
        %s546 = smul.addr %s545, 4
        %s547 = scalar_lea.vmem %s3, %s546
      $region52: #{image_vae_forward.8} parent=47 // pred_fallthru
        _
    $region48: #{image_vae_forward.8} parent=5 // pred_fallthru
      _
  $region6: #{image_vae_forward.8} parent=0 // loop_footer
    %s13 = sadd.s32 1, %s9
  $region7: #{image_vae_forward.8} parent=0 // loop_footer_branch
    %8 = sbr.rel target = $region3
  $region8: #{image_vae_forward.8} parent=0 // loop_exit
    _

// kernel: image_vae_forward.9
$region0: #{image_vae_forward.9}
  #allocation0 [shape = 'u32[]', space=smem, size = 0x4, offset = 0x4, fixed_abs, tag = 'smem constant byte address 0x4 - core index']
  #allocation1 [shape = 'u32[72,128]{1,0:T(1,128)}', space=vmem, size = 0x9000, scoped, tag = 'internal scratch']
  #allocation2 [shape = 'f32[16,128]{1,0:T(8,128)}', space=vmem, size = 0x2000, scoped, tag = 'scratch operand']
  %s0 = inlined_call_operand.vmem [shape: bf16[1,32,128], index: 0, kind: input, shape index: {}]
  %s1 = inlined_call_operand.vmem [shape: bf16[1,128,128], index: 1, kind: input, shape index: {}]
  %s2 = inlined_call_operand.vmem [shape: f32[1,128], index: 2, kind: input, shape index: {}]
  %s3 = inlined_call_operand.vmem [shape: bf16[1,32,128], index: 3, kind: output, shape index: {}]
  %s4 = sld [smem:[#allocation0]]
  $region53: #{image_vae_forward.9} parent=0
    _
  %s6 = ssub.s32 1, %s4
  %s7 = scalar_select 0, %s6, %s4
  loop: start=0, step=1, limit=4
  $region2: #{image_vae_forward.9} parent=0 // loop_pre_header
    _
  $region3: #{image_vae_forward.9} parent=0 // loop_header
    %s9 = sphi 0, %s13
    %p10 = scmp.ge.s32.totalorder %s9, 4
    %s16 = sphi 0, %s42
    %s17 = sphi 0, %s38
    %s18 = sphi 0, %s34
    %s19 = sphi 0, %s30
    %s20 = sphi 0, %s16
    %s21 = sphi 0, %s17
    %s22 = sphi 0, %s18
    %s23 = sphi 0, %s19
    %s24 = sphi 0, %s20
    %s25 = sphi 0, %s21
    %s26 = sphi 0, %s22
    %s27 = sphi 0, %s23
    %s49 = sphi 0, %s51
    %s52 = sphi 0, %s49
    %s53 = sphi 0, %s52
    %s69 = sphi 0, %s53
    %s79 = sphi 0, %s81
    %s82 = sphi 0, %s79
    %s83 = sphi 0, %s82
    %s99 = sphi 0, %s83
    %s105 = sphi 0, %s107
    %s108 = sphi 0, %s105
    %s109 = sphi 0, %s108
    %s125 = sphi 0, %s109
    %s135 = sphi 0, %s137
    %s138 = sphi 0, %s135
    %s139 = sphi 0, %s138
    %s155 = sphi 0, %s139
  $region4: #{image_vae_forward.9} parent=0 // loop_header_branch
    %12 = sbr.rel (%p10) target = $region8
  $region5: #{image_vae_forward.9} parent=0 // loop_body
    %s14 = ssub.s32 %s9, 1
    %s15 = ssub.s32 %s9, 2
    %s28 = sadd.s32 1, %s19
    %p29 = scmp.ge.s32.totalorder %s28, 1
    %s30 = scalar_select %p29, 0, %s28
    %s31 = sadd.s32 1, %s18
    %s32 = scalar_select %p29, %s31, %s18
    %p33 = scmp.ge.s32.totalorder %s32, 1
    %s34 = scalar_select %p33, 0, %s32
    %s35 = sadd.s32 1, %s17
    %s36 = scalar_select %p33, %s35, %s17
    %p37 = scmp.ge.s32.totalorder %s36, 2
    %s38 = scalar_select %p37, 0, %s36
    %s39 = sadd.s32 1, %s16
    %s40 = scalar_select %p37, %s39, %s16
    %p41 = scmp.ge.s32.totalorder %s40, 1
    %s42 = scalar_select %p41, 0, %s40
    %s43 = ssub.s32 %s16, %s42
    %s44 = ssub.s32 %s17, %s38
    %s45 = sor.u32 %s43, %s44
    %s46 = ssub.s32 %s19, %s30
    %s47 = sor.u32 %s45, %s46
    %p48 = scmp.eq.s32.totalorder %s47, 0
    %s50 = sadd.s32 %s49, 1
    %s51 = scalar_select %p48, %s49, %s50
    %p54 = pneg %p48
    %p55 = scmp.eq.s32.totalorder %s9, 1
    %p56 = por %p54, %p55
    %p57 = scmp.ne.s32.totalorder %s49, %s52
    %p58 = scmp.eq.s32.totalorder %s9, 0
    %p59 = por %p57, %p58
    %p60 = scmp.ne.s32.totalorder %s49, %s52
    %p61 = scmp.eq.s32.totalorder %s14, 1
    %p62 = por %p60, %p61
    %p63 = scmp.ne.s32.totalorder %s52, %s53
    %p64 = scmp.eq.s32.totalorder %s14, 0
    %p65 = por %p63, %p64
    %p66 = scmp.ne.s32.totalorder %s52, %s53
    %p67 = scmp.eq.s32.totalorder %s15, 1
    %p68 = por %p66, %p67
    %p70 = scmp.ne.s32.totalorder %s53, %s69
    %p71 = scmp.eq.s32.totalorder %s15, 0
    %p72 = por %p70, %p71
    %s73 = ssub.s32 %s16, %s42
    %s74 = ssub.s32 %s19, %s30
    %s75 = sor.u32 %s73, %s74
    %s76 = ssub.s32 %s18, %s34
    %s77 = sor.u32 %s75, %s76
    %p78 = scmp.eq.s32.totalorder %s77, 0
    %s80 = sadd.s32 %s79, 1
    %s81 = scalar_select %p78, %s79, %s80
    %p84 = pneg %p78
    %p85 = scmp.eq.s32.totalorder %s9, 1
    %p86 = por %p84, %p85
    %p87 = scmp.ne.s32.totalorder %s79, %s82
    %p88 = scmp.eq.s32.totalorder %s9, 0
    %p89 = por %p87, %p88
    %p90 = scmp.ne.s32.totalorder %s79, %s82
    %p91 = scmp.eq.s32.totalorder %s14, 1
    %p92 = por %p90, %p91
    %p93 = scmp.ne.s32.totalorder %s82, %s83
    %p94 = scmp.eq.s32.totalorder %s14, 0
    %p95 = por %p93, %p94
    %p96 = scmp.ne.s32.totalorder %s82, %s83
    %p97 = scmp.eq.s32.totalorder %s15, 1
    %p98 = por %p96, %p97
    %p100 = scmp.ne.s32.totalorder %s83, %s99
    %p101 = scmp.eq.s32.totalorder %s15, 0
    %p102 = por %p100, %p101
    %s103 = ssub.s32 %s18, %s34
    %p104 = scmp.eq.s32.totalorder %s103, 0
    %s106 = sadd.s32 %s105, 1
    %s107 = scalar_select %p104, %s105, %s106
    %p110 = pneg %p104
    %p111 = scmp.eq.s32.totalorder %s9, 1
    %p112 = por %p110, %p111
    %p113 = scmp.ne.s32.totalorder %s105, %s108
    %p114 = scmp.eq.s32.totalorder %s9, 0
    %p115 = por %p113, %p114
    %p116 = scmp.ne.s32.totalorder %s105, %s108
    %p117 = scmp.eq.s32.totalorder %s14, 1
    %p118 = por %p116, %p117
    %p119 = scmp.ne.s32.totalorder %s108, %s109
    %p120 = scmp.eq.s32.totalorder %s14, 0
    %p121 = por %p119, %p120
    %p122 = scmp.ne.s32.totalorder %s108, %s109
    %p123 = scmp.eq.s32.totalorder %s15, 1
    %p124 = por %p122, %p123
    %p126 = scmp.ne.s32.totalorder %s109, %s125
    %p127 = scmp.eq.s32.totalorder %s15, 0
    %p128 = por %p126, %p127
    %s129 = ssub.s32 %s16, %s42
    %s130 = ssub.s32 %s17, %s38
    %s131 = sor.u32 %s129, %s130
    %s132 = ssub.s32 %s18, %s34
    %s133 = sor.u32 %s131, %s132
    %p134 = scmp.eq.s32.totalorder %s133, 0
    %s136 = sadd.s32 %s135, 1
    %s137 = scalar_select %p134, %s135, %s136
    %p140 = pneg %p134
    %p141 = scmp.eq.s32.totalorder %s9, 1
    %p142 = por %p140, %p141
    %p143 = scmp.ne.s32.totalorder %s135, %s138
    %p144 = scmp.eq.s32.totalorder %s9, 0
    %p145 = por %p143, %p144
    %p146 = scmp.ne.s32.totalorder %s135, %s138
    %p147 = scmp.eq.s32.totalorder %s14, 1
    %p148 = por %p146, %p147
    %p149 = scmp.ne.s32.totalorder %s138, %s139
    %p150 = scmp.eq.s32.totalorder %s14, 0
    %p151 = por %p149, %p150
    %p152 = scmp.ne.s32.totalorder %s138, %s139
    %p153 = scmp.eq.s32.totalorder %s15, 1
    %p154 = por %p152, %p153
    %p156 = scmp.ne.s32.totalorder %s139, %s155
    %p157 = scmp.eq.s32.totalorder %s15, 0
    %p158 = por %p156, %p157
    %p159 = scmp.le.s32.totalorder 1, %s9
    %p160 = scmp.lt.s32.totalorder %s9, 3
    %p161 = pnand %p159, %p160
    %p162 = pneg %p161
    // Predicated region
    $region9: #{image_vae_forward.9} parent=5 // pred_check
      _
    $region10: #{image_vae_forward.9} parent=5 // pred_check_branch
      %164 = sbr.rel (%p161) target = $region12
    $region11: #{image_vae_forward.9} parent=5 // pred_region
      %s165 = ssub.s32 %s9, 1
      // Predicated region
      $region13: #{image_vae_forward.9} parent=11 // pred_check
        %p166 = pneg %p95
      $region14: #{image_vae_forward.9} parent=11 // pred_check_branch
        %168 = sbr.rel (%p166) target = $region16
      $region15: #{image_vae_forward.9} parent=11 // pred_region
        %s169 = smul.u32 16, %s23
        %p170 = scmp.lt.s32.totalorder %s20, 0
        %s171 = scalar_select %p170, %s20, 0
        %p172 = scmp.lt.s32.totalorder %s169, 15
        %s173 = scalar_select %p172, %s169, 15
        %p174 = scmp.lt.s32.totalorder %s22, 0
        %s175 = scalar_select %p174, %s22, 0
        %s176 = sadd.s32 %s175, %s173
        %s177 = smul.addr %s171, 16
        %s178 = sadd.s32 %s176, %s177
        %s179 = smul.addr %s178, 4
        %s180 = scalar_lea.vmem %s1, %s179
        %s181 = smul.u32 16, %s23
      $region16: #{image_vae_forward.9} parent=11 // pred_fallthru
        _
      // Predicated region
      $region17: #{image_vae_forward.9} parent=11 // pred_check
        %p182 = pneg %p121
      $region18: #{image_vae_forward.9} parent=11 // pred_check_branch
        %184 = sbr.rel (%p182) target = $region20
      $region19: #{image_vae_forward.9} parent=11 // pred_region
        %p185 = scmp.lt.s32.totalorder %s22, 0
        %s186 = scalar_select %p185, %s22, 0
        %s187 = scalar_lea.vmem %s2, %s186
      $region20: #{image_vae_forward.9} parent=11 // pred_fallthru
        _
    $region12: #{image_vae_forward.9} parent=5 // pred_fallthru
      _
    %p188 = scmp.lt.s32.totalorder %s9, 2
    // Predicated region
    $region21: #{image_vae_forward.9} parent=5 // pred_check
      %p189 = pneg %p188
    $region22: #{image_vae_forward.9} parent=5 // pred_check_branch
      %191 = sbr.rel (%p189) target = $region24
    $region23: #{image_vae_forward.9} parent=5 // pred_region
      // Predicated region
      $region25: #{image_vae_forward.9} parent=23 // pred_check
        %p192 = pneg %p59
      $region26: #{image_vae_forward.9} parent=23 // pred_check_branch
        %194 = sbr.rel (%p192) target = $region28
      $region27: #{image_vae_forward.9} parent=23 // pred_region
        %s195 = smul.u32 2, %s17
        %p196 = scmp.lt.s32.totalorder %s16, 0
        %s197 = scalar_select %p196, %s16, 0
        %p198 = scmp.lt.s32.totalorder %s195, 3
        %s199 = scalar_select %p198, %s195, 3
        %p200 = scmp.lt.s32.totalorder %s19, 0
        %s201 = scalar_select %p200, %s19, 0
        %s202 = sadd.s32 %s201, %s199
        %s203 = smul.addr %s197, 4
        %s204 = sadd.s32 %s202, %s203
        %s205 = smul.addr %s204, 4
        %s206 = scalar_lea.vmem %s0, %s205
        %s207 = smul.u32 2, %s17
      $region28: #{image_vae_forward.9} parent=23 // pred_fallthru
        _
    $region24: #{image_vae_forward.9} parent=5 // pred_fallthru
      _
    %p208 = scmp.le.s32.totalorder 1, %s9
    %p209 = scmp.lt.s32.totalorder %s9, 3
    %p210 = pnand %p208, %p209
    %p211 = pneg %p210
    // Predicated region
    $region29: #{image_vae_forward.9} parent=5 // pred_check
      _
    $region30: #{image_vae_forward.9} parent=5 // pred_check_branch
      %213 = sbr.rel (%p210) target = $region32
    $region31: #{image_vae_forward.9} parent=5 // pred_region
      %s214 = ssub.s32 %s9, 1
      %s215 = smul.u32 2, %s21
      %p216 = scmp.lt.s32.totalorder %s20, 0
      %s217 = scalar_select %p216, %s20, 0
      %p218 = scmp.lt.s32.totalorder %s215, 3
      %s219 = scalar_select %p218, %s215, 3
      %p220 = scmp.lt.s32.totalorder %s23, 0
      %s221 = scalar_select %p220, %s23, 0
      %s222 = sadd.s32 %s221, %s219
      %s223 = smul.addr %s217, 4
      %s224 = sadd.s32 %s222, %s223
      %s225 = smul.addr %s224, 4
      %s226 = scalar_lea.vmem %s0, %s225
      %p227 = pneg %p65
      %p228 = pneg %p62
      %s229 = smul.u32 16, %s23
      %p230 = scmp.lt.s32.totalorder %s20, 0
      %s231 = scalar_select %p230, %s20, 0
      %p232 = scmp.lt.s32.totalorder %s229, 15
      %s233 = scalar_select %p232, %s229, 15
      %p234 = scmp.lt.s32.totalorder %s22, 0
      %s235 = scalar_select %p234, %s22, 0
      %s236 = sadd.s32 %s235, %s233
      %s237 = smul.addr %s231, 16
      %s238 = sadd.s32 %s236, %s237
      %s239 = smul.addr %s238, 4
      %s240 = scalar_lea.vmem %s1, %s239
      %p241 = pneg %p95
      %p242 = pneg %p92
      %p243 = scmp.lt.s32.totalorder %s22, 0
      %s244 = scalar_select %p243, %s22, 0
      %s245 = scalar_lea.vmem %s2, %s244
      %p246 = pneg %p121
      %p247 = pneg %p118
      %p248 = pneg %p151
      %p249 = pneg %p148
      %s250 = smul.u32 2, %s21
      %p251 = scmp.lt.s32.totalorder %s20, 0
      %s252 = scalar_select %p251, %s20, 0
      %p253 = scmp.lt.s32.totalorder %s250, 3
      %s254 = scalar_select %p253, %s250, 3
      %p255 = scmp.lt.s32.totalorder %s22, 0
      %s256 = scalar_select %p255, %s22, 0
      %s257 = sadd.s32 %s256, %s254
      %s258 = smul.addr %s252, 4
      %s259 = sadd.s32 %s257, %s258
      %s260 = smul.addr %s259, 4
      %s261 = scalar_lea.vmem %s3, %s260
      %s262 = smul.u32 2, %s21
      %p263 = scmp.lt.s32.totalorder %s20, 0
      %s264 = scalar_select %p263, %s20, 0
      %p265 = scmp.lt.s32.totalorder %s262, 3
      %s266 = scalar_select %p265, %s262, 3
      %p267 = scmp.lt.s32.totalorder %s23, 0
      %s268 = scalar_select %p267, %s23, 0
      %s269 = sadd.s32 %s268, %s266
      %s270 = smul.addr %s264, 4
      %s271 = sadd.s32 %s269, %s270
      %s272 = smul.addr %s271, 4
      %s273 = scalar_lea.vmem %s0, %s272
      %s274 = smul.u32 2, %s21
      %s275 = smul.u32 16, %s23
      %p276 = scmp.lt.s32.totalorder %s20, 0
      %s277 = scalar_select %p276, %s20, 0
      %p278 = scmp.lt.s32.totalorder %s275, 15
      %s279 = scalar_select %p278, %s275, 15
      %p280 = scmp.lt.s32.totalorder %s22, 0
      %s281 = scalar_select %p280, %s22, 0
      %s282 = sadd.s32 %s281, %s279
      %s283 = smul.addr %s277, 16
      %s284 = sadd.s32 %s282, %s283
      %s285 = smul.addr %s284, 4
      %s286 = scalar_lea.vmem %s1, %s285
      %s287 = smul.u32 16, %s23
      %p288 = scmp.lt.s32.totalorder %s22, 0
      %s289 = scalar_select %p288, %s22, 0
      %s290 = scalar_lea.vmem %s2, %s289
      %s291 = smul.u32 2, %s21
      %p292 = scmp.lt.s32.totalorder %s20, 0
      %s293 = scalar_select %p292, %s20, 0
      %p294 = scmp.lt.s32.totalorder %s291, 3
      %s295 = scalar_select %p294, %s291, 3
      %p296 = scmp.lt.s32.totalorder %s22, 0
      %s297 = scalar_select %p296, %s22, 0
      %s298 = sadd.s32 %s297, %s295
      %s299 = smul.addr %s293, 4
      %s300 = sadd.s32 %s298, %s299
      %s301 = smul.addr %s300, 4
      %s302 = scalar_lea.vmem %s3, %s301
      %s303 = smul.u32 2, %s21
      %p304 = scmp.eq.s32.totalorder %s23, 0
      // Predicated region
      $region33: #{image_vae_forward.9} parent=31 // pred_check
        %p305 = pneg %p304
      $region34: #{image_vae_forward.9} parent=31 // pred_check_branch
        %307 = sbr.rel (%p305) target = $region36
      $region35: #{image_vae_forward.9} parent=31 // pred_region
        %308 = vst [vmem:[#allocation2] sm:$0xff] 0.0
        %309 = vst [vmem:[#allocation2 + $0x8] sm:$0xff] 0.0
      $region36: #{image_vae_forward.9} parent=31 // pred_fallthru
        _
      %v310 = vld [vmem:[#allocation2] sm:$0xff]
      %v311 = vld [vmem:[#allocation2 + $0x8] sm:$0xff]
      %v312 = vld [vmem:[%s273] sm:$0xf]
      %v313 = vld [vmem:[%s273 + $0x4] sm:$0xf]
      %v314 = vld [vmem:[%s286] sm:$0xf]
      %v315 = vld [vmem:[%s286 + $0x4] sm:$0xf]
      %v316 = vld [vmem:[%s286 + $0x8] sm:$0xf]
      %v317 = vld [vmem:[%s286 + $0xc] sm:$0xf]
      %v318 = vld [vmem:[%s286 + $0x10] sm:$0xf]
      %v319 = vld [vmem:[%s286 + $0x14] sm:$0xf]
      %v320 = vld [vmem:[%s286 + $0x18] sm:$0xf]
      %v321 = vld [vmem:[%s286 + $0x1c] sm:$0xf]
      %v322 = vld [vmem:[%s286 + $0x20] sm:$0xf]
      %v323 = vld [vmem:[%s286 + $0x24] sm:$0xf]
      %v324 = vld [vmem:[%s286 + $0x28] sm:$0xf]
      %v325 = vld [vmem:[%s286 + $0x2c] sm:$0xf]
      %v326 = vld [vmem:[%s286 + $0x30] sm:$0xf]
      %v327 = vld [vmem:[%s286 + $0x34] sm:$0xf]
      %v328 = vld [vmem:[%s286 + $0x38] sm:$0xf]
      %v329 = vld [vmem:[%s286 + $0x3c] sm:$0xf]
      %v332 = vunpack.c.l.b16 %v312
      %v333 = vunpack.c.l.b16 %v313
      %v334 = vpack.c.b16 %v333, %v332
      %v352 = vunpack.c.l.b16 %v314
      %v353 = vunpack.c.l.b16 %v315
      %v354 = vunpack.c.l.b16 %v316
      %v355 = vunpack.c.l.b16 %v317
      %v356 = vunpack.c.l.b16 %v318
      %v357 = vunpack.c.l.b16 %v319
      %v358 = vunpack.c.l.b16 %v320
      %v359 = vunpack.c.l.b16 %v321
      %v360 = vunpack.c.l.b16 %v322
      %v361 = vunpack.c.l.b16 %v323
      %v362 = vunpack.c.l.b16 %v324
      %v363 = vunpack.c.l.b16 %v325
      %v364 = vunpack.c.l.b16 %v326
      %v365 = vunpack.c.l.b16 %v327
      %v366 = vunpack.c.l.b16 %v328
      %v367 = vunpack.c.l.b16 %v329
      %v368 = vpack.c.b16 %v353, %v352
      %v369 = vpack.c.b16 %v355, %v354
      %v370 = vpack.c.b16 %v357, %v356
      %v371 = vpack.c.b16 %v359, %v358
      %v372 = vpack.c.b16 %v361, %v360
      %v373 = vpack.c.b16 %v363, %v362
      %v374 = vpack.c.b16 %v365, %v364
      %v375 = vpack.c.b16 %v367, %v366
      %384 = vmatpush.bf16.msra.mxu0 %v375
      %385 = vmatpush.bf16.msra.mxu0 %v374
      %386 = vmatpush.bf16.msra.mxu0 %v373
      %387 = vmatpush.bf16.msra.mxu0 %v372
      %388 = vmatpush.bf16.msra.mxu0 %v371
      %389 = vmatpush.bf16.msra.mxu0 %v370
      %390 = vmatpush.bf16.msra.mxu0 %v369
      %391 = vmatpush.bf16.msra.mxu0 %v368
      %392 = vmatmul.bf16.gmra.mxu0 %v334
      %v393 = vpop.f32.mrf.mxu0
      %v394 = vadd.f32 0.0, %v393
      %v395 = vpop.f32.mrf.mxu0
      %v396 = vadd.f32 0.0, %v395
      %397 = vdwg.mxu0
      %v398 = vadd.f32 %v310, %v394
      %v399 = vadd.f32 %v311, %v396
      %400 = vst [vmem:[#allocation2] sm:$0xff] %v398
      %401 = vst [vmem:[#allocation2 + $0x8] sm:$0xff] %v399
      // Predicated region
      $region37: #{image_vae_forward.9} parent=31 // pred_check
        %p402 = pneg %p304
      $region38: #{image_vae_forward.9} parent=31 // pred_check_branch
        %404 = sbr.rel (%p402) target = $region40
      $region39: #{image_vae_forward.9} parent=31 // pred_region
        %v405 = vld [vmem:[#allocation2] sm:$0xff]
        %v406 = vld [vmem:[#allocation2 + $0x8] sm:$0xff]
        %v407 = vld [vmem:[%s290] sm:$0x1]
        %v409 = vperm.slane %v407, 0
        %v411 = vadd.f32 %v405, %v409
        %v412 = vadd.f32 %v406, %v409
        %v413 = vmax.f32 %v411, 0.0
        %v414 = vmax.f32 %v412, 0.0
        %v415 = vpack.c.bf16 %v413, %v413
        %v416 = vpack.c.bf16 %v414, %v414
        %417 = vst [vmem:[%s302] sm:$0xf] %v415
        %418 = vst [vmem:[%s302 + $0x4] sm:$0xf] %v416
      $region40: #{image_vae_forward.9} parent=31 // pred_fallthru
        _
      %s419 = smul.u32 2, %s21
      %p420 = scmp.lt.s32.totalorder %s20, 0
      %s421 = scalar_select %p420, %s20, 0
      %p422 = scmp.lt.s32.totalorder %s419, 3
      %s423 = scalar_select %p422, %s419, 3
      %p424 = scmp.lt.s32.totalorder %s22, 0
      %s425 = scalar_select %p424, %s22, 0
      %s426 = sadd.s32 %s425, %s423
      %s427 = smul.addr %s421, 4
      %s428 = sadd.s32 %s426, %s427
      %s429 = smul.addr %s428, 4
      %s430 = scalar_lea.vmem %s3, %s429
      // Predicated region
      $region41: #{image_vae_forward.9} parent=31 // pred_check
        %p431 = pneg %p148
      $region42: #{image_vae_forward.9} parent=31 // pred_check_branch
        %433 = sbr.rel (%p431) target = $region44
      $region43: #{image_vae_forward.9} parent=31 // pred_region
        %s434 = smul.u32 2, %s21
      $region44: #{image_vae_forward.9} parent=31 // pred_fallthru
        _
    $region32: #{image_vae_forward.9} parent=5 // pred_fallthru
      _
    %p435 = scmp.le.s32.totalorder 2, %s9
    // Predicated region
    $region45: #{image_vae_forward.9} parent=5 // pred_check
      %p436 = pneg %p435
    $region46: #{image_vae_forward.9} parent=5 // pred_check_branch
      %438 = sbr.rel (%p436) target = $region48
    $region47: #{image_vae_forward.9} parent=5 // pred_region
      %s439 = ssub.s32 %s9, 2
      // Predicated region
      $region49: #{image_vae_forward.9} parent=47 // pred_check
        %p440 = pneg %p154
      $region50: #{image_vae_forward.9} parent=47 // pred_check_branch
        %442 = sbr.rel (%p440) target = $region52
      $region51: #{image_vae_forward.9} parent=47 // pred_region
        %s443 = smul.u32 2, %s25
        %p444 = scmp.lt.s32.totalorder %s24, 0
        %s445 = scalar_select %p444, %s24, 0
        %p446 = scmp.lt.s32.totalorder %s443, 3
        %s447 = scalar_select %p446, %s443, 3
        %p448 = scmp.lt.s32.totalorder %s26, 0
        %s449 = scalar_select %p448, %s26, 0
        %s450 = sadd.s32 %s449, %s447
        %s451 = smul.addr %s445, 4
        %s452 = sadd.s32 %s450, %s451
        %s453 = smul.addr %s452, 4
        %s454 = scalar_lea.vmem %s3, %s453
      $region52: #{image_vae_forward.9} parent=47 // pred_fallthru
        _
    $region48: #{image_vae_forward.9} parent=5 // pred_fallthru
      _
  $region6: #{image_vae_forward.9} parent=0 // loop_footer
    %s13 = sadd.s32 1, %s9
  $region7: #{image_vae_forward.9} parent=0 // loop_footer_branch
    %8 = sbr.rel target = $region3
  $region8: #{image_vae_forward.9} parent=0 // loop_exit
    _

// kernel: squeeze.11
$region0: #{squeeze.11}
  %s0 = inlined_call_operand.vmem [shape: bf16[1,8,8], index: 0, kind: input, shape index: {}]
  %s1 = inlined_call_operand.vmem [shape: bf16[2,32], index: 1, kind: output, shape index: {}]
  $region1: #{squeeze.11} parent=0
    #allocation0 [shape = 'u8[4096]{0}', space=vmem, size = 0x1000, scoped, tag = 'scoped mem for output reshape']
    #allocation1 [shape = 'u8[4096]{0}', space=vmem, size = 0x1000, scoped, tag = 'scoped mem for input reshape']
    %s3 = ssub.s32 256, 1
    %s4 = sshrl.u32 %s3, 1
    %s5 = sor.u32 %s3, %s4
    %s6 = sand.u32 %s5, 85
    %s7 = sshrl.u32 %s6, 1
    %s8 = sor.u32 %s6, %s7
    %s9 = sand.u32 51, %s8
    %s10 = sshrl.u32 %s9, 2
    %s11 = sor.u32 %s9, %s10
    %s12 = sand.u32 15, %s11
    %v13 = vld [vmem:[%s0] sm:%s12]
    %v14 = vunpack.c.l.bf16 %v13
    %v15 = vunpack.c.h.bf16 %v13
    %16 = vst [vmem:[#allocation1] sm:%s3] %v14
    %s17 = smov 3
    %v18 = vld [vmem:[#allocation1] ss:$4 sm:%s17]
    %vm19 = vcmask 64512
    %20 = vst.msk [vmem:[#allocation0] sm:$0x3] %vm19, %v18
    %s21 = scalar_lea.vmem [#allocation1], 3
    %s22 = smov 3
    %v23 = vld [vmem:[%s21] ss:$4 sm:%s22]
    %24 = vrot.lane.b32.xlu0 %v23, 24
    %v25 = vpop.permute.xlu0 %24
    %vm26 = vcmask 261312
    %27 = vst.msk [vmem:[#allocation0] sm:$0x3] %vm26, %v25
    %s28 = scalar_lea.vmem [#allocation1], 2
    %s29 = smov 3
    %v30 = vld [vmem:[%s28] ss:$4 sm:%s29]
    %31 = vrot.lane.b32.xlu0 %v30, 16
    %v32 = vpop.permute.xlu0 %31
    %vm33 = vcmask 195712
    %34 = vst.msk [vmem:[#allocation0] sm:$0x3] %vm33, %v32
    %s35 = scalar_lea.vmem [#allocation1], 1
    %s36 = smov 3
    %v37 = vld [vmem:[%s35] ss:$4 sm:%s36]
    %38 = vrot.lane.b32.xlu0 %v37, 8
    %v39 = vpop.permute.xlu0 %38
    %vm40 = vcmask 130112
    %41 = vst.msk [vmem:[#allocation0] sm:$0x3] %vm40, %v39
    %s43 = ssub.s32 4, 1
    %v44 = vld [vmem:[#allocation0] sm:%s43]
    %v45 = vpack.c.bf16 0.0, %v44
    %s47 = ssub.s32 2, 1
    %48 = vst [vmem:[%s1] sm:%s47] %v45

// kernel: squeeze.13
$region0: #{squeeze.13}
  %s0 = inlined_call_operand.vmem [shape: bf16[1,2,32], index: 0, kind: input, shape index: {}]
  %s1 = inlined_call_operand.vmem [shape: bf16[2,2,2,8], index: 1, kind: output, shape index: {}]
  $region1: #{squeeze.13} parent=0
    #allocation0 [shape = 'u8[16384]{0}', space=vmem, size = 0x4000, scoped, tag = 'scoped mem for output reshape']
    #allocation1 [shape = 'u8[4096]{0}', space=vmem, size = 0x1000, scoped, tag = 'scoped mem for input reshape']
    %s3 = ssub.s32 4, 1
    %s4 = sshrl.u32 %s3, 1
    %s5 = sor.u32 %s3, %s4
    %s6 = sand.u32 %s5, 85
    %s7 = sshrl.u32 %s6, 1
    %s8 = sor.u32 %s6, %s7
    %s9 = sand.u32 51, %s8
    %s10 = sshrl.u32 %s9, 2
    %s11 = sor.u32 %s9, %s10
    %s12 = sand.u32 15, %s11
    %v13 = vld [vmem:[%s0] sm:%s12]
    %v14 = vunpack.c.l.bf16 %v13
    %v15 = vunpack.c.h.bf16 %v13
    %16 = vst [vmem:[#allocation1] sm:%s3] %v14
    %v17 = vld [vmem:[#allocation1] sm:$0x3]
    %vm18 = vcmask 64512
    %19 = vst.msk [vmem:[#allocation0] ss:$16 sm:$0x3] %vm18, %v17
    %v20 = vld [vmem:[#allocation1] sm:$0x3]
    %21 = vrot.lane.b32.xlu0 %v20, 120
    %v22 = vpop.permute.xlu0 %21
    %vm23 = vcmask 64512
    %s24 = scalar_lea.vmem [#allocation0], 1
    %25 = vst.msk [vmem:[%s24] ss:$16 sm:$0x3] %vm23, %v22
    %v26 = vld [vmem:[#allocation1] sm:$0x3]
    %27 = vrot.lane.b32.xlu0 %v26, 112
    %v28 = vpop.permute.xlu0 %27
    %vm29 = vcmask 64512
    %s30 = scalar_lea.vmem [#allocation0], 8
    %31 = vst.msk [vmem:[%s30] ss:$16 sm:$0x3] %vm29, %v28
    %v32 = vld [vmem:[#allocation1] sm:$0x3]
    %33 = vrot.lane.b32.xlu0 %v32, 104
    %v34 = vpop.permute.xlu0 %33
    %vm35 = vcmask 64512
    %s36 = scalar_lea.vmem [#allocation0], 9
    %37 = vst.msk [vmem:[%s36] ss:$16 sm:$0x3] %vm35, %v34
    %s39 = ssub.s32 4, 1
    %v40 = vld [vmem:[#allocation0] sm:%s39]
    %v41 = vpack.c.bf16 0.0, %v40
    %s43 = ssub.s32 2, 1
    %44 = vst [vmem:[%s1] sm:%s43] %v41
    %s45 = scalar_lea.vmem [#allocation0], 8
    %v46 = vld [vmem:[%s45] sm:%s39]
    %v47 = vpack.c.bf16 0.0, %v46
    %s49 = ssub.s32 2, 1
    %s50 = scalar_lea.vmem %s1, 1
    %51 = vst [vmem:[%s50] sm:%s49] %v47
    %s52 = scalar_lea.vmem [#allocation0], 16
    %v53 = vld [vmem:[%s52] sm:%s39]
    %v54 = vpack.c.bf16 0.0, %v53
    %s56 = ssub.s32 2, 1
    %s57 = scalar_lea.vmem %s1, 2
    %58 = vst [vmem:[%s57] sm:%s56] %v54
    %s59 = scalar_lea.vmem [#allocation0], 24
    %v60 = vld [vmem:[%s59] sm:%s39]
    %v61 = vpack.c.bf16 0.0, %v60
    %s63 = ssub.s32 2, 1
    %s64 = scalar_lea.vmem %s1, 3
    %65 = vst [vmem:[%s64] sm:%s63] %v61

// kernel: image_vae_forward.11
$region0: #{image_vae_forward.11}
  #allocation0 [shape = 'u32[]', space=smem, size = 0x4, offset = 0x4, fixed_abs, tag = 'smem constant byte address 0x4 - core index']
  #allocation1 [shape = 'u32[72,128]{1,0:T(1,128)}', space=vmem, size = 0x9000, scoped, tag = 'internal scratch']
  #allocation2 [shape = 'f32[16,128]{1,0:T(8,128)}', space=vmem, size = 0x2000, scoped, tag = 'scratch operand']
  %s0 = inlined_call_operand.vmem [shape: bf16[1,16,128], index: 0, kind: input, shape index: {}]
  %s1 = inlined_call_operand.vmem [shape: bf16[1,128,128], index: 1, kind: input, shape index: {}]
  %s2 = inlined_call_operand.vmem [shape: f32[1,128], index: 2, kind: input, shape index: {}]
  %s3 = inlined_call_operand.vmem [shape: f32[1,16,128], index: 3, kind: output, shape index: {}]
  %s4 = sld [smem:[#allocation0]]
  $region30: #{image_vae_forward.11} parent=0
    _
  %s6 = ssub.s32 1, %s4
  %s7 = scalar_select 0, %s6, %s4
  // Predicated region
  $region2: #{image_vae_forward.11} parent=0 // pred_check
    _
  $region3: #{image_vae_forward.11} parent=0 // pred_check_branch
    %9 = sbr.rel (0) target = $region5
  $region4: #{image_vae_forward.11} parent=0 // pred_region
    _
  $region5: #{image_vae_forward.11} parent=0 // pred_fallthru
    _
  // Predicated region
  $region6: #{image_vae_forward.11} parent=0 // pred_check
    _
  $region7: #{image_vae_forward.11} parent=0 // pred_check_branch
    %11 = sbr.rel (0) target = $region9
  $region8: #{image_vae_forward.11} parent=0 // pred_region
    _
  $region9: #{image_vae_forward.11} parent=0 // pred_fallthru
    _
  // Predicated region
  $region10: #{image_vae_forward.11} parent=0 // pred_check
    _
  $region11: #{image_vae_forward.11} parent=0 // pred_check_branch
    %13 = sbr.rel (0) target = $region13
  $region12: #{image_vae_forward.11} parent=0 // pred_region
    _
  $region13: #{image_vae_forward.11} parent=0 // pred_fallthru
    _
  %p14 = scmp.eq.s32.totalorder 0, 0
  // Predicated region
  $region14: #{image_vae_forward.11} parent=0 // pred_check
    %p15 = pneg %p14
  $region15: #{image_vae_forward.11} parent=0 // pred_check_branch
    %17 = sbr.rel (%p15) target = $region17
  $region16: #{image_vae_forward.11} parent=0 // pred_region
    %18 = vst [vmem:[#allocation2] sm:$0xff] 0.0
    %19 = vst [vmem:[#allocation2 + $0x8] sm:$0xff] 0.0
  $region17: #{image_vae_forward.11} parent=0 // pred_fallthru
    _
  %v20 = vld [vmem:[#allocation2] sm:$0xff]
  %v21 = vld [vmem:[#allocation2 + $0x8] sm:$0xff]
  %v22 = vld [vmem:[%s0] sm:$0xf]
  %v23 = vld [vmem:[%s0 + $0x4] sm:$0xf]
  %v24 = vld [vmem:[%s1] sm:$0xf]
  %v25 = vld [vmem:[%s1 + $0x4] sm:$0xf]
  %v26 = vld [vmem:[%s1 + $0x8] sm:$0xf]
  %v27 = vld [vmem:[%s1 + $0xc] sm:$0xf]
  %v28 = vld [vmem:[%s1 + $0x10] sm:$0xf]
  %v29 = vld [vmem:[%s1 + $0x14] sm:$0xf]
  %v30 = vld [vmem:[%s1 + $0x18] sm:$0xf]
  %v31 = vld [vmem:[%s1 + $0x1c] sm:$0xf]
  %v32 = vld [vmem:[%s1 + $0x20] sm:$0xf]
  %v33 = vld [vmem:[%s1 + $0x24] sm:$0xf]
  %v34 = vld [vmem:[%s1 + $0x28] sm:$0xf]
  %v35 = vld [vmem:[%s1 + $0x2c] sm:$0xf]
  %v36 = vld [vmem:[%s1 + $0x30] sm:$0xf]
  %v37 = vld [vmem:[%s1 + $0x34] sm:$0xf]
  %v38 = vld [vmem:[%s1 + $0x38] sm:$0xf]
  %v39 = vld [vmem:[%s1 + $0x3c] sm:$0xf]
  %v42 = vunpack.c.l.b16 %v22
  %v43 = vunpack.c.l.b16 %v23
  %v44 = vpack.c.b16 %v43, %v42
  %v62 = vunpack.c.l.b16 %v24
  %v63 = vunpack.c.l.b16 %v25
  %v64 = vunpack.c.l.b16 %v26
  %v65 = vunpack.c.l.b16 %v27
  %v66 = vunpack.c.l.b16 %v28
  %v67 = vunpack.c.l.b16 %v29
  %v68 = vunpack.c.l.b16 %v30
  %v69 = vunpack.c.l.b16 %v31
  %v70 = vunpack.c.l.b16 %v32
  %v71 = vunpack.c.l.b16 %v33
  %v72 = vunpack.c.l.b16 %v34
  %v73 = vunpack.c.l.b16 %v35
  %v74 = vunpack.c.l.b16 %v36
  %v75 = vunpack.c.l.b16 %v37
  %v76 = vunpack.c.l.b16 %v38
  %v77 = vunpack.c.l.b16 %v39
  %v78 = vpack.c.b16 %v63, %v62
  %v79 = vpack.c.b16 %v65, %v64
  %v80 = vpack.c.b16 %v67, %v66
  %v81 = vpack.c.b16 %v69, %v68
  %v82 = vpack.c.b16 %v71, %v70
  %v83 = vpack.c.b16 %v73, %v72
  %v84 = vpack.c.b16 %v75, %v74
  %v85 = vpack.c.b16 %v77, %v76
  %94 = vmatpush.bf16.msra.mxu0 %v85
  %95 = vmatpush.bf16.msra.mxu0 %v84
  %96 = vmatpush.bf16.msra.mxu0 %v83
  %97 = vmatpush.bf16.msra.mxu0 %v82
  %98 = vmatpush.bf16.msra.mxu0 %v81
  %99 = vmatpush.bf16.msra.mxu0 %v80
  %100 = vmatpush.bf16.msra.mxu0 %v79
  %101 = vmatpush.bf16.msra.mxu0 %v78
  %102 = vmatmul.bf16.gmra.mxu0 %v44
  %v103 = vpop.f32.mrf.mxu0
  %v104 = vadd.f32 0.0, %v103
  %v105 = vpop.f32.mrf.mxu0
  %v106 = vadd.f32 0.0, %v105
  %107 = vdwg.mxu0
  %v108 = vadd.f32 %v20, %v104
  %v109 = vadd.f32 %v21, %v106
  %110 = vst [vmem:[#allocation2] sm:$0xff] %v108
  %111 = vst [vmem:[#allocation2 + $0x8] sm:$0xff] %v109
  // Predicated region
  $region18: #{image_vae_forward.11} parent=0 // pred_check
    %p112 = pneg %p14
  $region19: #{image_vae_forward.11} parent=0 // pred_check_branch
    %114 = sbr.rel (%p112) target = $region21
  $region20: #{image_vae_forward.11} parent=0 // pred_region
    %v115 = vld [vmem:[#allocation2] sm:$0xff]
    %v116 = vld [vmem:[#allocation2 + $0x8] sm:$0xff]
    %v117 = vld [vmem:[%s2] sm:$0x1]
    %v119 = vperm.slane %v117, 0
    %v121 = vadd.f32 %v115, %v119
    %v122 = vadd.f32 %v116, %v119
    %123 = vst [vmem:[%s3] sm:$0xff] %v121
    %124 = vst [vmem:[%s3 + $0x8] sm:$0xff] %v122
  $region21: #{image_vae_forward.11} parent=0 // pred_fallthru
    _
  // Predicated region
  $region22: #{image_vae_forward.11} parent=0 // pred_check
    _
  $region23: #{image_vae_forward.11} parent=0 // pred_check_branch
    %126 = sbr.rel (0) target = $region25
  $region24: #{image_vae_forward.11} parent=0 // pred_region
    _
  $region25: #{image_vae_forward.11} parent=0 // pred_fallthru
    _
  // Predicated region
  $region26: #{image_vae_forward.11} parent=0 // pred_check
    _
  $region27: #{image_vae_forward.11} parent=0 // pred_check_branch
    %128 = sbr.rel (0) target = $region29
  $region28: #{image_vae_forward.11} parent=0 // pred_region
    _
  $region29: #{image_vae_forward.11} parent=0 // pred_fallthru
    _

// kernel: image_vae_forward.10
$region0: #{image_vae_forward.10}
  #allocation0 [shape = 'u32[]', space=smem, size = 0x4, offset = 0x4, fixed_abs, tag = 'smem constant byte address 0x4 - core index']
  #allocation1 [shape = 'u32[72,128]{1,0:T(1,128)}', space=vmem, size = 0x9000, scoped, tag = 'internal scratch']
  #allocation2 [shape = 'f32[16,128]{1,0:T(8,128)}', space=vmem, size = 0x2000, scoped, tag = 'scratch operand']
  %s0 = inlined_call_operand.vmem [shape: bf16[1,16,128], index: 0, kind: input, shape index: {}]
  %s1 = inlined_call_operand.vmem [shape: bf16[1,128,128], index: 1, kind: input, shape index: {}]
  %s2 = inlined_call_operand.vmem [shape: f32[1,128], index: 2, kind: input, shape index: {}]
  %s3 = inlined_call_operand.vmem [shape: bf16[1,16,128], index: 3, kind: output, shape index: {}]
  %s4 = sld [smem:[#allocation0]]
  $region30: #{image_vae_forward.10} parent=0
    _
  %s6 = ssub.s32 1, %s4
  %s7 = scalar_select 0, %s6, %s4
  // Predicated region
  $region2: #{image_vae_forward.10} parent=0 // pred_check
    _
  $region3: #{image_vae_forward.10} parent=0 // pred_check_branch
    %9 = sbr.rel (0) target = $region5
  $region4: #{image_vae_forward.10} parent=0 // pred_region
    _
  $region5: #{image_vae_forward.10} parent=0 // pred_fallthru
    _
  // Predicated region
  $region6: #{image_vae_forward.10} parent=0 // pred_check
    _
  $region7: #{image_vae_forward.10} parent=0 // pred_check_branch
    %11 = sbr.rel (0) target = $region9
  $region8: #{image_vae_forward.10} parent=0 // pred_region
    _
  $region9: #{image_vae_forward.10} parent=0 // pred_fallthru
    _
  // Predicated region
  $region10: #{image_vae_forward.10} parent=0 // pred_check
    _
  $region11: #{image_vae_forward.10} parent=0 // pred_check_branch
    %13 = sbr.rel (0) target = $region13
  $region12: #{image_vae_forward.10} parent=0 // pred_region
    _
  $region13: #{image_vae_forward.10} parent=0 // pred_fallthru
    _
  %p14 = scmp.eq.s32.totalorder 0, 0
  // Predicated region
  $region14: #{image_vae_forward.10} parent=0 // pred_check
    %p15 = pneg %p14
  $region15: #{image_vae_forward.10} parent=0 // pred_check_branch
    %17 = sbr.rel (%p15) target = $region17
  $region16: #{image_vae_forward.10} parent=0 // pred_region
    %18 = vst [vmem:[#allocation2] sm:$0xff] 0.0
    %19 = vst [vmem:[#allocation2 + $0x8] sm:$0xff] 0.0
  $region17: #{image_vae_forward.10} parent=0 // pred_fallthru
    _
  %v20 = vld [vmem:[#allocation2] sm:$0xff]
  %v21 = vld [vmem:[#allocation2 + $0x8] sm:$0xff]
  %v22 = vld [vmem:[%s0] sm:$0xf]
  %v23 = vld [vmem:[%s0 + $0x4] sm:$0xf]
  %v24 = vld [vmem:[%s1] sm:$0xf]
  %v25 = vld [vmem:[%s1 + $0x4] sm:$0xf]
  %v26 = vld [vmem:[%s1 + $0x8] sm:$0xf]
  %v27 = vld [vmem:[%s1 + $0xc] sm:$0xf]
  %v28 = vld [vmem:[%s1 + $0x10] sm:$0xf]
  %v29 = vld [vmem:[%s1 + $0x14] sm:$0xf]
  %v30 = vld [vmem:[%s1 + $0x18] sm:$0xf]
  %v31 = vld [vmem:[%s1 + $0x1c] sm:$0xf]
  %v32 = vld [vmem:[%s1 + $0x20] sm:$0xf]
  %v33 = vld [vmem:[%s1 + $0x24] sm:$0xf]
  %v34 = vld [vmem:[%s1 + $0x28] sm:$0xf]
  %v35 = vld [vmem:[%s1 + $0x2c] sm:$0xf]
  %v36 = vld [vmem:[%s1 + $0x30] sm:$0xf]
  %v37 = vld [vmem:[%s1 + $0x34] sm:$0xf]
  %v38 = vld [vmem:[%s1 + $0x38] sm:$0xf]
  %v39 = vld [vmem:[%s1 + $0x3c] sm:$0xf]
  %v42 = vunpack.c.l.b16 %v22
  %v43 = vunpack.c.l.b16 %v23
  %v44 = vpack.c.b16 %v43, %v42
  %v62 = vunpack.c.l.b16 %v24
  %v63 = vunpack.c.l.b16 %v25
  %v64 = vunpack.c.l.b16 %v26
  %v65 = vunpack.c.l.b16 %v27
  %v66 = vunpack.c.l.b16 %v28
  %v67 = vunpack.c.l.b16 %v29
  %v68 = vunpack.c.l.b16 %v30
  %v69 = vunpack.c.l.b16 %v31
  %v70 = vunpack.c.l.b16 %v32
  %v71 = vunpack.c.l.b16 %v33
  %v72 = vunpack.c.l.b16 %v34
  %v73 = vunpack.c.l.b16 %v35
  %v74 = vunpack.c.l.b16 %v36
  %v75 = vunpack.c.l.b16 %v37
  %v76 = vunpack.c.l.b16 %v38
  %v77 = vunpack.c.l.b16 %v39
  %v78 = vpack.c.b16 %v63, %v62
  %v79 = vpack.c.b16 %v65, %v64
  %v80 = vpack.c.b16 %v67, %v66
  %v81 = vpack.c.b16 %v69, %v68
  %v82 = vpack.c.b16 %v71, %v70
  %v83 = vpack.c.b16 %v73, %v72
  %v84 = vpack.c.b16 %v75, %v74
  %v85 = vpack.c.b16 %v77, %v76
  %94 = vmatpush.bf16.msra.mxu0 %v85
  %95 = vmatpush.bf16.msra.mxu0 %v84
  %96 = vmatpush.bf16.msra.mxu0 %v83
  %97 = vmatpush.bf16.msra.mxu0 %v82
  %98 = vmatpush.bf16.msra.mxu0 %v81
  %99 = vmatpush.bf16.msra.mxu0 %v80
  %100 = vmatpush.bf16.msra.mxu0 %v79
  %101 = vmatpush.bf16.msra.mxu0 %v78
  %102 = vmatmul.bf16.gmra.mxu0 %v44
  %v103 = vpop.f32.mrf.mxu0
  %v104 = vadd.f32 0.0, %v103
  %v105 = vpop.f32.mrf.mxu0
  %v106 = vadd.f32 0.0, %v105
  %107 = vdwg.mxu0
  %v108 = vadd.f32 %v20, %v104
  %v109 = vadd.f32 %v21, %v106
  %110 = vst [vmem:[#allocation2] sm:$0xff] %v108
  %111 = vst [vmem:[#allocation2 + $0x8] sm:$0xff] %v109
  // Predicated region
  $region18: #{image_vae_forward.10} parent=0 // pred_check
    %p112 = pneg %p14
  $region19: #{image_vae_forward.10} parent=0 // pred_check_branch
    %114 = sbr.rel (%p112) target = $region21
  $region20: #{image_vae_forward.10} parent=0 // pred_region
    %v115 = vld [vmem:[#allocation2] sm:$0xff]
    %v116 = vld [vmem:[#allocation2 + $0x8] sm:$0xff]
    %v117 = vld [vmem:[%s2] sm:$0x1]
    %v119 = vperm.slane %v117, 0
    %v121 = vadd.f32 %v115, %v119
    %v122 = vadd.f32 %v116, %v119
    %v123 = vmax.f32 %v121, 0.0
    %v124 = vmax.f32 %v122, 0.0
    %v125 = vpack.c.bf16 %v123, %v123
    %v126 = vpack.c.bf16 %v124, %v124
    %127 = vst [vmem:[%s3] sm:$0xf] %v125
    %128 = vst [vmem:[%s3 + $0x4] sm:$0xf] %v126
  $region21: #{image_vae_forward.10} parent=0 // pred_fallthru
    _
  // Predicated region
  $region22: #{image_vae_forward.10} parent=0 // pred_check
    _
  $region23: #{image_vae_forward.10} parent=0 // pred_check_branch
    %130 = sbr.rel (0) target = $region25
  $region24: #{image_vae_forward.10} parent=0 // pred_region
    _
  $region25: #{image_vae_forward.10} parent=0 // pred_fallthru
    _
  // Predicated region
  $region26: #{image_vae_forward.10} parent=0 // pred_check
    _
  $region27: #{image_vae_forward.10} parent=0 // pred_check_branch
    %132 = sbr.rel (0) target = $region29
  $region28: #{image_vae_forward.10} parent=0 // pred_region
    _
  $region29: #{image_vae_forward.10} parent=0 // pred_fallthru
    _

// kernel: image_vae_forward.13
$region0: #{image_vae_forward.13}
  #allocation0 [shape = 'u32[]', space=smem, size = 0x4, offset = 0x4, fixed_abs, tag = 'smem constant byte address 0x4 - core index']
  #allocation1 [shape = 'u32[72,128]{1,0:T(1,128)}', space=vmem, size = 0x9000, scoped, tag = 'internal scratch']
  #allocation2 [shape = 'f32[16,128]{1,0:T(8,128)}', space=vmem, size = 0x2000, scoped, tag = 'scratch operand']
  %s0 = inlined_call_operand.vmem [shape: bf16[4,16,128], index: 0, kind: input, shape index: {}]
  %s1 = inlined_call_operand.vmem [shape: bf16[4,128,128], index: 1, kind: input, shape index: {}]
  %s2 = inlined_call_operand.vmem [shape: f32[1,128], index: 2, kind: input, shape index: {}]
  %s3 = inlined_call_operand.vmem [shape: bf16[4,16,128], index: 3, kind: output, shape index: {}]
  %s4 = sld [smem:[#allocation0]]
  $region53: #{image_vae_forward.13} parent=0
    _
  %s6 = ssub.s32 1, %s4
  %s7 = scalar_select 0, %s6, %s4
  loop: start=0, step=1, limit=6
  $region2: #{image_vae_forward.13} parent=0 // loop_pre_header
    _
  $region3: #{image_vae_forward.13} parent=0 // loop_header
    %s9 = sphi 0, %s13
    %p10 = scmp.ge.s32.totalorder %s9, 6
    %s16 = sphi 0, %s42
    %s17 = sphi 0, %s38
    %s18 = sphi 0, %s34
    %s19 = sphi 0, %s30
    %s20 = sphi 0, %s16
    %s21 = sphi 0, %s17
    %s22 = sphi 0, %s18
    %s23 = sphi 0, %s19
    %s24 = sphi 0, %s20
    %s25 = sphi 0, %s21
    %s26 = sphi 0, %s22
    %s27 = sphi 0, %s23
    %s49 = sphi 0, %s51
    %s52 = sphi 0, %s49
    %s53 = sphi 0, %s52
    %s69 = sphi 0, %s53
    %s79 = sphi 0, %s81
    %s82 = sphi 0, %s79
    %s83 = sphi 0, %s82
    %s99 = sphi 0, %s83
    %s105 = sphi 0, %s107
    %s108 = sphi 0, %s105
    %s109 = sphi 0, %s108
    %s125 = sphi 0, %s109
    %s135 = sphi 0, %s137
    %s138 = sphi 0, %s135
    %s139 = sphi 0, %s138
    %s155 = sphi 0, %s139
  $region4: #{image_vae_forward.13} parent=0 // loop_header_branch
    %12 = sbr.rel (%p10) target = $region8
  $region5: #{image_vae_forward.13} parent=0 // loop_body
    %s14 = ssub.s32 %s9, 1
    %s15 = ssub.s32 %s9, 2
    %s28 = sadd.s32 1, %s19
    %p29 = scmp.ge.s32.totalorder %s28, 1
    %s30 = scalar_select %p29, 0, %s28
    %s31 = sadd.s32 1, %s18
    %s32 = scalar_select %p29, %s31, %s18
    %p33 = scmp.ge.s32.totalorder %s32, 1
    %s34 = scalar_select %p33, 0, %s32
    %s35 = sadd.s32 1, %s17
    %s36 = scalar_select %p33, %s35, %s17
    %p37 = scmp.ge.s32.totalorder %s36, 1
    %s38 = scalar_select %p37, 0, %s36
    %s39 = sadd.s32 1, %s16
    %s40 = scalar_select %p37, %s39, %s16
    %p41 = scmp.ge.s32.totalorder %s40, 4
    %s42 = scalar_select %p41, 0, %s40
    %s43 = ssub.s32 %s16, %s42
    %s44 = ssub.s32 %s17, %s38
    %s45 = sor.u32 %s43, %s44
    %s46 = ssub.s32 %s19, %s30
    %s47 = sor.u32 %s45, %s46
    %p48 = scmp.eq.s32.totalorder %s47, 0
    %s50 = sadd.s32 %s49, 1
    %s51 = scalar_select %p48, %s49, %s50
    %p54 = pneg %p48
    %p55 = scmp.eq.s32.totalorder %s9, 3
    %p56 = por %p54, %p55
    %p57 = scmp.ne.s32.totalorder %s49, %s52
    %p58 = scmp.eq.s32.totalorder %s9, 0
    %p59 = por %p57, %p58
    %p60 = scmp.ne.s32.totalorder %s49, %s52
    %p61 = scmp.eq.s32.totalorder %s14, 3
    %p62 = por %p60, %p61
    %p63 = scmp.ne.s32.totalorder %s52, %s53
    %p64 = scmp.eq.s32.totalorder %s14, 0
    %p65 = por %p63, %p64
    %p66 = scmp.ne.s32.totalorder %s52, %s53
    %p67 = scmp.eq.s32.totalorder %s15, 3
    %p68 = por %p66, %p67
    %p70 = scmp.ne.s32.totalorder %s53, %s69
    %p71 = scmp.eq.s32.totalorder %s15, 0
    %p72 = por %p70, %p71
    %s73 = ssub.s32 %s16, %s42
    %s74 = ssub.s32 %s19, %s30
    %s75 = sor.u32 %s73, %s74
    %s76 = ssub.s32 %s18, %s34
    %s77 = sor.u32 %s75, %s76
    %p78 = scmp.eq.s32.totalorder %s77, 0
    %s80 = sadd.s32 %s79, 1
    %s81 = scalar_select %p78, %s79, %s80
    %p84 = pneg %p78
    %p85 = scmp.eq.s32.totalorder %s9, 3
    %p86 = por %p84, %p85
    %p87 = scmp.ne.s32.totalorder %s79, %s82
    %p88 = scmp.eq.s32.totalorder %s9, 0
    %p89 = por %p87, %p88
    %p90 = scmp.ne.s32.totalorder %s79, %s82
    %p91 = scmp.eq.s32.totalorder %s14, 3
    %p92 = por %p90, %p91
    %p93 = scmp.ne.s32.totalorder %s82, %s83
    %p94 = scmp.eq.s32.totalorder %s14, 0
    %p95 = por %p93, %p94
    %p96 = scmp.ne.s32.totalorder %s82, %s83
    %p97 = scmp.eq.s32.totalorder %s15, 3
    %p98 = por %p96, %p97
    %p100 = scmp.ne.s32.totalorder %s83, %s99
    %p101 = scmp.eq.s32.totalorder %s15, 0
    %p102 = por %p100, %p101
    %s103 = ssub.s32 %s18, %s34
    %p104 = scmp.eq.s32.totalorder %s103, 0
    %s106 = sadd.s32 %s105, 1
    %s107 = scalar_select %p104, %s105, %s106
    %p110 = pneg %p104
    %p111 = scmp.eq.s32.totalorder %s9, 3
    %p112 = por %p110, %p111
    %p113 = scmp.ne.s32.totalorder %s105, %s108
    %p114 = scmp.eq.s32.totalorder %s9, 0
    %p115 = por %p113, %p114
    %p116 = scmp.ne.s32.totalorder %s105, %s108
    %p117 = scmp.eq.s32.totalorder %s14, 3
    %p118 = por %p116, %p117
    %p119 = scmp.ne.s32.totalorder %s108, %s109
    %p120 = scmp.eq.s32.totalorder %s14, 0
    %p121 = por %p119, %p120
    %p122 = scmp.ne.s32.totalorder %s108, %s109
    %p123 = scmp.eq.s32.totalorder %s15, 3
    %p124 = por %p122, %p123
    %p126 = scmp.ne.s32.totalorder %s109, %s125
    %p127 = scmp.eq.s32.totalorder %s15, 0
    %p128 = por %p126, %p127
    %s129 = ssub.s32 %s16, %s42
    %s130 = ssub.s32 %s17, %s38
    %s131 = sor.u32 %s129, %s130
    %s132 = ssub.s32 %s18, %s34
    %s133 = sor.u32 %s131, %s132
    %p134 = scmp.eq.s32.totalorder %s133, 0
    %s136 = sadd.s32 %s135, 1
    %s137 = scalar_select %p134, %s135, %s136
    %p140 = pneg %p134
    %p141 = scmp.eq.s32.totalorder %s9, 3
    %p142 = por %p140, %p141
    %p143 = scmp.ne.s32.totalorder %s135, %s138
    %p144 = scmp.eq.s32.totalorder %s9, 0
    %p145 = por %p143, %p144
    %p146 = scmp.ne.s32.totalorder %s135, %s138
    %p147 = scmp.eq.s32.totalorder %s14, 3
    %p148 = por %p146, %p147
    %p149 = scmp.ne.s32.totalorder %s138, %s139
    %p150 = scmp.eq.s32.totalorder %s14, 0
    %p151 = por %p149, %p150
    %p152 = scmp.ne.s32.totalorder %s138, %s139
    %p153 = scmp.eq.s32.totalorder %s15, 3
    %p154 = por %p152, %p153
    %p156 = scmp.ne.s32.totalorder %s139, %s155
    %p157 = scmp.eq.s32.totalorder %s15, 0
    %p158 = por %p156, %p157
    %p159 = scmp.le.s32.totalorder 1, %s9
    %p160 = scmp.lt.s32.totalorder %s9, 5
    %p161 = pnand %p159, %p160
    %p162 = pneg %p161
    // Predicated region
    $region9: #{image_vae_forward.13} parent=5 // pred_check
      _
    $region10: #{image_vae_forward.13} parent=5 // pred_check_branch
      %164 = sbr.rel (%p161) target = $region12
    $region11: #{image_vae_forward.13} parent=5 // pred_region
      %s165 = ssub.s32 %s9, 1
      // Predicated region
      $region13: #{image_vae_forward.13} parent=11 // pred_check
        %p166 = pneg %p121
      $region14: #{image_vae_forward.13} parent=11 // pred_check_branch
        %168 = sbr.rel (%p166) target = $region16
      $region15: #{image_vae_forward.13} parent=11 // pred_region
        %p169 = scmp.lt.s32.totalorder %s22, 0
        %s170 = scalar_select %p169, %s22, 0
        %s171 = scalar_lea.vmem %s2, %s170
      $region16: #{image_vae_forward.13} parent=11 // pred_fallthru
        _
    $region12: #{image_vae_forward.13} parent=5 // pred_fallthru
      _
    %p172 = scmp.lt.s32.totalorder %s9, 4
    // Predicated region
    $region17: #{image_vae_forward.13} parent=5 // pred_check
      %p173 = pneg %p172
    $region18: #{image_vae_forward.13} parent=5 // pred_check_branch
      %175 = sbr.rel (%p173) target = $region20
    $region19: #{image_vae_forward.13} parent=5 // pred_region
      // Predicated region
      $region21: #{image_vae_forward.13} parent=19 // pred_check
        %p176 = pneg %p59
      $region22: #{image_vae_forward.13} parent=19 // pred_check_branch
        %178 = sbr.rel (%p176) target = $region24
      $region23: #{image_vae_forward.13} parent=19 // pred_region
        %s179 = smul.u32 2, %s17
        %p180 = scmp.lt.s32.totalorder %s16, 3
        %s181 = scalar_select %p180, %s16, 3
        %p182 = scmp.lt.s32.totalorder %s179, 1
        %s183 = scalar_select %p182, %s179, 1
        %p184 = scmp.lt.s32.totalorder %s19, 0
        %s185 = scalar_select %p184, %s19, 0
        %s186 = sadd.s32 %s185, %s183
        %s187 = smul.addr %s181, 2
        %s188 = sadd.s32 %s186, %s187
        %s189 = smul.addr %s188, 4
        %s190 = scalar_lea.vmem %s0, %s189
        %s191 = smul.u32 2, %s17
      $region24: #{image_vae_forward.13} parent=19 // pred_fallthru
        _
      // Predicated region
      $region25: #{image_vae_forward.13} parent=19 // pred_check
        %p192 = pneg %p89
      $region26: #{image_vae_forward.13} parent=19 // pred_check_branch
        %194 = sbr.rel (%p192) target = $region28
      $region27: #{image_vae_forward.13} parent=19 // pred_region
        %s195 = smul.u32 16, %s19
        %p196 = scmp.lt.s32.totalorder %s16, 3
        %s197 = scalar_select %p196, %s16, 3
        %p198 = scmp.lt.s32.totalorder %s195, 15
        %s199 = scalar_select %p198, %s195, 15
        %p200 = scmp.lt.s32.totalorder %s18, 0
        %s201 = scalar_select %p200, %s18, 0
        %s202 = sadd.s32 %s201, %s199
        %s203 = smul.addr %s197, 16
        %s204 = sadd.s32 %s202, %s203
        %s205 = smul.addr %s204, 4
        %s206 = scalar_lea.vmem %s1, %s205
        %s207 = smul.u32 16, %s19
      $region28: #{image_vae_forward.13} parent=19 // pred_fallthru
        _
    $region20: #{image_vae_forward.13} parent=5 // pred_fallthru
      _
    %p208 = scmp.le.s32.totalorder 1, %s9
    %p209 = scmp.lt.s32.totalorder %s9, 5
    %p210 = pnand %p208, %p209
    %p211 = pneg %p210
    // Predicated region
    $region29: #{image_vae_forward.13} parent=5 // pred_check
      _
    $region30: #{image_vae_forward.13} parent=5 // pred_check_branch
      %213 = sbr.rel (%p210) target = $region32
    $region31: #{image_vae_forward.13} parent=5 // pred_region
      %s214 = ssub.s32 %s9, 1
      %s215 = smul.u32 2, %s21
      %p216 = scmp.lt.s32.totalorder %s20, 3
      %s217 = scalar_select %p216, %s20, 3
      %p218 = scmp.lt.s32.totalorder %s215, 1
      %s219 = scalar_select %p218, %s215, 1
      %p220 = scmp.lt.s32.totalorder %s23, 0
      %s221 = scalar_select %p220, %s23, 0
      %s222 = sadd.s32 %s221, %s219
      %s223 = smul.addr %s217, 2
      %s224 = sadd.s32 %s222, %s223
      %s225 = smul.addr %s224, 4
      %s226 = scalar_lea.vmem %s0, %s225
      %p227 = pneg %p65
      %p228 = pneg %p62
      %s229 = smul.u32 16, %s23
      %p230 = scmp.lt.s32.totalorder %s20, 3
      %s231 = scalar_select %p230, %s20, 3
      %p232 = scmp.lt.s32.totalorder %s229, 15
      %s233 = scalar_select %p232, %s229, 15
      %p234 = scmp.lt.s32.totalorder %s22, 0
      %s235 = scalar_select %p234, %s22, 0
      %s236 = sadd.s32 %s235, %s233
      %s237 = smul.addr %s231, 16
      %s238 = sadd.s32 %s236, %s237
      %s239 = smul.addr %s238, 4
      %s240 = scalar_lea.vmem %s1, %s239
      %p241 = pneg %p95
      %p242 = pneg %p92
      %p243 = scmp.lt.s32.totalorder %s22, 0
      %s244 = scalar_select %p243, %s22, 0
      %s245 = scalar_lea.vmem %s2, %s244
      %p246 = pneg %p121
      %p247 = pneg %p118
      %p248 = pneg %p151
      %p249 = pneg %p148
      %s250 = smul.u32 2, %s21
      %p251 = scmp.lt.s32.totalorder %s20, 3
      %s252 = scalar_select %p251, %s20, 3
      %p253 = scmp.lt.s32.totalorder %s250, 1
      %s254 = scalar_select %p253, %s250, 1
      %p255 = scmp.lt.s32.totalorder %s22, 0
      %s256 = scalar_select %p255, %s22, 0
      %s257 = sadd.s32 %s256, %s254
      %s258 = smul.addr %s252, 2
      %s259 = sadd.s32 %s257, %s258
      %s260 = smul.addr %s259, 4
      %s261 = scalar_lea.vmem %s3, %s260
      %s262 = smul.u32 2, %s21
      %p263 = scmp.lt.s32.totalorder %s20, 3
      %s264 = scalar_select %p263, %s20, 3
      %p265 = scmp.lt.s32.totalorder %s262, 1
      %s266 = scalar_select %p265, %s262, 1
      %p267 = scmp.lt.s32.totalorder %s23, 0
      %s268 = scalar_select %p267, %s23, 0
      %s269 = sadd.s32 %s268, %s266
      %s270 = smul.addr %s264, 2
      %s271 = sadd.s32 %s269, %s270
      %s272 = smul.addr %s271, 4
      %s273 = scalar_lea.vmem %s0, %s272
      %s274 = smul.u32 2, %s21
      %s275 = smul.u32 16, %s23
      %p276 = scmp.lt.s32.totalorder %s20, 3
      %s277 = scalar_select %p276, %s20, 3
      %p278 = scmp.lt.s32.totalorder %s275, 15
      %s279 = scalar_select %p278, %s275, 15
      %p280 = scmp.lt.s32.totalorder %s22, 0
      %s281 = scalar_select %p280, %s22, 0
      %s282 = sadd.s32 %s281, %s279
      %s283 = smul.addr %s277, 16
      %s284 = sadd.s32 %s282, %s283
      %s285 = smul.addr %s284, 4
      %s286 = scalar_lea.vmem %s1, %s285
      %s287 = smul.u32 16, %s23
      %p288 = scmp.lt.s32.totalorder %s22, 0
      %s289 = scalar_select %p288, %s22, 0
      %s290 = scalar_lea.vmem %s2, %s289
      %s291 = smul.u32 2, %s21
      %p292 = scmp.lt.s32.totalorder %s20, 3
      %s293 = scalar_select %p292, %s20, 3
      %p294 = scmp.lt.s32.totalorder %s291, 1
      %s295 = scalar_select %p294, %s291, 1
      %p296 = scmp.lt.s32.totalorder %s22, 0
      %s297 = scalar_select %p296, %s22, 0
      %s298 = sadd.s32 %s297, %s295
      %s299 = smul.addr %s293, 2
      %s300 = sadd.s32 %s298, %s299
      %s301 = smul.addr %s300, 4
      %s302 = scalar_lea.vmem %s3, %s301
      %s303 = smul.u32 2, %s21
      %p304 = scmp.eq.s32.totalorder %s23, 0
      // Predicated region
      $region33: #{image_vae_forward.13} parent=31 // pred_check
        %p305 = pneg %p304
      $region34: #{image_vae_forward.13} parent=31 // pred_check_branch
        %307 = sbr.rel (%p305) target = $region36
      $region35: #{image_vae_forward.13} parent=31 // pred_region
        %308 = vst [vmem:[#allocation2] sm:$0xff] 0.0
        %309 = vst [vmem:[#allocation2 + $0x8] sm:$0xff] 0.0
      $region36: #{image_vae_forward.13} parent=31 // pred_fallthru
        _
      %v310 = vld [vmem:[#allocation2] sm:$0xff]
      %v311 = vld [vmem:[#allocation2 + $0x8] sm:$0xff]
      %v312 = vld [vmem:[%s273] sm:$0xf]
      %v313 = vld [vmem:[%s273 + $0x4] sm:$0xf]
      %v314 = vld [vmem:[%s286] sm:$0xf]
      %v315 = vld [vmem:[%s286 + $0x4] sm:$0xf]
      %v316 = vld [vmem:[%s286 + $0x8] sm:$0xf]
      %v317 = vld [vmem:[%s286 + $0xc] sm:$0xf]
      %v318 = vld [vmem:[%s286 + $0x10] sm:$0xf]
      %v319 = vld [vmem:[%s286 + $0x14] sm:$0xf]
      %v320 = vld [vmem:[%s286 + $0x18] sm:$0xf]
      %v321 = vld [vmem:[%s286 + $0x1c] sm:$0xf]
      %v322 = vld [vmem:[%s286 + $0x20] sm:$0xf]
      %v323 = vld [vmem:[%s286 + $0x24] sm:$0xf]
      %v324 = vld [vmem:[%s286 + $0x28] sm:$0xf]
      %v325 = vld [vmem:[%s286 + $0x2c] sm:$0xf]
      %v326 = vld [vmem:[%s286 + $0x30] sm:$0xf]
      %v327 = vld [vmem:[%s286 + $0x34] sm:$0xf]
      %v328 = vld [vmem:[%s286 + $0x38] sm:$0xf]
      %v329 = vld [vmem:[%s286 + $0x3c] sm:$0xf]
      %v332 = vunpack.c.l.b16 %v312
      %v333 = vunpack.c.l.b16 %v313
      %v334 = vpack.c.b16 %v333, %v332
      %v352 = vunpack.c.l.b16 %v314
      %v353 = vunpack.c.l.b16 %v315
      %v354 = vunpack.c.l.b16 %v316
      %v355 = vunpack.c.l.b16 %v317
      %v356 = vunpack.c.l.b16 %v318
      %v357 = vunpack.c.l.b16 %v319
      %v358 = vunpack.c.l.b16 %v320
      %v359 = vunpack.c.l.b16 %v321
      %v360 = vunpack.c.l.b16 %v322
      %v361 = vunpack.c.l.b16 %v323
      %v362 = vunpack.c.l.b16 %v324
      %v363 = vunpack.c.l.b16 %v325
      %v364 = vunpack.c.l.b16 %v326
      %v365 = vunpack.c.l.b16 %v327
      %v366 = vunpack.c.l.b16 %v328
      %v367 = vunpack.c.l.b16 %v329
      %v368 = vpack.c.b16 %v353, %v352
      %v369 = vpack.c.b16 %v355, %v354
      %v370 = vpack.c.b16 %v357, %v356
      %v371 = vpack.c.b16 %v359, %v358
      %v372 = vpack.c.b16 %v361, %v360
      %v373 = vpack.c.b16 %v363, %v362
      %v374 = vpack.c.b16 %v365, %v364
      %v375 = vpack.c.b16 %v367, %v366
      %384 = vmatpush.bf16.msra.mxu0 %v375
      %385 = vmatpush.bf16.msra.mxu0 %v374
      %386 = vmatpush.bf16.msra.mxu0 %v373
      %387 = vmatpush.bf16.msra.mxu0 %v372
      %388 = vmatpush.bf16.msra.mxu0 %v371
      %389 = vmatpush.bf16.msra.mxu0 %v370
      %390 = vmatpush.bf16.msra.mxu0 %v369
      %391 = vmatpush.bf16.msra.mxu0 %v368
      %392 = vmatmul.bf16.gmra.mxu0 %v334
      %v393 = vpop.f32.mrf.mxu0
      %v394 = vadd.f32 0.0, %v393
      %v395 = vpop.f32.mrf.mxu0
      %v396 = vadd.f32 0.0, %v395
      %397 = vdwg.mxu0
      %v398 = vadd.f32 %v310, %v394
      %v399 = vadd.f32 %v311, %v396
      %400 = vst [vmem:[#allocation2] sm:$0xff] %v398
      %401 = vst [vmem:[#allocation2 + $0x8] sm:$0xff] %v399
      // Predicated region
      $region37: #{image_vae_forward.13} parent=31 // pred_check
        %p402 = pneg %p304
      $region38: #{image_vae_forward.13} parent=31 // pred_check_branch
        %404 = sbr.rel (%p402) target = $region40
      $region39: #{image_vae_forward.13} parent=31 // pred_region
        %v405 = vld [vmem:[#allocation2] sm:$0xff]
        %v406 = vld [vmem:[#allocation2 + $0x8] sm:$0xff]
        %v407 = vld [vmem:[%s290] sm:$0x1]
        %v409 = vperm.slane %v407, 0
        %v411 = vadd.f32 %v405, %v409
        %v412 = vadd.f32 %v406, %v409
        %v413 = vmax.f32 %v411, 0.0
        %v414 = vmax.f32 %v412, 0.0
        %v415 = vpack.c.bf16 %v413, %v413
        %v416 = vpack.c.bf16 %v414, %v414
        %417 = vst [vmem:[%s302] sm:$0xf] %v415
        %418 = vst [vmem:[%s302 + $0x4] sm:$0xf] %v416
      $region40: #{image_vae_forward.13} parent=31 // pred_fallthru
        _
      %s419 = smul.u32 2, %s21
      %p420 = scmp.lt.s32.totalorder %s20, 3
      %s421 = scalar_select %p420, %s20, 3
      %p422 = scmp.lt.s32.totalorder %s419, 1
      %s423 = scalar_select %p422, %s419, 1
      %p424 = scmp.lt.s32.totalorder %s22, 0
      %s425 = scalar_select %p424, %s22, 0
      %s426 = sadd.s32 %s425, %s423
      %s427 = smul.addr %s421, 2
      %s428 = sadd.s32 %s426, %s427
      %s429 = smul.addr %s428, 4
      %s430 = scalar_lea.vmem %s3, %s429
      // Predicated region
      $region41: #{image_vae_forward.13} parent=31 // pred_check
        %p431 = pneg %p148
      $region42: #{image_vae_forward.13} parent=31 // pred_check_branch
        %433 = sbr.rel (%p431) target = $region44
      $region43: #{image_vae_forward.13} parent=31 // pred_region
        %s434 = smul.u32 2, %s21
      $region44: #{image_vae_forward.13} parent=31 // pred_fallthru
        _
    $region32: #{image_vae_forward.13} parent=5 // pred_fallthru
      _
    %p435 = scmp.le.s32.totalorder 2, %s9
    // Predicated region
    $region45: #{image_vae_forward.13} parent=5 // pred_check
      %p436 = pneg %p435
    $region46: #{image_vae_forward.13} parent=5 // pred_check_branch
      %438 = sbr.rel (%p436) target = $region48
    $region47: #{image_vae_forward.13} parent=5 // pred_region
      %s439 = ssub.s32 %s9, 2
      // Predicated region
      $region49: #{image_vae_forward.13} parent=47 // pred_check
        %p440 = pneg %p154
      $region50: #{image_vae_forward.13} parent=47 // pred_check_branch
        %442 = sbr.rel (%p440) target = $region52
      $region51: #{image_vae_forward.13} parent=47 // pred_region
        %s443 = smul.u32 2, %s25
        %p444 = scmp.lt.s32.totalorder %s24, 3
        %s445 = scalar_select %p444, %s24, 3
        %p446 = scmp.lt.s32.totalorder %s443, 1
        %s447 = scalar_select %p446, %s443, 1
        %p448 = scmp.lt.s32.totalorder %s26, 0
        %s449 = scalar_select %p448, %s26, 0
        %s450 = sadd.s32 %s449, %s447
        %s451 = smul.addr %s445, 2
        %s452 = sadd.s32 %s450, %s451
        %s453 = smul.addr %s452, 4
        %s454 = scalar_lea.vmem %s3, %s453
      $region52: #{image_vae_forward.13} parent=47 // pred_fallthru
        _
    $region48: #{image_vae_forward.13} parent=5 // pred_fallthru
      _
  $region6: #{image_vae_forward.13} parent=0 // loop_footer
    %s13 = sadd.s32 1, %s9
  $region7: #{image_vae_forward.13} parent=0 // loop_footer_branch
    %8 = sbr.rel target = $region3
  $region8: #{image_vae_forward.13} parent=0 // loop_exit
    _

// kernel: image_vae_forward.14
$region0: #{image_vae_forward.14}
  #allocation0 [shape = 'u32[]', space=smem, size = 0x4, offset = 0x4, fixed_abs, tag = 'smem constant byte address 0x4 - core index']
  #allocation1 [shape = 'u32[72,128]{1,0:T(1,128)}', space=vmem, size = 0x9000, scoped, tag = 'internal scratch']
  #allocation2 [shape = 'f32[32,128]{1,0:T(8,128)}', space=vmem, size = 0x4000, scoped, tag = 'scratch operand']
  %s0 = inlined_call_operand.vmem [shape: bf16[4,32,128], index: 0, kind: input, shape index: {}]
  %s1 = inlined_call_operand.vmem [shape: bf16[4,128,128], index: 1, kind: input, shape index: {}]
  %s2 = inlined_call_operand.vmem [shape: f32[1,128], index: 2, kind: input, shape index: {}]
  %s3 = inlined_call_operand.vmem [shape: bf16[4,32,128], index: 3, kind: output, shape index: {}]
  %s4 = sld [smem:[#allocation0]]
  $region53: #{image_vae_forward.14} parent=0
    _
  %s6 = ssub.s32 1, %s4
  %s7 = scalar_select 0, %s6, %s4
  loop: start=0, step=1, limit=6
  $region2: #{image_vae_forward.14} parent=0 // loop_pre_header
    _
  $region3: #{image_vae_forward.14} parent=0 // loop_header
    %s9 = sphi 0, %s13
    %p10 = scmp.ge.s32.totalorder %s9, 6
    %s16 = sphi 0, %s42
    %s17 = sphi 0, %s38
    %s18 = sphi 0, %s34
    %s19 = sphi 0, %s30
    %s20 = sphi 0, %s16
    %s21 = sphi 0, %s17
    %s22 = sphi 0, %s18
    %s23 = sphi 0, %s19
    %s24 = sphi 0, %s20
    %s25 = sphi 0, %s21
    %s26 = sphi 0, %s22
    %s27 = sphi 0, %s23
    %s49 = sphi 0, %s51
    %s52 = sphi 0, %s49
    %s53 = sphi 0, %s52
    %s69 = sphi 0, %s53
    %s79 = sphi 0, %s81
    %s82 = sphi 0, %s79
    %s83 = sphi 0, %s82
    %s99 = sphi 0, %s83
    %s105 = sphi 0, %s107
    %s108 = sphi 0, %s105
    %s109 = sphi 0, %s108
    %s125 = sphi 0, %s109
    %s135 = sphi 0, %s137
    %s138 = sphi 0, %s135
    %s139 = sphi 0, %s138
    %s155 = sphi 0, %s139
  $region4: #{image_vae_forward.14} parent=0 // loop_header_branch
    %12 = sbr.rel (%p10) target = $region8
  $region5: #{image_vae_forward.14} parent=0 // loop_body
    %s14 = ssub.s32 %s9, 1
    %s15 = ssub.s32 %s9, 2
    %s28 = sadd.s32 1, %s19
    %p29 = scmp.ge.s32.totalorder %s28, 1
    %s30 = scalar_select %p29, 0, %s28
    %s31 = sadd.s32 1, %s18
    %s32 = scalar_select %p29, %s31, %s18
    %p33 = scmp.ge.s32.totalorder %s32, 1
    %s34 = scalar_select %p33, 0, %s32
    %s35 = sadd.s32 1, %s17
    %s36 = scalar_select %p33, %s35, %s17
    %p37 = scmp.ge.s32.totalorder %s36, 1
    %s38 = scalar_select %p37, 0, %s36
    %s39 = sadd.s32 1, %s16
    %s40 = scalar_select %p37, %s39, %s16
    %p41 = scmp.ge.s32.totalorder %s40, 4
    %s42 = scalar_select %p41, 0, %s40
    %s43 = ssub.s32 %s16, %s42
    %s44 = ssub.s32 %s17, %s38
    %s45 = sor.u32 %s43, %s44
    %s46 = ssub.s32 %s19, %s30
    %s47 = sor.u32 %s45, %s46
    %p48 = scmp.eq.s32.totalorder %s47, 0
    %s50 = sadd.s32 %s49, 1
    %s51 = scalar_select %p48, %s49, %s50
    %p54 = pneg %p48
    %p55 = scmp.eq.s32.totalorder %s9, 3
    %p56 = por %p54, %p55
    %p57 = scmp.ne.s32.totalorder %s49, %s52
    %p58 = scmp.eq.s32.totalorder %s9, 0
    %p59 = por %p57, %p58
    %p60 = scmp.ne.s32.totalorder %s49, %s52
    %p61 = scmp.eq.s32.totalorder %s14, 3
    %p62 = por %p60, %p61
    %p63 = scmp.ne.s32.totalorder %s52, %s53
    %p64 = scmp.eq.s32.totalorder %s14, 0
    %p65 = por %p63, %p64
    %p66 = scmp.ne.s32.totalorder %s52, %s53
    %p67 = scmp.eq.s32.totalorder %s15, 3
    %p68 = por %p66, %p67
    %p70 = scmp.ne.s32.totalorder %s53, %s69
    %p71 = scmp.eq.s32.totalorder %s15, 0
    %p72 = por %p70, %p71
    %s73 = ssub.s32 %s16, %s42
    %s74 = ssub.s32 %s19, %s30
    %s75 = sor.u32 %s73, %s74
    %s76 = ssub.s32 %s18, %s34
    %s77 = sor.u32 %s75, %s76
    %p78 = scmp.eq.s32.totalorder %s77, 0
    %s80 = sadd.s32 %s79, 1
    %s81 = scalar_select %p78, %s79, %s80
    %p84 = pneg %p78
    %p85 = scmp.eq.s32.totalorder %s9, 3
    %p86 = por %p84, %p85
    %p87 = scmp.ne.s32.totalorder %s79, %s82
    %p88 = scmp.eq.s32.totalorder %s9, 0
    %p89 = por %p87, %p88
    %p90 = scmp.ne.s32.totalorder %s79, %s82
    %p91 = scmp.eq.s32.totalorder %s14, 3
    %p92 = por %p90, %p91
    %p93 = scmp.ne.s32.totalorder %s82, %s83
    %p94 = scmp.eq.s32.totalorder %s14, 0
    %p95 = por %p93, %p94
    %p96 = scmp.ne.s32.totalorder %s82, %s83
    %p97 = scmp.eq.s32.totalorder %s15, 3
    %p98 = por %p96, %p97
    %p100 = scmp.ne.s32.totalorder %s83, %s99
    %p101 = scmp.eq.s32.totalorder %s15, 0
    %p102 = por %p100, %p101
    %s103 = ssub.s32 %s18, %s34
    %p104 = scmp.eq.s32.totalorder %s103, 0
    %s106 = sadd.s32 %s105, 1
    %s107 = scalar_select %p104, %s105, %s106
    %p110 = pneg %p104
    %p111 = scmp.eq.s32.totalorder %s9, 3
    %p112 = por %p110, %p111
    %p113 = scmp.ne.s32.totalorder %s105, %s108
    %p114 = scmp.eq.s32.totalorder %s9, 0
    %p115 = por %p113, %p114
    %p116 = scmp.ne.s32.totalorder %s105, %s108
    %p117 = scmp.eq.s32.totalorder %s14, 3
    %p118 = por %p116, %p117
    %p119 = scmp.ne.s32.totalorder %s108, %s109
    %p120 = scmp.eq.s32.totalorder %s14, 0
    %p121 = por %p119, %p120
    %p122 = scmp.ne.s32.totalorder %s108, %s109
    %p123 = scmp.eq.s32.totalorder %s15, 3
    %p124 = por %p122, %p123
    %p126 = scmp.ne.s32.totalorder %s109, %s125
    %p127 = scmp.eq.s32.totalorder %s15, 0
    %p128 = por %p126, %p127
    %s129 = ssub.s32 %s16, %s42
    %s130 = ssub.s32 %s17, %s38
    %s131 = sor.u32 %s129, %s130
    %s132 = ssub.s32 %s18, %s34
    %s133 = sor.u32 %s131, %s132
    %p134 = scmp.eq.s32.totalorder %s133, 0
    %s136 = sadd.s32 %s135, 1
    %s137 = scalar_select %p134, %s135, %s136
    %p140 = pneg %p134
    %p141 = scmp.eq.s32.totalorder %s9, 3
    %p142 = por %p140, %p141
    %p143 = scmp.ne.s32.totalorder %s135, %s138
    %p144 = scmp.eq.s32.totalorder %s9, 0
    %p145 = por %p143, %p144
    %p146 = scmp.ne.s32.totalorder %s135, %s138
    %p147 = scmp.eq.s32.totalorder %s14, 3
    %p148 = por %p146, %p147
    %p149 = scmp.ne.s32.totalorder %s138, %s139
    %p150 = scmp.eq.s32.totalorder %s14, 0
    %p151 = por %p149, %p150
    %p152 = scmp.ne.s32.totalorder %s138, %s139
    %p153 = scmp.eq.s32.totalorder %s15, 3
    %p154 = por %p152, %p153
    %p156 = scmp.ne.s32.totalorder %s139, %s155
    %p157 = scmp.eq.s32.totalorder %s15, 0
    %p158 = por %p156, %p157
    %p159 = scmp.le.s32.totalorder 1, %s9
    %p160 = scmp.lt.s32.totalorder %s9, 5
    %p161 = pnand %p159, %p160
    %p162 = pneg %p161
    // Predicated region
    $region9: #{image_vae_forward.14} parent=5 // pred_check
      _
    $region10: #{image_vae_forward.14} parent=5 // pred_check_branch
      %164 = sbr.rel (%p161) target = $region12
    $region11: #{image_vae_forward.14} parent=5 // pred_region
      %s165 = ssub.s32 %s9, 1
      // Predicated region
      $region13: #{image_vae_forward.14} parent=11 // pred_check
        %p166 = pneg %p121
      $region14: #{image_vae_forward.14} parent=11 // pred_check_branch
        %168 = sbr.rel (%p166) target = $region16
      $region15: #{image_vae_forward.14} parent=11 // pred_region
        %p169 = scmp.lt.s32.totalorder %s22, 0
        %s170 = scalar_select %p169, %s22, 0
        %s171 = scalar_lea.vmem %s2, %s170
      $region16: #{image_vae_forward.14} parent=11 // pred_fallthru
        _
    $region12: #{image_vae_forward.14} parent=5 // pred_fallthru
      _
    %p172 = scmp.lt.s32.totalorder %s9, 4
    // Predicated region
    $region17: #{image_vae_forward.14} parent=5 // pred_check
      %p173 = pneg %p172
    $region18: #{image_vae_forward.14} parent=5 // pred_check_branch
      %175 = sbr.rel (%p173) target = $region20
    $region19: #{image_vae_forward.14} parent=5 // pred_region
      // Predicated region
      $region21: #{image_vae_forward.14} parent=19 // pred_check
        %p176 = pneg %p59
      $region22: #{image_vae_forward.14} parent=19 // pred_check_branch
        %178 = sbr.rel (%p176) target = $region24
      $region23: #{image_vae_forward.14} parent=19 // pred_region
        %s179 = smul.u32 4, %s17
        %p180 = scmp.lt.s32.totalorder %s16, 3
        %s181 = scalar_select %p180, %s16, 3
        %p182 = scmp.lt.s32.totalorder %s179, 3
        %s183 = scalar_select %p182, %s179, 3
        %p184 = scmp.lt.s32.totalorder %s19, 0
        %s185 = scalar_select %p184, %s19, 0
        %s186 = sadd.s32 %s185, %s183
        %s187 = smul.addr %s181, 4
        %s188 = sadd.s32 %s186, %s187
        %s189 = smul.addr %s188, 4
        %s190 = scalar_lea.vmem %s0, %s189
        %s191 = smul.u32 4, %s17
      $region24: #{image_vae_forward.14} parent=19 // pred_fallthru
        _
      // Predicated region
      $region25: #{image_vae_forward.14} parent=19 // pred_check
        %p192 = pneg %p89
      $region26: #{image_vae_forward.14} parent=19 // pred_check_branch
        %194 = sbr.rel (%p192) target = $region28
      $region27: #{image_vae_forward.14} parent=19 // pred_region
        %s195 = smul.u32 16, %s19
        %p196 = scmp.lt.s32.totalorder %s16, 3
        %s197 = scalar_select %p196, %s16, 3
        %p198 = scmp.lt.s32.totalorder %s195, 15
        %s199 = scalar_select %p198, %s195, 15
        %p200 = scmp.lt.s32.totalorder %s18, 0
        %s201 = scalar_select %p200, %s18, 0
        %s202 = sadd.s32 %s201, %s199
        %s203 = smul.addr %s197, 16
        %s204 = sadd.s32 %s202, %s203
        %s205 = smul.addr %s204, 4
        %s206 = scalar_lea.vmem %s1, %s205
        %s207 = smul.u32 16, %s19
      $region28: #{image_vae_forward.14} parent=19 // pred_fallthru
        _
    $region20: #{image_vae_forward.14} parent=5 // pred_fallthru
      _
    %p208 = scmp.le.s32.totalorder 1, %s9
    %p209 = scmp.lt.s32.totalorder %s9, 5
    %p210 = pnand %p208, %p209
    %p211 = pneg %p210
    // Predicated region
    $region29: #{image_vae_forward.14} parent=5 // pred_check
      _
    $region30: #{image_vae_forward.14} parent=5 // pred_check_branch
      %213 = sbr.rel (%p210) target = $region32
    $region31: #{image_vae_forward.14} parent=5 // pred_region
      %s214 = ssub.s32 %s9, 1
      %s215 = smul.u32 4, %s21
      %p216 = scmp.lt.s32.totalorder %s20, 3
      %s217 = scalar_select %p216, %s20, 3
      %p218 = scmp.lt.s32.totalorder %s215, 3
      %s219 = scalar_select %p218, %s215, 3
      %p220 = scmp.lt.s32.totalorder %s23, 0
      %s221 = scalar_select %p220, %s23, 0
      %s222 = sadd.s32 %s221, %s219
      %s223 = smul.addr %s217, 4
      %s224 = sadd.s32 %s222, %s223
      %s225 = smul.addr %s224, 4
      %s226 = scalar_lea.vmem %s0, %s225
      %p227 = pneg %p65
      %p228 = pneg %p62
      %s229 = smul.u32 16, %s23
      %p230 = scmp.lt.s32.totalorder %s20, 3
      %s231 = scalar_select %p230, %s20, 3
      %p232 = scmp.lt.s32.totalorder %s229, 15
      %s233 = scalar_select %p232, %s229, 15
      %p234 = scmp.lt.s32.totalorder %s22, 0
      %s235 = scalar_select %p234, %s22, 0
      %s236 = sadd.s32 %s235, %s233
      %s237 = smul.addr %s231, 16
      %s238 = sadd.s32 %s236, %s237
      %s239 = smul.addr %s238, 4
      %s240 = scalar_lea.vmem %s1, %s239
      %p241 = pneg %p95
      %p242 = pneg %p92
      %p243 = scmp.lt.s32.totalorder %s22, 0
      %s244 = scalar_select %p243, %s22, 0
      %s245 = scalar_lea.vmem %s2, %s244
      %p246 = pneg %p121
      %p247 = pneg %p118
      %p248 = pneg %p151
      %p249 = pneg %p148
      %s250 = smul.u32 4, %s21
      %p251 = scmp.lt.s32.totalorder %s20, 3
      %s252 = scalar_select %p251, %s20, 3
      %p253 = scmp.lt.s32.totalorder %s250, 3
      %s254 = scalar_select %p253, %s250, 3
      %p255 = scmp.lt.s32.totalorder %s22, 0
      %s256 = scalar_select %p255, %s22, 0
      %s257 = sadd.s32 %s256, %s254
      %s258 = smul.addr %s252, 4
      %s259 = sadd.s32 %s257, %s258
      %s260 = smul.addr %s259, 4
      %s261 = scalar_lea.vmem %s3, %s260
      %s262 = smul.u32 4, %s21
      %p263 = scmp.lt.s32.totalorder %s20, 3
      %s264 = scalar_select %p263, %s20, 3
      %p265 = scmp.lt.s32.totalorder %s262, 3
      %s266 = scalar_select %p265, %s262, 3
      %p267 = scmp.lt.s32.totalorder %s23, 0
      %s268 = scalar_select %p267, %s23, 0
      %s269 = sadd.s32 %s268, %s266
      %s270 = smul.addr %s264, 4
      %s271 = sadd.s32 %s269, %s270
      %s272 = smul.addr %s271, 4
      %s273 = scalar_lea.vmem %s0, %s272
      %s274 = smul.u32 4, %s21
      %s275 = smul.u32 16, %s23
      %p276 = scmp.lt.s32.totalorder %s20, 3
      %s277 = scalar_select %p276, %s20, 3
      %p278 = scmp.lt.s32.totalorder %s275, 15
      %s279 = scalar_select %p278, %s275, 15
      %p280 = scmp.lt.s32.totalorder %s22, 0
      %s281 = scalar_select %p280, %s22, 0
      %s282 = sadd.s32 %s281, %s279
      %s283 = smul.addr %s277, 16
      %s284 = sadd.s32 %s282, %s283
      %s285 = smul.addr %s284, 4
      %s286 = scalar_lea.vmem %s1, %s285
      %s287 = smul.u32 16, %s23
      %p288 = scmp.lt.s32.totalorder %s22, 0
      %s289 = scalar_select %p288, %s22, 0
      %s290 = scalar_lea.vmem %s2, %s289
      %s291 = smul.u32 4, %s21
      %p292 = scmp.lt.s32.totalorder %s20, 3
      %s293 = scalar_select %p292, %s20, 3
      %p294 = scmp.lt.s32.totalorder %s291, 3
      %s295 = scalar_select %p294, %s291, 3
      %p296 = scmp.lt.s32.totalorder %s22, 0
      %s297 = scalar_select %p296, %s22, 0
      %s298 = sadd.s32 %s297, %s295
      %s299 = smul.addr %s293, 4
      %s300 = sadd.s32 %s298, %s299
      %s301 = smul.addr %s300, 4
      %s302 = scalar_lea.vmem %s3, %s301
      %s303 = smul.u32 4, %s21
      %p304 = scmp.eq.s32.totalorder %s23, 0
      // Predicated region
      $region33: #{image_vae_forward.14} parent=31 // pred_check
        %p305 = pneg %p304
      $region34: #{image_vae_forward.14} parent=31 // pred_check_branch
        %307 = sbr.rel (%p305) target = $region36
      $region35: #{image_vae_forward.14} parent=31 // pred_region
        %308 = vst [vmem:[#allocation2] sm:$0xff] 0.0
        %309 = vst [vmem:[#allocation2 + $0x8] sm:$0xff] 0.0
        %310 = vst [vmem:[#allocation2 + $0x10] sm:$0xff] 0.0
        %311 = vst [vmem:[#allocation2 + $0x18] sm:$0xff] 0.0
      $region36: #{image_vae_forward.14} parent=31 // pred_fallthru
        _
      %v312 = vld [vmem:[#allocation2] sm:$0xff]
      %v313 = vld [vmem:[#allocation2 + $0x8] sm:$0xff]
      %v314 = vld [vmem:[#allocation2 + $0x10] sm:$0xff]
      %v315 = vld [vmem:[#allocation2 + $0x18] sm:$0xff]
      %v316 = vld [vmem:[%s273] sm:$0xf]
      %v317 = vld [vmem:[%s273 + $0x4] sm:$0xf]
      %v318 = vld [vmem:[%s273 + $0x8] sm:$0xf]
      %v319 = vld [vmem:[%s273 + $0xc] sm:$0xf]
      %v320 = vld [vmem:[%s286] sm:$0xf]
      %v321 = vld [vmem:[%s286 + $0x4] sm:$0xf]
      %v322 = vld [vmem:[%s286 + $0x8] sm:$0xf]
      %v323 = vld [vmem:[%s286 + $0xc] sm:$0xf]
      %v324 = vld [vmem:[%s286 + $0x10] sm:$0xf]
      %v325 = vld [vmem:[%s286 + $0x14] sm:$0xf]
      %v326 = vld [vmem:[%s286 + $0x18] sm:$0xf]
      %v327 = vld [vmem:[%s286 + $0x1c] sm:$0xf]
      %v328 = vld [vmem:[%s286 + $0x20] sm:$0xf]
      %v329 = vld [vmem:[%s286 + $0x24] sm:$0xf]
      %v330 = vld [vmem:[%s286 + $0x28] sm:$0xf]
      %v331 = vld [vmem:[%s286 + $0x2c] sm:$0xf]
      %v332 = vld [vmem:[%s286 + $0x30] sm:$0xf]
      %v333 = vld [vmem:[%s286 + $0x34] sm:$0xf]
      %v334 = vld [vmem:[%s286 + $0x38] sm:$0xf]
      %v335 = vld [vmem:[%s286 + $0x3c] sm:$0xf]
      %v340 = vunpack.c.l.b16 %v316
      %v341 = vunpack.c.l.b16 %v317
      %v342 = vunpack.c.l.b16 %v318
      %v343 = vunpack.c.l.b16 %v319
      %v344 = vpack.c.b16 %v341, %v340
      %v345 = vpack.c.b16 %v343, %v342
      %v364 = vunpack.c.l.b16 %v320
      %v365 = vunpack.c.l.b16 %v321
      %v366 = vunpack.c.l.b16 %v322
      %v367 = vunpack.c.l.b16 %v323
      %v368 = vunpack.c.l.b16 %v324
      %v369 = vunpack.c.l.b16 %v325
      %v370 = vunpack.c.l.b16 %v326
      %v371 = vunpack.c.l.b16 %v327
      %v372 = vunpack.c.l.b16 %v328
      %v373 = vunpack.c.l.b16 %v329
      %v374 = vunpack.c.l.b16 %v330
      %v375 = vunpack.c.l.b16 %v331
      %v376 = vunpack.c.l.b16 %v332
      %v377 = vunpack.c.l.b16 %v333
      %v378 = vunpack.c.l.b16 %v334
      %v379 = vunpack.c.l.b16 %v335
      %v380 = vpack.c.b16 %v365, %v364
      %v381 = vpack.c.b16 %v367, %v366
      %v382 = vpack.c.b16 %v369, %v368
      %v383 = vpack.c.b16 %v371, %v370
      %v384 = vpack.c.b16 %v373, %v372
      %v385 = vpack.c.b16 %v375, %v374
      %v386 = vpack.c.b16 %v377, %v376
      %v387 = vpack.c.b16 %v379, %v378
      %396 = vmatpush.bf16.msra.mxu0 %v387
      %397 = vmatpush.bf16.msra.mxu0 %v386
      %398 = vmatpush.bf16.msra.mxu0 %v385
      %399 = vmatpush.bf16.msra.mxu0 %v384
      %400 = vmatpush.bf16.msra.mxu0 %v383
      %401 = vmatpush.bf16.msra.mxu0 %v382
      %402 = vmatpush.bf16.msra.mxu0 %v381
      %403 = vmatpush.bf16.msra.mxu0 %v380
      %404 = vmatmul.bf16.gmra.mxu0 %v344
      %v405 = vpop.f32.mrf.mxu0
      %v406 = vadd.f32 0.0, %v405
      %v407 = vpop.f32.mrf.mxu0
      %v408 = vadd.f32 0.0, %v407
      %409 = vmatmul.bf16.gmra.mxu0 %v345
      %v410 = vpop.f32.mrf.mxu0
      %v411 = vadd.f32 0.0, %v410
      %v412 = vpop.f32.mrf.mxu0
      %v413 = vadd.f32 0.0, %v412
      %414 = vdwg.mxu0
      %v415 = vadd.f32 %v312, %v406
      %v416 = vadd.f32 %v313, %v408
      %v417 = vadd.f32 %v314, %v411
      %v418 = vadd.f32 %v315, %v413
      %419 = vst [vmem:[#allocation2] sm:$0xff] %v415
      %420 = vst [vmem:[#allocation2 + $0x8] sm:$0xff] %v416
      %421 = vst [vmem:[#allocation2 + $0x10] sm:$0xff] %v417
      %422 = vst [vmem:[#allocation2 + $0x18] sm:$0xff] %v418
      // Predicated region
      $region37: #{image_vae_forward.14} parent=31 // pred_check
        %p423 = pneg %p304
      $region38: #{image_vae_forward.14} parent=31 // pred_check_branch
        %425 = sbr.rel (%p423) target = $region40
      $region39: #{image_vae_forward.14} parent=31 // pred_region
        %v426 = vld [vmem:[#allocation2] sm:$0xff]
        %v427 = vld [vmem:[#allocation2 + $0x8] sm:$0xff]
        %v428 = vld [vmem:[#allocation2 + $0x10] sm:$0xff]
        %v429 = vld [vmem:[#allocation2 + $0x18] sm:$0xff]
        %v430 = vld [vmem:[%s290] sm:$0x1]
        %v432 = vperm.slane %v430, 0
        %v434 = vadd.f32 %v426, %v432
        %v435 = vadd.f32 %v427, %v432
        %v436 = vadd.f32 %v428, %v432
        %v437 = vadd.f32 %v429, %v432
        %v438 = vmax.f32 %v434, 0.0
        %v439 = vmax.f32 %v435, 0.0
        %v440 = vmax.f32 %v436, 0.0
        %v441 = vmax.f32 %v437, 0.0
        %v442 = vpack.c.bf16 %v438, %v438
        %v443 = vpack.c.bf16 %v439, %v439
        %v444 = vpack.c.bf16 %v440, %v440
        %v445 = vpack.c.bf16 %v441, %v441
        %446 = vst [vmem:[%s302] sm:$0xf] %v442
        %447 = vst [vmem:[%s302 + $0x4] sm:$0xf] %v443
        %448 = vst [vmem:[%s302 + $0x8] sm:$0xf] %v444
        %449 = vst [vmem:[%s302 + $0xc] sm:$0xf] %v445
      $region40: #{image_vae_forward.14} parent=31 // pred_fallthru
        _
      %s450 = smul.u32 4, %s21
      %p451 = scmp.lt.s32.totalorder %s20, 3
      %s452 = scalar_select %p451, %s20, 3
      %p453 = scmp.lt.s32.totalorder %s450, 3
      %s454 = scalar_select %p453, %s450, 3
      %p455 = scmp.lt.s32.totalorder %s22, 0
      %s456 = scalar_select %p455, %s22, 0
      %s457 = sadd.s32 %s456, %s454
      %s458 = smul.addr %s452, 4
      %s459 = sadd.s32 %s457, %s458
      %s460 = smul.addr %s459, 4
      %s461 = scalar_lea.vmem %s3, %s460
      // Predicated region
      $region41: #{image_vae_forward.14} parent=31 // pred_check
        %p462 = pneg %p148
      $region42: #{image_vae_forward.14} parent=31 // pred_check_branch
        %464 = sbr.rel (%p462) target = $region44
      $region43: #{image_vae_forward.14} parent=31 // pred_region
        %s465 = smul.u32 4, %s21
      $region44: #{image_vae_forward.14} parent=31 // pred_fallthru
        _
    $region32: #{image_vae_forward.14} parent=5 // pred_fallthru
      _
    %p466 = scmp.le.s32.totalorder 2, %s9
    // Predicated region
    $region45: #{image_vae_forward.14} parent=5 // pred_check
      %p467 = pneg %p466
    $region46: #{image_vae_forward.14} parent=5 // pred_check_branch
      %469 = sbr.rel (%p467) target = $region48
    $region47: #{image_vae_forward.14} parent=5 // pred_region
      %s470 = ssub.s32 %s9, 2
      // Predicated region
      $region49: #{image_vae_forward.14} parent=47 // pred_check
        %p471 = pneg %p154
      $region50: #{image_vae_forward.14} parent=47 // pred_check_branch
        %473 = sbr.rel (%p471) target = $region52
      $region51: #{image_vae_forward.14} parent=47 // pred_region
        %s474 = smul.u32 4, %s25
        %p475 = scmp.lt.s32.totalorder %s24, 3
        %s476 = scalar_select %p475, %s24, 3
        %p477 = scmp.lt.s32.totalorder %s474, 3
        %s478 = scalar_select %p477, %s474, 3
        %p479 = scmp.lt.s32.totalorder %s26, 0
        %s480 = scalar_select %p479, %s26, 0
        %s481 = sadd.s32 %s480, %s478
        %s482 = smul.addr %s476, 4
        %s483 = sadd.s32 %s481, %s482
        %s484 = smul.addr %s483, 4
        %s485 = scalar_lea.vmem %s3, %s484
      $region52: #{image_vae_forward.14} parent=47 // pred_fallthru
        _
    $region48: #{image_vae_forward.14} parent=5 // pred_fallthru
      _
  $region6: #{image_vae_forward.14} parent=0 // loop_footer
    %s13 = sadd.s32 1, %s9
  $region7: #{image_vae_forward.14} parent=0 // loop_footer_branch
    %8 = sbr.rel target = $region3
  $region8: #{image_vae_forward.14} parent=0 // loop_exit
    _

// kernel: image_vae_forward.15
$region0: #{image_vae_forward.15}
  #allocation0 [shape = 'u32[]', space=smem, size = 0x4, offset = 0x4, fixed_abs, tag = 'smem constant byte address 0x4 - core index']
  #allocation1 [shape = 'u32[72,128]{1,0:T(1,128)}', space=vmem, size = 0x9000, scoped, tag = 'internal scratch']
  #allocation2 [shape = 'f32[128,128]{1,0:T(8,128)}', space=vmem, size = 0x10000, scoped, tag = 'scratch operand']
  %s0 = inlined_call_operand.vmem [shape: bf16[4,128,128], index: 0, kind: input, shape index: {}]
  %s1 = inlined_call_operand.vmem [shape: bf16[4,128,128], index: 1, kind: input, shape index: {}]
  %s2 = inlined_call_operand.vmem [shape: f32[1,128], index: 2, kind: input, shape index: {}]
  %s3 = inlined_call_operand.vmem [shape: f32[4,128,128], index: 3, kind: output, shape index: {}]
  %s4 = sld [smem:[#allocation0]]
  $region53: #{image_vae_forward.15} parent=0
    _
  %s6 = ssub.s32 1, %s4
  %s7 = scalar_select 0, %s6, %s4
  loop: start=0, step=1, limit=6
  $region2: #{image_vae_forward.15} parent=0 // loop_pre_header
    _
  $region3: #{image_vae_forward.15} parent=0 // loop_header
    %s9 = sphi 0, %s13
    %p10 = scmp.ge.s32.totalorder %s9, 6
    %s16 = sphi 0, %s42
    %s17 = sphi 0, %s38
    %s18 = sphi 0, %s34
    %s19 = sphi 0, %s30
    %s20 = sphi 0, %s16
    %s21 = sphi 0, %s17
    %s22 = sphi 0, %s18
    %s23 = sphi 0, %s19
    %s24 = sphi 0, %s20
    %s25 = sphi 0, %s21
    %s26 = sphi 0, %s22
    %s27 = sphi 0, %s23
    %s49 = sphi 0, %s51
    %s52 = sphi 0, %s49
    %s53 = sphi 0, %s52
    %s69 = sphi 0, %s53
    %s79 = sphi 0, %s81
    %s82 = sphi 0, %s79
    %s83 = sphi 0, %s82
    %s99 = sphi 0, %s83
    %s105 = sphi 0, %s107
    %s108 = sphi 0, %s105
    %s109 = sphi 0, %s108
    %s125 = sphi 0, %s109
    %s135 = sphi 0, %s137
    %s138 = sphi 0, %s135
    %s139 = sphi 0, %s138
    %s155 = sphi 0, %s139
  $region4: #{image_vae_forward.15} parent=0 // loop_header_branch
    %12 = sbr.rel (%p10) target = $region8
  $region5: #{image_vae_forward.15} parent=0 // loop_body
    %s14 = ssub.s32 %s9, 1
    %s15 = ssub.s32 %s9, 2
    %s28 = sadd.s32 1, %s19
    %p29 = scmp.ge.s32.totalorder %s28, 1
    %s30 = scalar_select %p29, 0, %s28
    %s31 = sadd.s32 1, %s18
    %s32 = scalar_select %p29, %s31, %s18
    %p33 = scmp.ge.s32.totalorder %s32, 1
    %s34 = scalar_select %p33, 0, %s32
    %s35 = sadd.s32 1, %s17
    %s36 = scalar_select %p33, %s35, %s17
    %p37 = scmp.ge.s32.totalorder %s36, 1
    %s38 = scalar_select %p37, 0, %s36
    %s39 = sadd.s32 1, %s16
    %s40 = scalar_select %p37, %s39, %s16
    %p41 = scmp.ge.s32.totalorder %s40, 4
    %s42 = scalar_select %p41, 0, %s40
    %s43 = ssub.s32 %s16, %s42
    %s44 = ssub.s32 %s17, %s38
    %s45 = sor.u32 %s43, %s44
    %s46 = ssub.s32 %s19, %s30
    %s47 = sor.u32 %s45, %s46
    %p48 = scmp.eq.s32.totalorder %s47, 0
    %s50 = sadd.s32 %s49, 1
    %s51 = scalar_select %p48, %s49, %s50
    %p54 = pneg %p48
    %p55 = scmp.eq.s32.totalorder %s9, 3
    %p56 = por %p54, %p55
    %p57 = scmp.ne.s32.totalorder %s49, %s52
    %p58 = scmp.eq.s32.totalorder %s9, 0
    %p59 = por %p57, %p58
    %p60 = scmp.ne.s32.totalorder %s49, %s52
    %p61 = scmp.eq.s32.totalorder %s14, 3
    %p62 = por %p60, %p61
    %p63 = scmp.ne.s32.totalorder %s52, %s53
    %p64 = scmp.eq.s32.totalorder %s14, 0
    %p65 = por %p63, %p64
    %p66 = scmp.ne.s32.totalorder %s52, %s53
    %p67 = scmp.eq.s32.totalorder %s15, 3
    %p68 = por %p66, %p67
    %p70 = scmp.ne.s32.totalorder %s53, %s69
    %p71 = scmp.eq.s32.totalorder %s15, 0
    %p72 = por %p70, %p71
    %s73 = ssub.s32 %s16, %s42
    %s74 = ssub.s32 %s19, %s30
    %s75 = sor.u32 %s73, %s74
    %s76 = ssub.s32 %s18, %s34
    %s77 = sor.u32 %s75, %s76
    %p78 = scmp.eq.s32.totalorder %s77, 0
    %s80 = sadd.s32 %s79, 1
    %s81 = scalar_select %p78, %s79, %s80
    %p84 = pneg %p78
    %p85 = scmp.eq.s32.totalorder %s9, 3
    %p86 = por %p84, %p85
    %p87 = scmp.ne.s32.totalorder %s79, %s82
    %p88 = scmp.eq.s32.totalorder %s9, 0
    %p89 = por %p87, %p88
    %p90 = scmp.ne.s32.totalorder %s79, %s82
    %p91 = scmp.eq.s32.totalorder %s14, 3
    %p92 = por %p90, %p91
    %p93 = scmp.ne.s32.totalorder %s82, %s83
    %p94 = scmp.eq.s32.totalorder %s14, 0
    %p95 = por %p93, %p94
    %p96 = scmp.ne.s32.totalorder %s82, %s83
    %p97 = scmp.eq.s32.totalorder %s15, 3
    %p98 = por %p96, %p97
    %p100 = scmp.ne.s32.totalorder %s83, %s99
    %p101 = scmp.eq.s32.totalorder %s15, 0
    %p102 = por %p100, %p101
    %s103 = ssub.s32 %s18, %s34
    %p104 = scmp.eq.s32.totalorder %s103, 0
    %s106 = sadd.s32 %s105, 1
    %s107 = scalar_select %p104, %s105, %s106
    %p110 = pneg %p104
    %p111 = scmp.eq.s32.totalorder %s9, 3
    %p112 = por %p110, %p111
    %p113 = scmp.ne.s32.totalorder %s105, %s108
    %p114 = scmp.eq.s32.totalorder %s9, 0
    %p115 = por %p113, %p114
    %p116 = scmp.ne.s32.totalorder %s105, %s108
    %p117 = scmp.eq.s32.totalorder %s14, 3
    %p118 = por %p116, %p117
    %p119 = scmp.ne.s32.totalorder %s108, %s109
    %p120 = scmp.eq.s32.totalorder %s14, 0
    %p121 = por %p119, %p120
    %p122 = scmp.ne.s32.totalorder %s108, %s109
    %p123 = scmp.eq.s32.totalorder %s15, 3
    %p124 = por %p122, %p123
    %p126 = scmp.ne.s32.totalorder %s109, %s125
    %p127 = scmp.eq.s32.totalorder %s15, 0
    %p128 = por %p126, %p127
    %s129 = ssub.s32 %s16, %s42
    %s130 = ssub.s32 %s17, %s38
    %s131 = sor.u32 %s129, %s130
    %s132 = ssub.s32 %s18, %s34
    %s133 = sor.u32 %s131, %s132
    %p134 = scmp.eq.s32.totalorder %s133, 0
    %s136 = sadd.s32 %s135, 1
    %s137 = scalar_select %p134, %s135, %s136
    %p140 = pneg %p134
    %p141 = scmp.eq.s32.totalorder %s9, 3
    %p142 = por %p140, %p141
    %p143 = scmp.ne.s32.totalorder %s135, %s138
    %p144 = scmp.eq.s32.totalorder %s9, 0
    %p145 = por %p143, %p144
    %p146 = scmp.ne.s32.totalorder %s135, %s138
    %p147 = scmp.eq.s32.totalorder %s14, 3
    %p148 = por %p146, %p147
    %p149 = scmp.ne.s32.totalorder %s138, %s139
    %p150 = scmp.eq.s32.totalorder %s14, 0
    %p151 = por %p149, %p150
    %p152 = scmp.ne.s32.totalorder %s138, %s139
    %p153 = scmp.eq.s32.totalorder %s15, 3
    %p154 = por %p152, %p153
    %p156 = scmp.ne.s32.totalorder %s139, %s155
    %p157 = scmp.eq.s32.totalorder %s15, 0
    %p158 = por %p156, %p157
    %p159 = scmp.le.s32.totalorder 1, %s9
    %p160 = scmp.lt.s32.totalorder %s9, 5
    %p161 = pnand %p159, %p160
    %p162 = pneg %p161
    // Predicated region
    $region9: #{image_vae_forward.15} parent=5 // pred_check
      _
    $region10: #{image_vae_forward.15} parent=5 // pred_check_branch
      %164 = sbr.rel (%p161) target = $region12
    $region11: #{image_vae_forward.15} parent=5 // pred_region
      %s165 = ssub.s32 %s9, 1
      // Predicated region
      $region13: #{image_vae_forward.15} parent=11 // pred_check
        %p166 = pneg %p121
      $region14: #{image_vae_forward.15} parent=11 // pred_check_branch
        %168 = sbr.rel (%p166) target = $region16
      $region15: #{image_vae_forward.15} parent=11 // pred_region
        %p169 = scmp.lt.s32.totalorder %s22, 0
        %s170 = scalar_select %p169, %s22, 0
        %s171 = scalar_lea.vmem %s2, %s170
      $region16: #{image_vae_forward.15} parent=11 // pred_fallthru
        _
    $region12: #{image_vae_forward.15} parent=5 // pred_fallthru
      _
    %p172 = scmp.lt.s32.totalorder %s9, 4
    // Predicated region
    $region17: #{image_vae_forward.15} parent=5 // pred_check
      %p173 = pneg %p172
    $region18: #{image_vae_forward.15} parent=5 // pred_check_branch
      %175 = sbr.rel (%p173) target = $region20
    $region19: #{image_vae_forward.15} parent=5 // pred_region
      // Predicated region
      $region21: #{image_vae_forward.15} parent=19 // pred_check
        %p176 = pneg %p59
      $region22: #{image_vae_forward.15} parent=19 // pred_check_branch
        %178 = sbr.rel (%p176) target = $region24
      $region23: #{image_vae_forward.15} parent=19 // pred_region
        %s179 = smul.u32 16, %s17
        %p180 = scmp.lt.s32.totalorder %s16, 3
        %s181 = scalar_select %p180, %s16, 3
        %p182 = scmp.lt.s32.totalorder %s179, 15
        %s183 = scalar_select %p182, %s179, 15
        %p184 = scmp.lt.s32.totalorder %s19, 0
        %s185 = scalar_select %p184, %s19, 0
        %s186 = sadd.s32 %s185, %s183
        %s187 = smul.addr %s181, 16
        %s188 = sadd.s32 %s186, %s187
        %s189 = smul.addr %s188, 4
        %s190 = scalar_lea.vmem %s0, %s189
        %s191 = smul.u32 16, %s17
      $region24: #{image_vae_forward.15} parent=19 // pred_fallthru
        _
      // Predicated region
      $region25: #{image_vae_forward.15} parent=19 // pred_check
        %p192 = pneg %p89
      $region26: #{image_vae_forward.15} parent=19 // pred_check_branch
        %194 = sbr.rel (%p192) target = $region28
      $region27: #{image_vae_forward.15} parent=19 // pred_region
        %s195 = smul.u32 16, %s19
        %p196 = scmp.lt.s32.totalorder %s16, 3
        %s197 = scalar_select %p196, %s16, 3
        %p198 = scmp.lt.s32.totalorder %s195, 15
        %s199 = scalar_select %p198, %s195, 15
        %p200 = scmp.lt.s32.totalorder %s18, 0
        %s201 = scalar_select %p200, %s18, 0
        %s202 = sadd.s32 %s201, %s199
        %s203 = smul.addr %s197, 16
        %s204 = sadd.s32 %s202, %s203
        %s205 = smul.addr %s204, 4
        %s206 = scalar_lea.vmem %s1, %s205
        %s207 = smul.u32 16, %s19
      $region28: #{image_vae_forward.15} parent=19 // pred_fallthru
        _
    $region20: #{image_vae_forward.15} parent=5 // pred_fallthru
      _
    %p208 = scmp.le.s32.totalorder 1, %s9
    %p209 = scmp.lt.s32.totalorder %s9, 5
    %p210 = pnand %p208, %p209
    %p211 = pneg %p210
    // Predicated region
    $region29: #{image_vae_forward.15} parent=5 // pred_check
      _
    $region30: #{image_vae_forward.15} parent=5 // pred_check_branch
      %213 = sbr.rel (%p210) target = $region32
    $region31: #{image_vae_forward.15} parent=5 // pred_region
      %s214 = ssub.s32 %s9, 1
      %s215 = smul.u32 16, %s21
      %p216 = scmp.lt.s32.totalorder %s20, 3
      %s217 = scalar_select %p216, %s20, 3
      %p218 = scmp.lt.s32.totalorder %s215, 15
      %s219 = scalar_select %p218, %s215, 15
      %p220 = scmp.lt.s32.totalorder %s23, 0
      %s221 = scalar_select %p220, %s23, 0
      %s222 = sadd.s32 %s221, %s219
      %s223 = smul.addr %s217, 16
      %s224 = sadd.s32 %s222, %s223
      %s225 = smul.addr %s224, 4
      %s226 = scalar_lea.vmem %s0, %s225
      %p227 = pneg %p65
      %p228 = pneg %p62
      %s229 = smul.u32 16, %s23
      %p230 = scmp.lt.s32.totalorder %s20, 3
      %s231 = scalar_select %p230, %s20, 3
      %p232 = scmp.lt.s32.totalorder %s229, 15
      %s233 = scalar_select %p232, %s229, 15
      %p234 = scmp.lt.s32.totalorder %s22, 0
      %s235 = scalar_select %p234, %s22, 0
      %s236 = sadd.s32 %s235, %s233
      %s237 = smul.addr %s231, 16
      %s238 = sadd.s32 %s236, %s237
      %s239 = smul.addr %s238, 4
      %s240 = scalar_lea.vmem %s1, %s239
      %p241 = pneg %p95
      %p242 = pneg %p92
      %p243 = scmp.lt.s32.totalorder %s22, 0
      %s244 = scalar_select %p243, %s22, 0
      %s245 = scalar_lea.vmem %s2, %s244
      %p246 = pneg %p121
      %p247 = pneg %p118
      %p248 = pneg %p151
      %p249 = pneg %p148
      %s250 = smul.u32 16, %s21
      %p251 = scmp.lt.s32.totalorder %s20, 3
      %s252 = scalar_select %p251, %s20, 3
      %p253 = scmp.lt.s32.totalorder %s250, 15
      %s254 = scalar_select %p253, %s250, 15
      %p255 = scmp.lt.s32.totalorder %s22, 0
      %s256 = scalar_select %p255, %s22, 0
      %s257 = sadd.s32 %s256, %s254
      %s258 = smul.addr %s252, 16
      %s259 = sadd.s32 %s257, %s258
      %s260 = smul.addr %s259, 8
      %s261 = scalar_lea.vmem %s3, %s260
      %s262 = smul.u32 16, %s21
      %p263 = scmp.lt.s32.totalorder %s20, 3
      %s264 = scalar_select %p263, %s20, 3
      %p265 = scmp.lt.s32.totalorder %s262, 15
      %s266 = scalar_select %p265, %s262, 15
      %p267 = scmp.lt.s32.totalorder %s23, 0
      %s268 = scalar_select %p267, %s23, 0
      %s269 = sadd.s32 %s268, %s266
      %s270 = smul.addr %s264, 16
      %s271 = sadd.s32 %s269, %s270
      %s272 = smul.addr %s271, 4
      %s273 = scalar_lea.vmem %s0, %s272
      %s274 = smul.u32 16, %s21
      %s275 = smul.u32 16, %s23
      %p276 = scmp.lt.s32.totalorder %s20, 3
      %s277 = scalar_select %p276, %s20, 3
      %p278 = scmp.lt.s32.totalorder %s275, 15
      %s279 = scalar_select %p278, %s275, 15
      %p280 = scmp.lt.s32.totalorder %s22, 0
      %s281 = scalar_select %p280, %s22, 0
      %s282 = sadd.s32 %s281, %s279
      %s283 = smul.addr %s277, 16
      %s284 = sadd.s32 %s282, %s283
      %s285 = smul.addr %s284, 4
      %s286 = scalar_lea.vmem %s1, %s285
      %s287 = smul.u32 16, %s23
      %p288 = scmp.lt.s32.totalorder %s22, 0
      %s289 = scalar_select %p288, %s22, 0
      %s290 = scalar_lea.vmem %s2, %s289
      %s291 = smul.u32 16, %s21
      %p292 = scmp.lt.s32.totalorder %s20, 3
      %s293 = scalar_select %p292, %s20, 3
      %p294 = scmp.lt.s32.totalorder %s291, 15
      %s295 = scalar_select %p294, %s291, 15
      %p296 = scmp.lt.s32.totalorder %s22, 0
      %s297 = scalar_select %p296, %s22, 0
      %s298 = sadd.s32 %s297, %s295
      %s299 = smul.addr %s293, 16
      %s300 = sadd.s32 %s298, %s299
      %s301 = smul.addr %s300, 8
      %s302 = scalar_lea.vmem %s3, %s301
      %s303 = smul.u32 16, %s21
      %p304 = scmp.eq.s32.totalorder %s23, 0
      // Predicated region
      $region33: #{image_vae_forward.15} parent=31 // pred_check
        %p305 = pneg %p304
      $region34: #{image_vae_forward.15} parent=31 // pred_check_branch
        %307 = sbr.rel (%p305) target = $region36
      $region35: #{image_vae_forward.15} parent=31 // pred_region
        %308 = vst [vmem:[#allocation2] sm:$0xff] 0.0
        %309 = vst [vmem:[#allocation2 + $0x8] sm:$0xff] 0.0
        %310 = vst [vmem:[#allocation2 + $0x10] sm:$0xff] 0.0
        %311 = vst [vmem:[#allocation2 + $0x18] sm:$0xff] 0.0
        %312 = vst [vmem:[#allocation2 + $0x20] sm:$0xff] 0.0
        %313 = vst [vmem:[#allocation2 + $0x28] sm:$0xff] 0.0
        %314 = vst [vmem:[#allocation2 + $0x30] sm:$0xff] 0.0
        %315 = vst [vmem:[#allocation2 + $0x38] sm:$0xff] 0.0
        %316 = vst [vmem:[#allocation2 + $0x40] sm:$0xff] 0.0
        %317 = vst [vmem:[#allocation2 + $0x48] sm:$0xff] 0.0
        %318 = vst [vmem:[#allocation2 + $0x50] sm:$0xff] 0.0
        %319 = vst [vmem:[#allocation2 + $0x58] sm:$0xff] 0.0
        %320 = vst [vmem:[#allocation2 + $0x60] sm:$0xff] 0.0
        %321 = vst [vmem:[#allocation2 + $0x68] sm:$0xff] 0.0
        %322 = vst [vmem:[#allocation2 + $0x70] sm:$0xff] 0.0
        %323 = vst [vmem:[#allocation2 + $0x78] sm:$0xff] 0.0
      $region36: #{image_vae_forward.15} parent=31 // pred_fallthru
        _
      %v324 = vld [vmem:[#allocation2] sm:$0xff]
      %v325 = vld [vmem:[#allocation2 + $0x8] sm:$0xff]
      %v326 = vld [vmem:[#allocation2 + $0x10] sm:$0xff]
      %v327 = vld [vmem:[#allocation2 + $0x18] sm:$0xff]
      %v328 = vld [vmem:[#allocation2 + $0x20] sm:$0xff]
      %v329 = vld [vmem:[#allocation2 + $0x28] sm:$0xff]
      %v330 = vld [vmem:[#allocation2 + $0x30] sm:$0xff]
      %v331 = vld [vmem:[#allocation2 + $0x38] sm:$0xff]
      %v332 = vld [vmem:[#allocation2 + $0x40] sm:$0xff]
      %v333 = vld [vmem:[#allocation2 + $0x48] sm:$0xff]
      %v334 = vld [vmem:[#allocation2 + $0x50] sm:$0xff]
      %v335 = vld [vmem:[#allocation2 + $0x58] sm:$0xff]
      %v336 = vld [vmem:[#allocation2 + $0x60] sm:$0xff]
      %v337 = vld [vmem:[#allocation2 + $0x68] sm:$0xff]
      %v338 = vld [vmem:[#allocation2 + $0x70] sm:$0xff]
      %v339 = vld [vmem:[#allocation2 + $0x78] sm:$0xff]
      %v340 = vld [vmem:[%s273] sm:$0xf]
      %v341 = vld [vmem:[%s273 + $0x4] sm:$0xf]
      %v342 = vld [vmem:[%s273 + $0x8] sm:$0xf]
      %v343 = vld [vmem:[%s273 + $0xc] sm:$0xf]
      %v344 = vld [vmem:[%s273 + $0x10] sm:$0xf]
      %v345 = vld [vmem:[%s273 + $0x14] sm:$0xf]
      %v346 = vld [vmem:[%s273 + $0x18] sm:$0xf]
      %v347 = vld [vmem:[%s273 + $0x1c] sm:$0xf]
      %v348 = vld [vmem:[%s273 + $0x20] sm:$0xf]
      %v349 = vld [vmem:[%s273 + $0x24] sm:$0xf]
      %v350 = vld [vmem:[%s273 + $0x28] sm:$0xf]
      %v351 = vld [vmem:[%s273 + $0x2c] sm:$0xf]
      %v352 = vld [vmem:[%s273 + $0x30] sm:$0xf]
      %v353 = vld [vmem:[%s273 + $0x34] sm:$0xf]
      %v354 = vld [vmem:[%s273 + $0x38] sm:$0xf]
      %v355 = vld [vmem:[%s273 + $0x3c] sm:$0xf]
      %v356 = vld [vmem:[%s286] sm:$0xf]
      %v357 = vld [vmem:[%s286 + $0x4] sm:$0xf]
      %v358 = vld [vmem:[%s286 + $0x8] sm:$0xf]
      %v359 = vld [vmem:[%s286 + $0xc] sm:$0xf]
      %v360 = vld [vmem:[%s286 + $0x10] sm:$0xf]
      %v361 = vld [vmem:[%s286 + $0x14] sm:$0xf]
      %v362 = vld [vmem:[%s286 + $0x18] sm:$0xf]
      %v363 = vld [vmem:[%s286 + $0x1c] sm:$0xf]
      %v364 = vld [vmem:[%s286 + $0x20] sm:$0xf]
      %v365 = vld [vmem:[%s286 + $0x24] sm:$0xf]
      %v366 = vld [vmem:[%s286 + $0x28] sm:$0xf]
      %v367 = vld [vmem:[%s286 + $0x2c] sm:$0xf]
      %v368 = vld [vmem:[%s286 + $0x30] sm:$0xf]
      %v369 = vld [vmem:[%s286 + $0x34] sm:$0xf]
      %v370 = vld [vmem:[%s286 + $0x38] sm:$0xf]
      %v371 = vld [vmem:[%s286 + $0x3c] sm:$0xf]
      %v388 = vunpack.c.l.b16 %v340
      %v389 = vunpack.c.l.b16 %v341
      %v390 = vunpack.c.l.b16 %v342
      %v391 = vunpack.c.l.b16 %v343
      %v392 = vunpack.c.l.b16 %v344
      %v393 = vunpack.c.l.b16 %v345
      %v394 = vunpack.c.l.b16 %v346
      %v395 = vunpack.c.l.b16 %v347
      %v396 = vunpack.c.l.b16 %v348
      %v397 = vunpack.c.l.b16 %v349
      %v398 = vunpack.c.l.b16 %v350
      %v399 = vunpack.c.l.b16 %v351
      %v400 = vunpack.c.l.b16 %v352
      %v401 = vunpack.c.l.b16 %v353
      %v402 = vunpack.c.l.b16 %v354
      %v403 = vunpack.c.l.b16 %v355
      %v404 = vpack.c.b16 %v389, %v388
      %v405 = vpack.c.b16 %v391, %v390
      %v406 = vpack.c.b16 %v393, %v392
      %v407 = vpack.c.b16 %v395, %v394
      %v408 = vpack.c.b16 %v397, %v396
      %v409 = vpack.c.b16 %v399, %v398
      %v410 = vpack.c.b16 %v401, %v400
      %v411 = vpack.c.b16 %v403, %v402
      %v436 = vunpack.c.l.b16 %v356
      %v437 = vunpack.c.l.b16 %v357
      %v438 = vunpack.c.l.b16 %v358
      %v439 = vunpack.c.l.b16 %v359
      %v440 = vunpack.c.l.b16 %v360
      %v441 = vunpack.c.l.b16 %v361
      %v442 = vunpack.c.l.b16 %v362
      %v443 = vunpack.c.l.b16 %v363
      %v444 = vunpack.c.l.b16 %v364
      %v445 = vunpack.c.l.b16 %v365
      %v446 = vunpack.c.l.b16 %v366
      %v447 = vunpack.c.l.b16 %v367
      %v448 = vunpack.c.l.b16 %v368
      %v449 = vunpack.c.l.b16 %v369
      %v450 = vunpack.c.l.b16 %v370
      %v451 = vunpack.c.l.b16 %v371
      %v452 = vpack.c.b16 %v437, %v436
      %v453 = vpack.c.b16 %v439, %v438
      %v454 = vpack.c.b16 %v441, %v440
      %v455 = vpack.c.b16 %v443, %v442
      %v456 = vpack.c.b16 %v445, %v444
      %v457 = vpack.c.b16 %v447, %v446
      %v458 = vpack.c.b16 %v449, %v448
      %v459 = vpack.c.b16 %v451, %v450
      %468 = vmatpush.bf16.msra.mxu0 %v459
      %469 = vmatpush.bf16.msra.mxu0 %v458
      %470 = vmatpush.bf16.msra.mxu0 %v457
      %471 = vmatpush.bf16.msra.mxu0 %v456
      %472 = vmatpush.bf16.msra.mxu0 %v455
      %473 = vmatpush.bf16.msra.mxu0 %v454
      %474 = vmatpush.bf16.msra.mxu0 %v453
      %475 = vmatpush.bf16.msra.mxu0 %v452
      %476 = vmatmul.bf16.gmra.mxu0 %v404
      %v477 = vpop.f32.mrf.mxu0
      %v478 = vadd.f32 0.0, %v477
      %v479 = vpop.f32.mrf.mxu0
      %v480 = vadd.f32 0.0, %v479
      %481 = vmatmul.bf16.gmra.mxu0 %v405
      %v482 = vpop.f32.mrf.mxu0
      %v483 = vadd.f32 0.0, %v482
      %v484 = vpop.f32.mrf.mxu0
      %v485 = vadd.f32 0.0, %v484
      %486 = vmatmul.bf16.gmra.mxu0 %v406
      %v487 = vpop.f32.mrf.mxu0
      %v488 = vadd.f32 0.0, %v487
      %v489 = vpop.f32.mrf.mxu0
      %v490 = vadd.f32 0.0, %v489
      %491 = vmatmul.bf16.gmra.mxu0 %v407
      %v492 = vpop.f32.mrf.mxu0
      %v493 = vadd.f32 0.0, %v492
      %v494 = vpop.f32.mrf.mxu0
      %v495 = vadd.f32 0.0, %v494
      %496 = vmatmul.bf16.gmra.mxu0 %v408
      %v497 = vpop.f32.mrf.mxu0
      %v498 = vadd.f32 0.0, %v497
      %v499 = vpop.f32.mrf.mxu0
      %v500 = vadd.f32 0.0, %v499
      %501 = vmatmul.bf16.gmra.mxu0 %v409
      %v502 = vpop.f32.mrf.mxu0
      %v503 = vadd.f32 0.0, %v502
      %v504 = vpop.f32.mrf.mxu0
      %v505 = vadd.f32 0.0, %v504
      %506 = vmatmul.bf16.gmra.mxu0 %v410
      %v507 = vpop.f32.mrf.mxu0
      %v508 = vadd.f32 0.0, %v507
      %v509 = vpop.f32.mrf.mxu0
      %v510 = vadd.f32 0.0, %v509
      %511 = vmatmul.bf16.gmra.mxu0 %v411
      %v512 = vpop.f32.mrf.mxu0
      %v513 = vadd.f32 0.0, %v512
      %v514 = vpop.f32.mrf.mxu0
      %v515 = vadd.f32 0.0, %v514
      %516 = vdwg.mxu0
      %v517 = vadd.f32 %v324, %v478
      %v518 = vadd.f32 %v325, %v480
      %v519 = vadd.f32 %v326, %v483
      %v520 = vadd.f32 %v327, %v485
      %v521 = vadd.f32 %v328, %v488
      %v522 = vadd.f32 %v329, %v490
      %v523 = vadd.f32 %v330, %v493
      %v524 = vadd.f32 %v331, %v495
      %v525 = vadd.f32 %v332, %v498
      %v526 = vadd.f32 %v333, %v500
      %v527 = vadd.f32 %v334, %v503
      %v528 = vadd.f32 %v335, %v505
      %v529 = vadd.f32 %v336, %v508
      %v530 = vadd.f32 %v337, %v510
      %v531 = vadd.f32 %v338, %v513
      %v532 = vadd.f32 %v339, %v515
      %533 = vst [vmem:[#allocation2] sm:$0xff] %v517
      %534 = vst [vmem:[#allocation2 + $0x8] sm:$0xff] %v518
      %535 = vst [vmem:[#allocation2 + $0x10] sm:$0xff] %v519
      %536 = vst [vmem:[#allocation2 + $0x18] sm:$0xff] %v520
      %537 = vst [vmem:[#allocation2 + $0x20] sm:$0xff] %v521
      %538 = vst [vmem:[#allocation2 + $0x28] sm:$0xff] %v522
      %539 = vst [vmem:[#allocation2 + $0x30] sm:$0xff] %v523
      %540 = vst [vmem:[#allocation2 + $0x38] sm:$0xff] %v524
      %541 = vst [vmem:[#allocation2 + $0x40] sm:$0xff] %v525
      %542 = vst [vmem:[#allocation2 + $0x48] sm:$0xff] %v526
      %543 = vst [vmem:[#allocation2 + $0x50] sm:$0xff] %v527
      %544 = vst [vmem:[#allocation2 + $0x58] sm:$0xff] %v528
      %545 = vst [vmem:[#allocation2 + $0x60] sm:$0xff] %v529
      %546 = vst [vmem:[#allocation2 + $0x68] sm:$0xff] %v530
      %547 = vst [vmem:[#allocation2 + $0x70] sm:$0xff] %v531
      %548 = vst [vmem:[#allocation2 + $0x78] sm:$0xff] %v532
      // Predicated region
      $region37: #{image_vae_forward.15} parent=31 // pred_check
        %p549 = pneg %p304
      $region38: #{image_vae_forward.15} parent=31 // pred_check_branch
        %551 = sbr.rel (%p549) target = $region40
      $region39: #{image_vae_forward.15} parent=31 // pred_region
        %v552 = vld [vmem:[#allocation2] sm:$0xff]
        %v553 = vld [vmem:[#allocation2 + $0x8] sm:$0xff]
        %v554 = vld [vmem:[#allocation2 + $0x10] sm:$0xff]
        %v555 = vld [vmem:[#allocation2 + $0x18] sm:$0xff]
        %v556 = vld [vmem:[#allocation2 + $0x20] sm:$0xff]
        %v557 = vld [vmem:[#allocation2 + $0x28] sm:$0xff]
        %v558 = vld [vmem:[#allocation2 + $0x30] sm:$0xff]
        %v559 = vld [vmem:[#allocation2 + $0x38] sm:$0xff]
        %v560 = vld [vmem:[#allocation2 + $0x40] sm:$0xff]
        %v561 = vld [vmem:[#allocation2 + $0x48] sm:$0xff]
        %v562 = vld [vmem:[#allocation2 + $0x50] sm:$0xff]
        %v563 = vld [vmem:[#allocation2 + $0x58] sm:$0xff]
        %v564 = vld [vmem:[#allocation2 + $0x60] sm:$0xff]
        %v565 = vld [vmem:[#allocation2 + $0x68] sm:$0xff]
        %v566 = vld [vmem:[#allocation2 + $0x70] sm:$0xff]
        %v567 = vld [vmem:[#allocation2 + $0x78] sm:$0xff]
        %v568 = vld [vmem:[%s290] sm:$0x1]
        %v570 = vperm.slane %v568, 0
        %v572 = vadd.f32 %v552, %v570
        %v573 = vadd.f32 %v553, %v570
        %v574 = vadd.f32 %v554, %v570
        %v575 = vadd.f32 %v555, %v570
        %v576 = vadd.f32 %v556, %v570
        %v577 = vadd.f32 %v557, %v570
        %v578 = vadd.f32 %v558, %v570
        %v579 = vadd.f32 %v559, %v570
        %v580 = vadd.f32 %v560, %v570
        %v581 = vadd.f32 %v561, %v570
        %v582 = vadd.f32 %v562, %v570
        %v583 = vadd.f32 %v563, %v570
        %v584 = vadd.f32 %v564, %v570
        %v585 = vadd.f32 %v565, %v570
        %v586 = vadd.f32 %v566, %v570
        %v587 = vadd.f32 %v567, %v570
        %v588 = vxor.u32 %v572, 2147483648
        %v589 = vxor.u32 %v573, 2147483648
        %v590 = vxor.u32 %v574, 2147483648
        %v591 = vxor.u32 %v575, 2147483648
        %v592 = vxor.u32 %v576, 2147483648
        %v593 = vxor.u32 %v577, 2147483648
        %v594 = vxor.u32 %v578, 2147483648
        %v595 = vxor.u32 %v579, 2147483648
        %v596 = vxor.u32 %v580, 2147483648
        %v597 = vxor.u32 %v581, 2147483648
        %v598 = vxor.u32 %v582, 2147483648
        %v599 = vxor.u32 %v583, 2147483648
        %v600 = vxor.u32 %v584, 2147483648
        %v601 = vxor.u32 %v585, 2147483648
        %v602 = vxor.u32 %v586, 2147483648
        %v603 = vxor.u32 %v587, 2147483648
        %v604 = vmul.f32 %v588, 1.442695
        %v605 = vpow.pop %v604
        %v606 = vmul.f32 %v589, 1.442695
        %v607 = vpow.pop %v606
        %v608 = vmul.f32 %v590, 1.442695
        %v609 = vpow.pop %v608
        %v610 = vmul.f32 %v591, 1.442695
        %v611 = vpow.pop %v610
        %v612 = vmul.f32 %v592, 1.442695
        %v613 = vpow.pop %v612
        %v614 = vmul.f32 %v593, 1.442695
        %v615 = vpow.pop %v614
        %v616 = vmul.f32 %v594, 1.442695
        %v617 = vpow.pop %v616
        %v618 = vmul.f32 %v595, 1.442695
        %v619 = vpow.pop %v618
        %v620 = vmul.f32 %v596, 1.442695
        %v621 = vpow.pop %v620
        %v622 = vmul.f32 %v597, 1.442695
        %v623 = vpow.pop %v622
        %v624 = vmul.f32 %v598, 1.442695
        %v625 = vpow.pop %v624
        %v626 = vmul.f32 %v599, 1.442695
        %v627 = vpow.pop %v626
        %v628 = vmul.f32 %v600, 1.442695
        %v629 = vpow.pop %v628
        %v630 = vmul.f32 %v601, 1.442695
        %v631 = vpow.pop %v630
        %v632 = vmul.f32 %v602, 1.442695
        %v633 = vpow.pop %v632
        %v634 = vmul.f32 %v603, 1.442695
        %v635 = vpow.pop %v634
        %v636 = vadd.f32 %v605, 1.0
        %v637 = vadd.f32 %v607, 1.0
        %v638 = vadd.f32 %v609, 1.0
        %v639 = vadd.f32 %v611, 1.0
        %v640 = vadd.f32 %v613, 1.0
        %v641 = vadd.f32 %v615, 1.0
        %v642 = vadd.f32 %v617, 1.0
        %v643 = vadd.f32 %v619, 1.0
        %v644 = vadd.f32 %v621, 1.0
        %v645 = vadd.f32 %v623, 1.0
        %v646 = vadd.f32 %v625, 1.0
        %v647 = vadd.f32 %v627, 1.0
        %v648 = vadd.f32 %v629, 1.0
        %v649 = vadd.f32 %v631, 1.0
        %v650 = vadd.f32 %v633, 1.0
        %v651 = vadd.f32 %v635, 1.0
        %v652 = vrcp.pop %v636
        %v653 = vmul.f32 %v636, %v652
        %v654 = vsub.f32 1.0, %v653
        %v655 = vmul.f32 %v652, %v654
        %v656 = vadd.f32 %v652, %v655
        %vm657 = vweird.f32 %v636
        %vm658 = vweird.f32 %v652
        %vm659 = vmor %vm657, %vm658
        %v660 = vsel %vm659, %v652, %v656
        %v661 = vand.u32 2147483647, %v636
        %vm662 = vcmp.eq.f32.partialorder %v661, 8.507059e+37
        %v663 = vand.u32 %v636, 2147483648
        %v664 = vor.u32 1.1754944e-38, %v663
        %v665 = vsel %vm662, %v664, %v660
        %v666 = vmul.f32 1.0, %v665
        %v667 = vrcp.pop %v637
        %v668 = vmul.f32 %v637, %v667
        %v669 = vsub.f32 1.0, %v668
        %v670 = vmul.f32 %v667, %v669
        %v671 = vadd.f32 %v667, %v670
        %vm672 = vweird.f32 %v637
        %vm673 = vweird.f32 %v667
        %vm674 = vmor %vm672, %vm673
        %v675 = vsel %vm674, %v667, %v671
        %v676 = vand.u32 2147483647, %v637
        %vm677 = vcmp.eq.f32.partialorder %v676, 8.507059e+37
        %v678 = vand.u32 %v637, 2147483648
        %v679 = vor.u32 1.1754944e-38, %v678
        %v680 = vsel %vm677, %v679, %v675
        %v681 = vmul.f32 1.0, %v680
        %v682 = vrcp.pop %v638
        %v683 = vmul.f32 %v638, %v682
        %v684 = vsub.f32 1.0, %v683
        %v685 = vmul.f32 %v682, %v684
        %v686 = vadd.f32 %v682, %v685
        %vm687 = vweird.f32 %v638
        %vm688 = vweird.f32 %v682
        %vm689 = vmor %vm687, %vm688
        %v690 = vsel %vm689, %v682, %v686
        %v691 = vand.u32 2147483647, %v638
        %vm692 = vcmp.eq.f32.partialorder %v691, 8.507059e+37
        %v693 = vand.u32 %v638, 2147483648
        %v694 = vor.u32 1.1754944e-38, %v693
        %v695 = vsel %vm692, %v694, %v690
        %v696 = vmul.f32 1.0, %v695
        %v697 = vrcp.pop %v639
        %v698 = vmul.f32 %v639, %v697
        %v699 = vsub.f32 1.0, %v698
        %v700 = vmul.f32 %v697, %v699
        %v701 = vadd.f32 %v697, %v700
        %vm702 = vweird.f32 %v639
        %vm703 = vweird.f32 %v697
        %vm704 = vmor %vm702, %vm703
        %v705 = vsel %vm704, %v697, %v701
        %v706 = vand.u32 2147483647, %v639
        %vm707 = vcmp.eq.f32.partialorder %v706, 8.507059e+37
        %v708 = vand.u32 %v639, 2147483648
        %v709 = vor.u32 1.1754944e-38, %v708
        %v710 = vsel %vm707, %v709, %v705
        %v711 = vmul.f32 1.0, %v710
        %v712 = vrcp.pop %v640
        %v713 = vmul.f32 %v640, %v712
        %v714 = vsub.f32 1.0, %v713
        %v715 = vmul.f32 %v712, %v714
        %v716 = vadd.f32 %v712, %v715
        %vm717 = vweird.f32 %v640
        %vm718 = vweird.f32 %v712
        %vm719 = vmor %vm717, %vm718
        %v720 = vsel %vm719, %v712, %v716
        %v721 = vand.u32 2147483647, %v640
        %vm722 = vcmp.eq.f32.partialorder %v721, 8.507059e+37
        %v723 = vand.u32 %v640, 2147483648
        %v724 = vor.u32 1.1754944e-38, %v723
        %v725 = vsel %vm722, %v724, %v720
        %v726 = vmul.f32 1.0, %v725
        %v727 = vrcp.pop %v641
        %v728 = vmul.f32 %v641, %v727
        %v729 = vsub.f32 1.0, %v728
        %v730 = vmul.f32 %v727, %v729
        %v731 = vadd.f32 %v727, %v730
        %vm732 = vweird.f32 %v641
        %vm733 = vweird.f32 %v727
        %vm734 = vmor %vm732, %vm733
        %v735 = vsel %vm734, %v727, %v731
        %v736 = vand.u32 2147483647, %v641
        %vm737 = vcmp.eq.f32.partialorder %v736, 8.507059e+37
        %v738 = vand.u32 %v641, 2147483648
        %v739 = vor.u32 1.1754944e-38, %v738
        %v740 = vsel %vm737, %v739, %v735
        %v741 = vmul.f32 1.0, %v740
        %v742 = vrcp.pop %v642
        %v743 = vmul.f32 %v642, %v742
        %v744 = vsub.f32 1.0, %v743
        %v745 = vmul.f32 %v742, %v744
        %v746 = vadd.f32 %v742, %v745
        %vm747 = vweird.f32 %v642
        %vm748 = vweird.f32 %v742
        %vm749 = vmor %vm747, %vm748
        %v750 = vsel %vm749, %v742, %v746
        %v751 = vand.u32 2147483647, %v642
        %vm752 = vcmp.eq.f32.partialorder %v751, 8.507059e+37
        %v753 = vand.u32 %v642, 2147483648
        %v754 = vor.u32 1.1754944e-38, %v753
        %v755 = vsel %vm752, %v754, %v750
        %v756 = vmul.f32 1.0, %v755
        %v757 = vrcp.pop %v643
        %v758 = vmul.f32 %v643, %v757
        %v759 = vsub.f32 1.0, %v758
        %v760 = vmul.f32 %v757, %v759
        %v761 = vadd.f32 %v757, %v760
        %vm762 = vweird.f32 %v643
        %vm763 = vweird.f32 %v757
        %vm764 = vmor %vm762, %vm763
        %v765 = vsel %vm764, %v757, %v761
        %v766 = vand.u32 2147483647, %v643
        %vm767 = vcmp.eq.f32.partialorder %v766, 8.507059e+37
        %v768 = vand.u32 %v643, 2147483648
        %v769 = vor.u32 1.1754944e-38, %v768
        %v770 = vsel %vm767, %v769, %v765
        %v771 = vmul.f32 1.0, %v770
        %v772 = vrcp.pop %v644
        %v773 = vmul.f32 %v644, %v772
        %v774 = vsub.f32 1.0, %v773
        %v775 = vmul.f32 %v772, %v774
        %v776 = vadd.f32 %v772, %v775
        %vm777 = vweird.f32 %v644
        %vm778 = vweird.f32 %v772
        %vm779 = vmor %vm777, %vm778
        %v780 = vsel %vm779, %v772, %v776
        %v781 = vand.u32 2147483647, %v644
        %vm782 = vcmp.eq.f32.partialorder %v781, 8.507059e+37
        %v783 = vand.u32 %v644, 2147483648
        %v784 = vor.u32 1.1754944e-38, %v783
        %v785 = vsel %vm782, %v784, %v780
        %v786 = vmul.f32 1.0, %v785
        %v787 = vrcp.pop %v645
        %v788 = vmul.f32 %v645, %v787
        %v789 = vsub.f32 1.0, %v788
        %v790 = vmul.f32 %v787, %v789
        %v791 = vadd.f32 %v787, %v790
        %vm792 = vweird.f32 %v645
        %vm793 = vweird.f32 %v787
        %vm794 = vmor %vm792, %vm793
        %v795 = vsel %vm794, %v787, %v791
        %v796 = vand.u32 2147483647, %v645
        %vm797 = vcmp.eq.f32.partialorder %v796, 8.507059e+37
        %v798 = vand.u32 %v645, 2147483648
        %v799 = vor.u32 1.1754944e-38, %v798
        %v800 = vsel %vm797, %v799, %v795
        %v801 = vmul.f32 1.0, %v800
        %v802 = vrcp.pop %v646
        %v803 = vmul.f32 %v646, %v802
        %v804 = vsub.f32 1.0, %v803
        %v805 = vmul.f32 %v802, %v804
        %v806 = vadd.f32 %v802, %v805
        %vm807 = vweird.f32 %v646
        %vm808 = vweird.f32 %v802
        %vm809 = vmor %vm807, %vm808
        %v810 = vsel %vm809, %v802, %v806
        %v811 = vand.u32 2147483647, %v646
        %vm812 = vcmp.eq.f32.partialorder %v811, 8.507059e+37
        %v813 = vand.u32 %v646, 2147483648
        %v814 = vor.u32 1.1754944e-38, %v813
        %v815 = vsel %vm812, %v814, %v810
        %v816 = vmul.f32 1.0, %v815
        %v817 = vrcp.pop %v647
        %v818 = vmul.f32 %v647, %v817
        %v819 = vsub.f32 1.0, %v818
        %v820 = vmul.f32 %v817, %v819
        %v821 = vadd.f32 %v817, %v820
        %vm822 = vweird.f32 %v647
        %vm823 = vweird.f32 %v817
        %vm824 = vmor %vm822, %vm823
        %v825 = vsel %vm824, %v817, %v821
        %v826 = vand.u32 2147483647, %v647
        %vm827 = vcmp.eq.f32.partialorder %v826, 8.507059e+37
        %v828 = vand.u32 %v647, 2147483648
        %v829 = vor.u32 1.1754944e-38, %v828
        %v830 = vsel %vm827, %v829, %v825
        %v831 = vmul.f32 1.0, %v830
        %v832 = vrcp.pop %v648
        %v833 = vmul.f32 %v648, %v832
        %v834 = vsub.f32 1.0, %v833
        %v835 = vmul.f32 %v832, %v834
        %v836 = vadd.f32 %v832, %v835
        %vm837 = vweird.f32 %v648
        %vm838 = vweird.f32 %v832
        %vm839 = vmor %vm837, %vm838
        %v840 = vsel %vm839, %v832, %v836
        %v841 = vand.u32 2147483647, %v648
        %vm842 = vcmp.eq.f32.partialorder %v841, 8.507059e+37
        %v843 = vand.u32 %v648, 2147483648
        %v844 = vor.u32 1.1754944e-38, %v843
        %v845 = vsel %vm842, %v844, %v840
        %v846 = vmul.f32 1.0, %v845
        %v847 = vrcp.pop %v649
        %v848 = vmul.f32 %v649, %v847
        %v849 = vsub.f32 1.0, %v848
        %v850 = vmul.f32 %v847, %v849
        %v851 = vadd.f32 %v847, %v850
        %vm852 = vweird.f32 %v649
        %vm853 = vweird.f32 %v847
        %vm854 = vmor %vm852, %vm853
        %v855 = vsel %vm854, %v847, %v851
        %v856 = vand.u32 2147483647, %v649
        %vm857 = vcmp.eq.f32.partialorder %v856, 8.507059e+37
        %v858 = vand.u32 %v649, 2147483648
        %v859 = vor.u32 1.1754944e-38, %v858
        %v860 = vsel %vm857, %v859, %v855
        %v861 = vmul.f32 1.0, %v860
        %v862 = vrcp.pop %v650
        %v863 = vmul.f32 %v650, %v862
        %v864 = vsub.f32 1.0, %v863
        %v865 = vmul.f32 %v862, %v864
        %v866 = vadd.f32 %v862, %v865
        %vm867 = vweird.f32 %v650
        %vm868 = vweird.f32 %v862
        %vm869 = vmor %vm867, %vm868
        %v870 = vsel %vm869, %v862, %v866
        %v871 = vand.u32 2147483647, %v650
        %vm872 = vcmp.eq.f32.partialorder %v871, 8.507059e+37
        %v873 = vand.u32 %v650, 2147483648
        %v874 = vor.u32 1.1754944e-38, %v873
        %v875 = vsel %vm872, %v874, %v870
        %v876 = vmul.f32 1.0, %v875
        %v877 = vrcp.pop %v651
        %v878 = vmul.f32 %v651, %v877
        %v879 = vsub.f32 1.0, %v878
        %v880 = vmul.f32 %v877, %v879
        %v881 = vadd.f32 %v877, %v880
        %vm882 = vweird.f32 %v651
        %vm883 = vweird.f32 %v877
        %vm884 = vmor %vm882, %vm883
        %v885 = vsel %vm884, %v877, %v881
        %v886 = vand.u32 2147483647, %v651
        %vm887 = vcmp.eq.f32.partialorder %v886, 8.507059e+37
        %v888 = vand.u32 %v651, 2147483648
        %v889 = vor.u32 1.1754944e-38, %v888
        %v890 = vsel %vm887, %v889, %v885
        %v891 = vmul.f32 1.0, %v890
        %892 = vst [vmem:[%s302] sm:$0xff] %v666
        %893 = vst [vmem:[%s302 + $0x8] sm:$0xff] %v681
        %894 = vst [vmem:[%s302 + $0x10] sm:$0xff] %v696
        %895 = vst [vmem:[%s302 + $0x18] sm:$0xff] %v711
        %896 = vst [vmem:[%s302 + $0x20] sm:$0xff] %v726
        %897 = vst [vmem:[%s302 + $0x28] sm:$0xff] %v741
        %898 = vst [vmem:[%s302 + $0x30] sm:$0xff] %v756
        %899 = vst [vmem:[%s302 + $0x38] sm:$0xff] %v771
        %900 = vst [vmem:[%s302 + $0x40] sm:$0xff] %v786
        %901 = vst [vmem:[%s302 + $0x48] sm:$0xff] %v801
        %902 = vst [vmem:[%s302 + $0x50] sm:$0xff] %v816
        %903 = vst [vmem:[%s302 + $0x58] sm:$0xff] %v831
        %904 = vst [vmem:[%s302 + $0x60] sm:$0xff] %v846
        %905 = vst [vmem:[%s302 + $0x68] sm:$0xff] %v861
        %906 = vst [vmem:[%s302 + $0x70] sm:$0xff] %v876
        %907 = vst [vmem:[%s302 + $0x78] sm:$0xff] %v891
      $region40: #{image_vae_forward.15} parent=31 // pred_fallthru
        _
      %s908 = smul.u32 16, %s21
      %p909 = scmp.lt.s32.totalorder %s20, 3
      %s910 = scalar_select %p909, %s20, 3
      %p911 = scmp.lt.s32.totalorder %s908, 15
      %s912 = scalar_select %p911, %s908, 15
      %p913 = scmp.lt.s32.totalorder %s22, 0
      %s914 = scalar_select %p913, %s22, 0
      %s915 = sadd.s32 %s914, %s912
      %s916 = smul.addr %s910, 16
      %s917 = sadd.s32 %s915, %s916
      %s918 = smul.addr %s917, 8
      %s919 = scalar_lea.vmem %s3, %s918
      // Predicated region
      $region41: #{image_vae_forward.15} parent=31 // pred_check
        %p920 = pneg %p148
      $region42: #{image_vae_forward.15} parent=31 // pred_check_branch
        %922 = sbr.rel (%p920) target = $region44
      $region43: #{image_vae_forward.15} parent=31 // pred_region
        %s923 = smul.u32 16, %s21
      $region44: #{image_vae_forward.15} parent=31 // pred_fallthru
        _
    $region32: #{image_vae_forward.15} parent=5 // pred_fallthru
      _
    %p924 = scmp.le.s32.totalorder 2, %s9
    // Predicated region
    $region45: #{image_vae_forward.15} parent=5 // pred_check
      %p925 = pneg %p924
    $region46: #{image_vae_forward.15} parent=5 // pred_check_branch
      %927 = sbr.rel (%p925) target = $region48
    $region47: #{image_vae_forward.15} parent=5 // pred_region
      %s928 = ssub.s32 %s9, 2
      // Predicated region
      $region49: #{image_vae_forward.15} parent=47 // pred_check
        %p929 = pneg %p154
      $region50: #{image_vae_forward.15} parent=47 // pred_check_branch
        %931 = sbr.rel (%p929) target = $region52
      $region51: #{image_vae_forward.15} parent=47 // pred_region
        %s932 = smul.u32 16, %s25
        %p933 = scmp.lt.s32.totalorder %s24, 3
        %s934 = scalar_select %p933, %s24, 3
        %p935 = scmp.lt.s32.totalorder %s932, 15
        %s936 = scalar_select %p935, %s932, 15
        %p937 = scmp.lt.s32.totalorder %s26, 0
        %s938 = scalar_select %p937, %s26, 0
        %s939 = sadd.s32 %s938, %s936
        %s940 = smul.addr %s934, 16
        %s941 = sadd.s32 %s939, %s940
        %s942 = smul.addr %s941, 8
        %s943 = scalar_lea.vmem %s3, %s942
      $region52: #{image_vae_forward.15} parent=47 // pred_fallthru
        _
    $region48: #{image_vae_forward.15} parent=5 // pred_fallthru
      _
  $region6: #{image_vae_forward.15} parent=0 // loop_footer
    %s13 = sadd.s32 1, %s9
  $region7: #{image_vae_forward.15} parent=0 // loop_footer_branch
    %8 = sbr.rel target = $region3
  $region8: #{image_vae_forward.15} parent=0 // loop_exit
    _

</llo_original>
